<compile_context>
chip_gen: v6e
topology: v6e:2x2x1
jax: 0.10.0
libtpu: 0.0.40
codegen_flags: <defaults>
</compile_context>

<pallas_src>
import functools
import math

import numpy as np
import jax
import jax.numpy as jnp
from jax.experimental import pallas as pl
from jax.experimental.pallas import tpu as pltpu


# ----------------------------- fused EMHSA kernel -------------------------------------
def _emhsa_fused_kernel(x_ref, wqk_ref, wvo_ref, sel_ref, epl_ref, smat_ref, mdw_ref, pw_ref,
                        o_ref, qk_s, vo_s, *, num_heads, head_dim, W):
    # x_ref:    (1, N, C)   tokens (n = d*H*W + h*W + w), channels last
    # wqk_ref:  (C, 2C)     [Wq | Wk] packed; head h is columns h*dh:(h+1)*dh of each half
    # wvo_ref:  (C, nh*C)   per-head Wv_h @ WoT_h (out-projection folded into V projection)
    # sel_ref:  (W, R, N)   0/1 row selection: tokens with w-offset w -> rows r = d*H + h
    # epl_ref:  (W, C, WC)  0/1 lane placement: channel c -> lane w*C + c
    # smat_ref: (9, R, R)   0/1 row-shift matrices for (kd,kh) taps (zero pad at d/h edges)
    # mdw_ref:  (9, WC, WC) lane-block-tridiagonal depthwise tap matrices (w shift x dw weight)
    # pw_ref:   (WC, WC)    lane-block-diagonal pointwise (1x1x1) weight
    # o_ref:    (1, R, WC)  lane-dense output block
    # qk_s/vo_s: VMEM scratch holding the fused projections, sliced per head via pl.ds
    #
    # in_proj_bias / out_proj.bias are zero-initialized by the module (qkv_bias=False), so
    # bias adds are omitted (exactly equivalent).
    # TODO(synk): attention dropout (p=0.1) is a training-only op; eval semantics here.
    f32 = jnp.float32
    x = x_ref[0]                                                        # (N, C)
    N, C = x.shape
    R = smat_ref.shape[-1]
    WC = mdw_ref.shape[-1]
    scale = 1.0 / math.sqrt(head_dim)

    # ---- multi-head self-attention: fused wide projections + per-head online softmax ----
    qk_s[...] = jnp.dot(x, wqk_ref[...], preferred_element_type=f32)    # (N, 2C)
    vo_s[...] = jnp.dot(x, wvo_ref[...], preferred_element_type=f32)    # (N, nh*C)

    attn = jnp.zeros((N, C), f32)
    for h in range(num_heads):
        q = qk_s[:, pl.ds(h * head_dim, head_dim)] * scale
        k = qk_s[:, pl.ds(C + h * head_dim, head_dim)]
        s = jax.lax.dot_general(q, k, (((1,), (1,)), ((), ())),
                                preferred_element_type=f32)             # q @ k^T, no transpose
        s = s - jnp.max(s, axis=-1, keepdims=True)
        p = jnp.exp(s)
        p = p * pl.reciprocal(jnp.sum(p, axis=-1, keepdims=True), approx=False)
        attn = attn + jnp.dot(p, vo_s[:, pl.ds(h * C, C)],
                              preferred_element_type=f32)               # (N, C)

    # ---- token-major (N, C) -> lane-dense (D*H, W*C) via selection/placement matmuls ----
    x2d = jnp.zeros((R, WC), f32)
    for w in range(W):
        rows = jnp.dot(sel_ref[w], attn, preferred_element_type=f32)        # (R, C)
        x2d = x2d + jnp.dot(rows, epl_ref[w], preferred_element_type=f32)   # (R, WC)

    # ---- depthwise 3x3x3 conv (zero padded): 9 (kd,kh) row shifts x block-tridiag w taps ----
    acc = jnp.zeros((R, WC), f32)
    for t in range(9):
        xs = jnp.dot(smat_ref[t], x2d, preferred_element_type=f32)          # row shift + d/h pad
        acc = acc + jnp.dot(xs, mdw_ref[t], preferred_element_type=f32)     # w taps * dw weight

    # ---- pointwise 1x1x1 conv, stays lane-dense for an unmasked full-lane store ----
    out2d = jnp.dot(acc, pw_ref[...], preferred_element_type=f32)           # (R, WC)
    o_ref[...] = out2d[None].astype(o_ref.dtype)


# ----------------------------- wrapper -------------------------------------------------
def emhsa_forward(x, params, spatial_dims, num_heads):
    B, N, C = x.shape
    D, H, W = spatial_dims
    assert N == D * H * W and C % num_heads == 0
    dh = C // num_heads
    R = D * H
    WC = W * C
    hi = jax.lax.Precision.HIGHEST

    # --- pack / fold MHA weights (glue, runs once per call, tiny) ---
    ipw = params["in_proj_weight"]                                     # (3C, C)
    wq = ipw[0 * C:1 * C].T                                            # (C, C)
    wk = ipw[1 * C:2 * C].T
    wv = ipw[2 * C:3 * C].T
    wot = params["out_proj_weight"].T                                  # (C, C)
    wqk = jnp.concatenate([wq, wk], axis=1)                            # (C, 2C)
    wv_r = wv.reshape(C, num_heads, dh)
    wot_r = wot.reshape(num_heads, dh, C)
    wvo = jnp.einsum("chd,hdk->chk", wv_r, wot_r, precision=hi).reshape(C, num_heads * C)

    # --- structural 0/1 matrices (layout conversion + conv boundary handling) ---
    sel = np.zeros((W, R, N), np.float32)          # sel[w, r, r*W + w] = 1
    for w in range(W):
        for r in range(R):
            sel[w, r, r * W + w] = 1.0
    epl = np.zeros((W, C, WC), np.float32)         # epl[w, c, w*C + c] = 1
    for w in range(W):
        for c in range(C):
            epl[w, c, w * C + c] = 1.0
    smat = np.zeros((3, 3, R, R), np.float32)      # row shift for (kd, kh), zero at d/h edges
    for kd in range(3):
        for kh in range(3):
            for d in range(D):
                for h in range(H):
                    di, hh = d + kd - 1, h + kh - 1
                    if 0 <= di < D and 0 <= hh < H:
                        smat[kd, kh, d * H + h, di * H + hh] = 1.0
    smat = smat.reshape(9, R, R)
    maskw = np.zeros((3, WC, WC), np.float32)      # w-shift structure (zero at w edges)
    for kw in range(3):
        for wo in range(W):
            wi = wo + kw - 1
            if 0 <= wi < W:
                for c in range(C):
                    maskw[kw, wi * C + c, wo * C + c] = 1.0

    # depthwise taps folded into 9 lane-block-tridiagonal (WC, WC) matrices
    dw = params["dw_weight"]                                           # (C, 3, 3, 3)
    wlane = jnp.tile(dw.transpose(1, 2, 3, 0), (1, 1, 1, W))           # (3, 3, 3, WC), lane%C = c
    mdw = jnp.einsum("kio,dhko->dhio", jnp.asarray(maskw), wlane,
                     precision=hi).reshape(9, WC, WC)
    # pointwise 1x1x1 conv as a lane-block-diagonal (WC, WC) matrix
    pwb = jnp.kron(jnp.eye(W, dtype=jnp.float32), params["pw_weight"].T.astype(jnp.float32))

    kern = functools.partial(_emhsa_fused_kernel, num_heads=num_heads, head_dim=dh, W=W)
    out2d = pl.pallas_call(
        kern,
        out_shape=jax.ShapeDtypeStruct((B, R, WC), x.dtype),
        grid_spec=pltpu.PrefetchScalarGridSpec(
            num_scalar_prefetch=0,
            grid=(B,),
            in_specs=[
                pl.BlockSpec((1, N, C), lambda b: (b, 0, 0)),
                pl.BlockSpec((C, 2 * C), lambda b: (0, 0)),
                pl.BlockSpec((C, num_heads * C), lambda b: (0, 0)),
                pl.BlockSpec((W, R, N), lambda b: (0, 0, 0)),
                pl.BlockSpec((W, C, WC), lambda b: (0, 0, 0)),
                pl.BlockSpec((9, R, R), lambda b: (0, 0, 0)),
                pl.BlockSpec((9, WC, WC), lambda b: (0, 0, 0)),
                pl.BlockSpec((WC, WC), lambda b: (0, 0)),
            ],
            out_specs=pl.BlockSpec((1, R, WC), lambda b: (b, 0, 0)),
            scratch_shapes=[
                pltpu.VMEM((N, 2 * C), jnp.float32),
                pltpu.VMEM((N, num_heads * C), jnp.float32),
            ],
        ),
        compiler_params=pltpu.CompilerParams(dimension_semantics=("parallel",)),
    )(x, wqk, wvo, jnp.asarray(sel), jnp.asarray(epl), jnp.asarray(smat), mdw, pwb)

    # lane-dense (B, D*H, W*C) is exactly row-major (B, N, C): free reshape
    return out2d.reshape(B, N, C)


# ----------------------------- pure-JAX reference (for verification) -------------------
def emhsa_reference(x, params, spatial_dims, num_heads):
    B, N, C = x.shape
    dh = C // num_heads
    qkv = x @ params["in_proj_weight"].T                              # biases are zero
    q, k, v = jnp.split(qkv, 3, axis=-1)

    def split_heads(t):
        return t.reshape(B, N, num_heads, dh).transpose(0, 2, 1, 3)

    q, k, v = map(split_heads, (q, k, v))
    s = jnp.einsum("bhnd,bhmd->bhnm", q, k) / math.sqrt(dh)
    p = jax.nn.softmax(s, axis=-1)
    o = jnp.einsum("bhnm,bhmd->bhnd", p, v)
    o = o.transpose(0, 2, 1, 3).reshape(B, N, C)
    attn = o @ params["out_proj_weight"].T

    D, H, W = spatial_dims
    vol = attn.transpose(0, 2, 1).reshape(B, C, D, H, W)              # NCDHW
    dw_w = params["dw_weight"][:, None]                               # (C, 1, 3, 3, 3)
    vol = jax.lax.conv_general_dilated(
        vol, dw_w, window_strides=(1, 1, 1), padding=((1, 1),) * 3,
        dimension_numbers=("NCDHW", "OIDHW", "NCDHW"), feature_group_count=C)
    pw_w = params["pw_weight"][:, :, None, None, None]                # (C, C, 1, 1, 1)
    vol = jax.lax.conv_general_dilated(
        vol, pw_w, window_strides=(1, 1, 1), padding="VALID",
        dimension_numbers=("NCDHW", "OIDHW", "NCDHW"))
    return vol.reshape(B, C, N).transpose(0, 2, 1)


if __name__ == "__main__":
    B = 2
    spatial_dims = (4, 4, 4)
    D, H, W = spatial_dims
    N = D * H * W          # 64
    C = 32                 # hidden_size
    num_heads = 4

    key = jax.random.PRNGKey(0)
    k_ipw, k_opw, k_dw, k_pw, k_x = jax.random.split(key, 5)
    params = {
        "in_proj_weight": 0.05 * jax.random.normal(k_ipw, (3 * C, C), jnp.float32),
        "out_proj_weight": 0.05 * jax.random.normal(k_opw, (C, C), jnp.float32),
        # nn.Conv3d(C, C, 3, padding=1, groups=C, bias=False).weight is (C,1,3,3,3); stored
        # squeezed as (C,3,3,3). Pointwise (C,C,1,1,1) stored as (C,C).
        "dw_weight": 0.1 * jax.random.normal(k_dw, (C, 3, 3, 3), jnp.float32),
        "pw_weight": 0.1 * jax.random.normal(k_pw, (C, C), jnp.float32),
    }
    x = jax.random.normal(k_x, (B, N, C), jnp.float32)

    out = jax.block_until_ready(emhsa_forward(x, params, spatial_dims, num_heads))
    ref = jax.block_until_ready(emhsa_reference(x, params, spatial_dims, num_heads))
    assert out.shape == (B, N, C)
    # Tolerance accounts for MXU multi-pass f32 rounding across the matmul-expressed conv
    # stages vs. XLA's conv path; real indexing/tap bugs would show errors ~1e-2.
    if not jnp.allclose(out, ref, atol=1e-3, rtol=1e-3):
        raise AssertionError(
            f"mismatch vs reference, max abs err = {float(jnp.max(jnp.abs(out - ref)))}")
    print("KERNEL_OK")
</pallas_src>

<mosaic_0001>
module attributes {stable_mosaic.version = 11 : i64} {
  func.func @_emhsa_fused_kernel(%arg0: i32, %arg1: memref<1x64x32xf32, #tpu.memory_space<vmem>>, %arg2: memref<32x64xf32, #tpu.memory_space<vmem>>, %arg3: memref<32x128xf32, #tpu.memory_space<vmem>>, %arg4: memref<4x16x64xf32, #tpu.memory_space<vmem>>, %arg5: memref<4x32x128xf32, #tpu.memory_space<vmem>>, %arg6: memref<9x16x16xf32, #tpu.memory_space<vmem>>, %arg7: memref<9x128x128xf32, #tpu.memory_space<vmem>>, %arg8: memref<128x128xf32, #tpu.memory_space<vmem>>, %arg9: memref<1x16x128xf32, #tpu.memory_space<vmem>>, %arg10: memref<64x64xf32, #tpu.memory_space<vmem>>, %arg11: memref<64x128xf32, #tpu.memory_space<vmem>>) attributes {dimension_semantics = [#tpu.dimension_semantics<parallel>], iteration_bounds = array<i64: 2>, scalar_prefetch = 0 : i64, scratch_operands = 2 : i64, tpu.core_type = #tpu.core_type<tc>, window_params = [{transform_indices = @transform_0, window_bounds = array<i64: 1, 64, 32>}, {pipeline_mode = #tpu.pipeline_mode<synchronous>, transform_indices = @transform_1, window_bounds = array<i64: 32, 64>}, {pipeline_mode = #tpu.pipeline_mode<synchronous>, transform_indices = @transform_2, window_bounds = array<i64: 32, 128>}, {pipeline_mode = #tpu.pipeline_mode<synchronous>, transform_indices = @transform_3, window_bounds = array<i64: 4, 16, 64>}, {pipeline_mode = #tpu.pipeline_mode<synchronous>, transform_indices = @transform_4, window_bounds = array<i64: 4, 32, 128>}, {pipeline_mode = #tpu.pipeline_mode<synchronous>, transform_indices = @transform_5, window_bounds = array<i64: 9, 16, 16>}, {pipeline_mode = #tpu.pipeline_mode<synchronous>, transform_indices = @transform_6, window_bounds = array<i64: 9, 128, 128>}, {pipeline_mode = #tpu.pipeline_mode<synchronous>, transform_indices = @transform_7, window_bounds = array<i64: 128, 128>}, {transform_indices = @transform_8, window_bounds = array<i64: 1, 16, 128>}]} {
    %c0 = arith.constant 0 : index
    %c0_0 = arith.constant 0 : index
    %c0_1 = arith.constant 0 : index
    %0 = vector.load %arg1[%c0, %c0_0, %c0_1] : memref<1x64x32xf32, #tpu.memory_space<vmem>>, vector<1x64x32xf32>
    %1 = vector.shape_cast %0 : vector<1x64x32xf32> to vector<64x32xf32>
    %c0_2 = arith.constant 0 : index
    %c0_3 = arith.constant 0 : index
    %2 = vector.load %arg2[%c0_2, %c0_3] : memref<32x64xf32, #tpu.memory_space<vmem>>, vector<32x64xf32>
    %cst = arith.constant dense<0.000000e+00> : vector<64x64xf32>
    %3 = tpu.matmul %1, %2, %cst {dimension_numbers = #tpu.dot_dimension_numbers<[1], [0], [0], [1], [0, 0, 1, 1], [], []>} : vector<64x32xf32>, vector<32x64xf32>, vector<64x64xf32> -> vector<64x64xf32>
    %c0_4 = arith.constant 0 : index
    %c0_5 = arith.constant 0 : index
    %4 = vector.load %arg10[%c0_4, %c0_5] : memref<64x64xf32, #tpu.memory_space<vmem>>, vector<64x64xf32>
    tpu.vector_store %arg10[%c0_4, %c0_5], %3 {strides = array<i32>} : memref<64x64xf32, #tpu.memory_space<vmem>>, vector<64x64xf32>,
    %c0_6 = arith.constant 0 : index
    %c0_7 = arith.constant 0 : index
    %5 = vector.load %arg3[%c0_6, %c0_7] : memref<32x128xf32, #tpu.memory_space<vmem>>, vector<32x128xf32>
    %cst_8 = arith.constant dense<0.000000e+00> : vector<64x128xf32>
    %6 = tpu.matmul %1, %5, %cst_8 {dimension_numbers = #tpu.dot_dimension_numbers<[1], [0], [0], [1], [0, 0, 1, 1], [], []>} : vector<64x32xf32>, vector<32x128xf32>, vector<64x128xf32> -> vector<64x128xf32>
    %c0_9 = arith.constant 0 : index
    %c0_10 = arith.constant 0 : index
    %7 = vector.load %arg11[%c0_9, %c0_10] : memref<64x128xf32, #tpu.memory_space<vmem>>, vector<64x128xf32>
    tpu.vector_store %arg11[%c0_9, %c0_10], %6 {strides = array<i32>} : memref<64x128xf32, #tpu.memory_space<vmem>>, vector<64x128xf32>,
    %cst_11 = arith.constant 0.000000e+00 : f32
    %8 = vector.broadcast %cst_11 : f32 to vector<64x32xf32>
    %c0_12 = arith.constant 0 : index
    %c0_13 = arith.constant 0 : index
    %9 = vector.load %arg10[%c0_12, %c0_13] : memref<64x64xf32, #tpu.memory_space<vmem>>, vector<64x8xf32>
    %cst_14 = arith.constant 0.353553385 : f32
    %10 = vector.broadcast %cst_14 : f32 to vector<64x8xf32>
    %11 = arith.mulf %9, %10 : vector<64x8xf32>
    %c0_15 = arith.constant 0 : index
    %c32 = arith.constant 32 : index
    %12 = vector.load %arg10[%c0_15, %c32] : memref<64x64xf32, #tpu.memory_space<vmem>>, vector<64x8xf32>
    %cst_16 = arith.constant dense<0.000000e+00> : vector<64x64xf32>
    %13 = tpu.matmul %11, %12, %cst_16 {dimension_numbers = #tpu.dot_dimension_numbers<[1], [1], [0], [0], [0, 0, 1, 0], [], []>} : vector<64x8xf32>, vector<64x8xf32>, vector<64x64xf32> -> vector<64x64xf32>
    %cst_17 = arith.constant dense<0xFF800000> : vector<64xf32>
    %14 = vector.multi_reduction <maximumf>, %13, %cst_17 [1] : vector<64x64xf32> to vector<64xf32>
    %15 = vector.shape_cast %14 : vector<64xf32> to vector<64x1xf32>
    %16 = vector.broadcast %15 : vector<64x1xf32> to vector<64x64xf32>
    %17 = arith.subf %13, %16 : vector<64x64xf32>
    %18 = math.exp %17 : vector<64x64xf32>
    %cst_18 = arith.constant dense<0.000000e+00> : vector<64xf32>
    %19 = vector.multi_reduction <add>, %18, %cst_18 [1] : vector<64x64xf32> to vector<64xf32>
    %20 = vector.shape_cast %19 : vector<64xf32> to vector<64x1xf32>
    %21 = tpu.reciprocal %20 : vector<64x1xf32> -> vector<64x1xf32>
    %22 = vector.broadcast %21 : vector<64x1xf32> to vector<64x64xf32>
    %23 = arith.mulf %18, %22 : vector<64x64xf32>
    %c0_19 = arith.constant 0 : index
    %c0_20 = arith.constant 0 : index
    %24 = vector.load %arg11[%c0_19, %c0_20] : memref<64x128xf32, #tpu.memory_space<vmem>>, vector<64x32xf32>
    %cst_21 = arith.constant dense<0.000000e+00> : vector<64x32xf32>
    %25 = tpu.matmul %23, %24, %cst_21 {dimension_numbers = #tpu.dot_dimension_numbers<[1], [0], [0], [1], [0, 0, 1, 1], [], []>} : vector<64x64xf32>, vector<64x32xf32>, vector<64x32xf32> -> vector<64x32xf32>
    %26 = arith.addf %8, %25 : vector<64x32xf32>
    %c0_22 = arith.constant 0 : index
    %c8 = arith.constant 8 : index
    %27 = vector.load %arg10[%c0_22, %c8] : memref<64x64xf32, #tpu.memory_space<vmem>>, vector<64x8xf32>
    %cst_23 = arith.constant 0.353553385 : f32
    %28 = vector.broadcast %cst_23 : f32 to vector<64x8xf32>
    %29 = arith.mulf %27, %28 : vector<64x8xf32>
    %c0_24 = arith.constant 0 : index
    %c40 = arith.constant 40 : index
    %30 = vector.load %arg10[%c0_24, %c40] : memref<64x64xf32, #tpu.memory_space<vmem>>, vector<64x8xf32>
    %cst_25 = arith.constant dense<0.000000e+00> : vector<64x64xf32>
    %31 = tpu.matmul %29, %30, %cst_25 {dimension_numbers = #tpu.dot_dimension_numbers<[1], [1], [0], [0], [0, 0, 1, 0], [], []>} : vector<64x8xf32>, vector<64x8xf32>, vector<64x64xf32> -> vector<64x64xf32>
    %cst_26 = arith.constant dense<0xFF800000> : vector<64xf32>
    %32 = vector.multi_reduction <maximumf>, %31, %cst_26 [1] : vector<64x64xf32> to vector<64xf32>
    %33 = vector.shape_cast %32 : vector<64xf32> to vector<64x1xf32>
    %34 = vector.broadcast %33 : vector<64x1xf32> to vector<64x64xf32>
    %35 = arith.subf %31, %34 : vector<64x64xf32>
    %36 = math.exp %35 : vector<64x64xf32>
    %cst_27 = arith.constant dense<0.000000e+00> : vector<64xf32>
    %37 = vector.multi_reduction <add>, %36, %cst_27 [1] : vector<64x64xf32> to vector<64xf32>
    %38 = vector.shape_cast %37 : vector<64xf32> to vector<64x1xf32>
    %39 = tpu.reciprocal %38 : vector<64x1xf32> -> vector<64x1xf32>
    %40 = vector.broadcast %39 : vector<64x1xf32> to vector<64x64xf32>
    %41 = arith.mulf %36, %40 : vector<64x64xf32>
    %c0_28 = arith.constant 0 : index
    %c32_29 = arith.constant 32 : index
    %42 = vector.load %arg11[%c0_28, %c32_29] : memref<64x128xf32, #tpu.memory_space<vmem>>, vector<64x32xf32>
    %cst_30 = arith.constant dense<0.000000e+00> : vector<64x32xf32>
    %43 = tpu.matmul %41, %42, %cst_30 {dimension_numbers = #tpu.dot_dimension_numbers<[1], [0], [0], [1], [0, 0, 1, 1], [], []>} : vector<64x64xf32>, vector<64x32xf32>, vector<64x32xf32> -> vector<64x32xf32>
    %44 = arith.addf %26, %43 : vector<64x32xf32>
    %c0_31 = arith.constant 0 : index
    %c16 = arith.constant 16 : index
    %45 = vector.load %arg10[%c0_31, %c16] : memref<64x64xf32, #tpu.memory_space<vmem>>, vector<64x8xf32>
    %cst_32 = arith.constant 0.353553385 : f32
    %46 = vector.broadcast %cst_32 : f32 to vector<64x8xf32>
    %47 = arith.mulf %45, %46 : vector<64x8xf32>
    %c0_33 = arith.constant 0 : index
    %c48 = arith.constant 48 : index
    %48 = vector.load %arg10[%c0_33, %c48] : memref<64x64xf32, #tpu.memory_space<vmem>>, vector<64x8xf32>
    %cst_34 = arith.constant dense<0.000000e+00> : vector<64x64xf32>
    %49 = tpu.matmul %47, %48, %cst_34 {dimension_numbers = #tpu.dot_dimension_numbers<[1], [1], [0], [0], [0, 0, 1, 0], [], []>} : vector<64x8xf32>, vector<64x8xf32>, vector<64x64xf32> -> vector<64x64xf32>
    %cst_35 = arith.constant dense<0xFF800000> : vector<64xf32>
    %50 = vector.multi_reduction <maximumf>, %49, %cst_35 [1] : vector<64x64xf32> to vector<64xf32>
    %51 = vector.shape_cast %50 : vector<64xf32> to vector<64x1xf32>
    %52 = vector.broadcast %51 : vector<64x1xf32> to vector<64x64xf32>
    %53 = arith.subf %49, %52 : vector<64x64xf32>
    %54 = math.exp %53 : vector<64x64xf32>
    %cst_36 = arith.constant dense<0.000000e+00> : vector<64xf32>
    %55 = vector.multi_reduction <add>, %54, %cst_36 [1] : vector<64x64xf32> to vector<64xf32>
    %56 = vector.shape_cast %55 : vector<64xf32> to vector<64x1xf32>
    %57 = tpu.reciprocal %56 : vector<64x1xf32> -> vector<64x1xf32>
    %58 = vector.broadcast %57 : vector<64x1xf32> to vector<64x64xf32>
    %59 = arith.mulf %54, %58 : vector<64x64xf32>
    %c0_37 = arith.constant 0 : index
    %c64 = arith.constant 64 : index
    %60 = vector.load %arg11[%c0_37, %c64] : memref<64x128xf32, #tpu.memory_space<vmem>>, vector<64x32xf32>
    %cst_38 = arith.constant dense<0.000000e+00> : vector<64x32xf32>
    %61 = tpu.matmul %59, %60, %cst_38 {dimension_numbers = #tpu.dot_dimension_numbers<[1], [0], [0], [1], [0, 0, 1, 1], [], []>} : vector<64x64xf32>, vector<64x32xf32>, vector<64x32xf32> -> vector<64x32xf32>
    %62 = arith.addf %44, %61 : vector<64x32xf32>
    %c0_39 = arith.constant 0 : index
    %c24 = arith.constant 24 : index
    %63 = vector.load %arg10[%c0_39, %c24] : memref<64x64xf32, #tpu.memory_space<vmem>>, vector<64x8xf32>
    %cst_40 = arith.constant 0.353553385 : f32
    %64 = vector.broadcast %cst_40 : f32 to vector<64x8xf32>
    %65 = arith.mulf %63, %64 : vector<64x8xf32>
    %c0_41 = arith.constant 0 : index
    %c56 = arith.constant 56 : index
    %66 = vector.load %arg10[%c0_41, %c56] : memref<64x64xf32, #tpu.memory_space<vmem>>, vector<64x8xf32>
    %cst_42 = arith.constant dense<0.000000e+00> : vector<64x64xf32>
    %67 = tpu.matmul %65, %66, %cst_42 {dimension_numbers = #tpu.dot_dimension_numbers<[1], [1], [0], [0], [0, 0, 1, 0], [], []>} : vector<64x8xf32>, vector<64x8xf32>, vector<64x64xf32> -> vector<64x64xf32>
    %cst_43 = arith.constant dense<0xFF800000> : vector<64xf32>
    %68 = vector.multi_reduction <maximumf>, %67, %cst_43 [1] : vector<64x64xf32> to vector<64xf32>
    %69 = vector.shape_cast %68 : vector<64xf32> to vector<64x1xf32>
    %70 = vector.broadcast %69 : vector<64x1xf32> to vector<64x64xf32>
    %71 = arith.subf %67, %70 : vector<64x64xf32>
    %72 = math.exp %71 : vector<64x64xf32>
    %cst_44 = arith.constant dense<0.000000e+00> : vector<64xf32>
    %73 = vector.multi_reduction <add>, %72, %cst_44 [1] : vector<64x64xf32> to vector<64xf32>
    %74 = vector.shape_cast %73 : vector<64xf32> to vector<64x1xf32>
    %75 = tpu.reciprocal %74 : vector<64x1xf32> -> vector<64x1xf32>
    %76 = vector.broadcast %75 : vector<64x1xf32> to vector<64x64xf32>
    %77 = arith.mulf %72, %76 : vector<64x64xf32>
    %c0_45 = arith.constant 0 : index
    %c96 = arith.constant 96 : index
    %78 = vector.load %arg11[%c0_45, %c96] : memref<64x128xf32, #tpu.memory_space<vmem>>, vector<64x32xf32>
    %cst_46 = arith.constant dense<0.000000e+00> : vector<64x32xf32>
    %79 = tpu.matmul %77, %78, %cst_46 {dimension_numbers = #tpu.dot_dimension_numbers<[1], [0], [0], [1], [0, 0, 1, 1], [], []>} : vector<64x64xf32>, vector<64x32xf32>, vector<64x32xf32> -> vector<64x32xf32>
    %80 = arith.addf %62, %79 : vector<64x32xf32>
    %cst_47 = arith.constant 0.000000e+00 : f32
    %81 = vector.broadcast %cst_47 : f32 to vector<16x128xf32>
    %c0_48 = arith.constant 0 : index
    %c0_49 = arith.constant 0 : index
    %c0_50 = arith.constant 0 : index
    %82 = vector.load %arg4[%c0_48, %c0_49, %c0_50] : memref<4x16x64xf32, #tpu.memory_space<vmem>>, vector<1x16x64xf32>
    %83 = vector.shape_cast %82 : vector<1x16x64xf32> to vector<16x64xf32>
    %cst_51 = arith.constant dense<0.000000e+00> : vector<16x32xf32>
    %84 = tpu.matmul %83, %80, %cst_51 {dimension_numbers = #tpu.dot_dimension_numbers<[1], [0], [0], [1], [0, 0, 1, 1], [], []>} : vector<16x64xf32>, vector<64x32xf32>, vector<16x32xf32> -> vector<16x32xf32>
    %c0_52 = arith.constant 0 : index
    %c0_53 = arith.constant 0 : index
    %c0_54 = arith.constant 0 : index
    %85 = vector.load %arg5[%c0_52, %c0_53, %c0_54] : memref<4x32x128xf32, #tpu.memory_space<vmem>>, vector<1x32x128xf32>
    %86 = vector.shape_cast %85 : vector<1x32x128xf32> to vector<32x128xf32>
    %cst_55 = arith.constant dense<0.000000e+00> : vector<16x128xf32>
    %87 = tpu.matmul %84, %86, %cst_55 {dimension_numbers = #tpu.dot_dimension_numbers<[1], [0], [0], [1], [0, 0, 1, 1], [], []>} : vector<16x32xf32>, vector<32x128xf32>, vector<16x128xf32> -> vector<16x128xf32>
    %88 = arith.addf %81, %87 : vector<16x128xf32>
    %c1 = arith.constant 1 : index
    %c0_56 = arith.constant 0 : index
    %c0_57 = arith.constant 0 : index
    %89 = vector.load %arg4[%c1, %c0_56, %c0_57] : memref<4x16x64xf32, #tpu.memory_space<vmem>>, vector<1x16x64xf32>
    %90 = vector.shape_cast %89 : vector<1x16x64xf32> to vector<16x64xf32>
    %cst_58 = arith.constant dense<0.000000e+00> : vector<16x32xf32>
    %91 = tpu.matmul %90, %80, %cst_58 {dimension_numbers = #tpu.dot_dimension_numbers<[1], [0], [0], [1], [0, 0, 1, 1], [], []>} : vector<16x64xf32>, vector<64x32xf32>, vector<16x32xf32> -> vector<16x32xf32>
    %c1_59 = arith.constant 1 : index
    %c0_60 = arith.constant 0 : index
    %c0_61 = arith.constant 0 : index
    %92 = vector.load %arg5[%c1_59, %c0_60, %c0_61] : memref<4x32x128xf32, #tpu.memory_space<vmem>>, vector<1x32x128xf32>
    %93 = vector.shape_cast %92 : vector<1x32x128xf32> to vector<32x128xf32>
    %cst_62 = arith.constant dense<0.000000e+00> : vector<16x128xf32>
    %94 = tpu.matmul %91, %93, %cst_62 {dimension_numbers = #tpu.dot_dimension_numbers<[1], [0], [0], [1], [0, 0, 1, 1], [], []>} : vector<16x32xf32>, vector<32x128xf32>, vector<16x128xf32> -> vector<16x128xf32>
    %95 = arith.addf %88, %94 : vector<16x128xf32>
    %c2 = arith.constant 2 : index
    %c0_63 = arith.constant 0 : index
    %c0_64 = arith.constant 0 : index
    %96 = vector.load %arg4[%c2, %c0_63, %c0_64] : memref<4x16x64xf32, #tpu.memory_space<vmem>>, vector<1x16x64xf32>
    %97 = vector.shape_cast %96 : vector<1x16x64xf32> to vector<16x64xf32>
    %cst_65 = arith.constant dense<0.000000e+00> : vector<16x32xf32>
    %98 = tpu.matmul %97, %80, %cst_65 {dimension_numbers = #tpu.dot_dimension_numbers<[1], [0], [0], [1], [0, 0, 1, 1], [], []>} : vector<16x64xf32>, vector<64x32xf32>, vector<16x32xf32> -> vector<16x32xf32>
    %c2_66 = arith.constant 2 : index
    %c0_67 = arith.constant 0 : index
    %c0_68 = arith.constant 0 : index
    %99 = vector.load %arg5[%c2_66, %c0_67, %c0_68] : memref<4x32x128xf32, #tpu.memory_space<vmem>>, vector<1x32x128xf32>
    %100 = vector.shape_cast %99 : vector<1x32x128xf32> to vector<32x128xf32>
    %cst_69 = arith.constant dense<0.000000e+00> : vector<16x128xf32>
    %101 = tpu.matmul %98, %100, %cst_69 {dimension_numbers = #tpu.dot_dimension_numbers<[1], [0], [0], [1], [0, 0, 1, 1], [], []>} : vector<16x32xf32>, vector<32x128xf32>, vector<16x128xf32> -> vector<16x128xf32>
    %102 = arith.addf %95, %101 : vector<16x128xf32>
    %c3 = arith.constant 3 : index
    %c0_70 = arith.constant 0 : index
    %c0_71 = arith.constant 0 : index
    %103 = vector.load %arg4[%c3, %c0_70, %c0_71] : memref<4x16x64xf32, #tpu.memory_space<vmem>>, vector<1x16x64xf32>
    %104 = vector.shape_cast %103 : vector<1x16x64xf32> to vector<16x64xf32>
    %cst_72 = arith.constant dense<0.000000e+00> : vector<16x32xf32>
    %105 = tpu.matmul %104, %80, %cst_72 {dimension_numbers = #tpu.dot_dimension_numbers<[1], [0], [0], [1], [0, 0, 1, 1], [], []>} : vector<16x64xf32>, vector<64x32xf32>, vector<16x32xf32> -> vector<16x32xf32>
    %c3_73 = arith.constant 3 : index
    %c0_74 = arith.constant 0 : index
    %c0_75 = arith.constant 0 : index
    %106 = vector.load %arg5[%c3_73, %c0_74, %c0_75] : memref<4x32x128xf32, #tpu.memory_space<vmem>>, vector<1x32x128xf32>
    %107 = vector.shape_cast %106 : vector<1x32x128xf32> to vector<32x128xf32>
    %cst_76 = arith.constant dense<0.000000e+00> : vector<16x128xf32>
    %108 = tpu.matmul %105, %107, %cst_76 {dimension_numbers = #tpu.dot_dimension_numbers<[1], [0], [0], [1], [0, 0, 1, 1], [], []>} : vector<16x32xf32>, vector<32x128xf32>, vector<16x128xf32> -> vector<16x128xf32>
    %109 = arith.addf %102, %108 : vector<16x128xf32>
    %cst_77 = arith.constant 0.000000e+00 : f32
    %110 = vector.broadcast %cst_77 : f32 to vector<16x128xf32>
    %c0_78 = arith.constant 0 : index
    %c0_79 = arith.constant 0 : index
    %c0_80 = arith.constant 0 : index
    %111 = vector.load %arg6[%c0_78, %c0_79, %c0_80] : memref<9x16x16xf32, #tpu.memory_space<vmem>>, vector<1x16x16xf32>
    %112 = vector.shape_cast %111 : vector<1x16x16xf32> to vector<16x16xf32>
    %cst_81 = arith.constant dense<0.000000e+00> : vector<16x128xf32>
    %113 = tpu.matmul %112, %109, %cst_81 {dimension_numbers = #tpu.dot_dimension_numbers<[1], [0], [0], [1], [0, 0, 1, 1], [], []>} : vector<16x16xf32>, vector<16x128xf32>, vector<16x128xf32> -> vector<16x128xf32>
    %c0_82 = arith.constant 0 : index
    %c0_83 = arith.constant 0 : index
    %c0_84 = arith.constant 0 : index
    %114 = vector.load %arg7[%c0_82, %c0_83, %c0_84] : memref<9x128x128xf32, #tpu.memory_space<vmem>>, vector<1x128x128xf32>
    %115 = vector.shape_cast %114 : vector<1x128x128xf32> to vector<128x128xf32>
    %cst_85 = arith.constant dense<0.000000e+00> : vector<16x128xf32>
    %116 = tpu.matmul %113, %115, %cst_85 {dimension_numbers = #tpu.dot_dimension_numbers<[1], [0], [0], [1], [0, 0, 1, 1], [], []>} : vector<16x128xf32>, vector<128x128xf32>, vector<16x128xf32> -> vector<16x128xf32>
    %117 = arith.addf %110, %116 : vector<16x128xf32>
    %c1_86 = arith.constant 1 : index
    %c0_87 = arith.constant 0 : index
    %c0_88 = arith.constant 0 : index
    %118 = vector.load %arg6[%c1_86, %c0_87, %c0_88] : memref<9x16x16xf32, #tpu.memory_space<vmem>>, vector<1x16x16xf32>
    %119 = vector.shape_cast %118 : vector<1x16x16xf32> to vector<16x16xf32>
    %cst_89 = arith.constant dense<0.000000e+00> : vector<16x128xf32>
    %120 = tpu.matmul %119, %109, %cst_89 {dimension_numbers = #tpu.dot_dimension_numbers<[1], [0], [0], [1], [0, 0, 1, 1], [], []>} : vector<16x16xf32>, vector<16x128xf32>, vector<16x128xf32> -> vector<16x128xf32>
    %c1_90 = arith.constant 1 : index
    %c0_91 = arith.constant 0 : index
    %c0_92 = arith.constant 0 : index
    %121 = vector.load %arg7[%c1_90, %c0_91, %c0_92] : memref<9x128x128xf32, #tpu.memory_space<vmem>>, vector<1x128x128xf32>
    %122 = vector.shape_cast %121 : vector<1x128x128xf32> to vector<128x128xf32>
    %cst_93 = arith.constant dense<0.000000e+00> : vector<16x128xf32>
    %123 = tpu.matmul %120, %122, %cst_93 {dimension_numbers = #tpu.dot_dimension_numbers<[1], [0], [0], [1], [0, 0, 1, 1], [], []>} : vector<16x128xf32>, vector<128x128xf32>, vector<16x128xf32> -> vector<16x128xf32>
    %124 = arith.addf %117, %123 : vector<16x128xf32>
    %c2_94 = arith.constant 2 : index
    %c0_95 = arith.constant 0 : index
    %c0_96 = arith.constant 0 : index
    %125 = vector.load %arg6[%c2_94, %c0_95, %c0_96] : memref<9x16x16xf32, #tpu.memory_space<vmem>>, vector<1x16x16xf32>
    %126 = vector.shape_cast %125 : vector<1x16x16xf32> to vector<16x16xf32>
    %cst_97 = arith.constant dense<0.000000e+00> : vector<16x128xf32>
    %127 = tpu.matmul %126, %109, %cst_97 {dimension_numbers = #tpu.dot_dimension_numbers<[1], [0], [0], [1], [0, 0, 1, 1], [], []>} : vector<16x16xf32>, vector<16x128xf32>, vector<16x128xf32> -> vector<16x128xf32>
    %c2_98 = arith.constant 2 : index
    %c0_99 = arith.constant 0 : index
    %c0_100 = arith.constant 0 : index
    %128 = vector.load %arg7[%c2_98, %c0_99, %c0_100] : memref<9x128x128xf32, #tpu.memory_space<vmem>>, vector<1x128x128xf32>
    %129 = vector.shape_cast %128 : vector<1x128x128xf32> to vector<128x128xf32>
    %cst_101 = arith.constant dense<0.000000e+00> : vector<16x128xf32>
    %130 = tpu.matmul %127, %129, %cst_101 {dimension_numbers = #tpu.dot_dimension_numbers<[1], [0], [0], [1], [0, 0, 1, 1], [], []>} : vector<16x128xf32>, vector<128x128xf32>, vector<16x128xf32> -> vector<16x128xf32>
    %131 = arith.addf %124, %130 : vector<16x128xf32>
    %c3_102 = arith.constant 3 : index
    %c0_103 = arith.constant 0 : index
    %c0_104 = arith.constant 0 : index
    %132 = vector.load %arg6[%c3_102, %c0_103, %c0_104] : memref<9x16x16xf32, #tpu.memory_space<vmem>>, vector<1x16x16xf32>
    %133 = vector.shape_cast %132 : vector<1x16x16xf32> to vector<16x16xf32>
    %cst_105 = arith.constant dense<0.000000e+00> : vector<16x128xf32>
    %134 = tpu.matmul %133, %109, %cst_105 {dimension_numbers = #tpu.dot_dimension_numbers<[1], [0], [0], [1], [0, 0, 1, 1], [], []>} : vector<16x16xf32>, vector<16x128xf32>, vector<16x128xf32> -> vector<16x128xf32>
    %c3_106 = arith.constant 3 : index
    %c0_107 = arith.constant 0 : index
    %c0_108 = arith.constant 0 : index
    %135 = vector.load %arg7[%c3_106, %c0_107, %c0_108] : memref<9x128x128xf32, #tpu.memory_space<vmem>>, vector<1x128x128xf32>
    %136 = vector.shape_cast %135 : vector<1x128x128xf32> to vector<128x128xf32>
    %cst_109 = arith.constant dense<0.000000e+00> : vector<16x128xf32>
    %137 = tpu.matmul %134, %136, %cst_109 {dimension_numbers = #tpu.dot_dimension_numbers<[1], [0], [0], [1], [0, 0, 1, 1], [], []>} : vector<16x128xf32>, vector<128x128xf32>, vector<16x128xf32> -> vector<16x128xf32>
    %138 = arith.addf %131, %137 : vector<16x128xf32>
    %c4 = arith.constant 4 : index
    %c0_110 = arith.constant 0 : index
    %c0_111 = arith.constant 0 : index
    %139 = vector.load %arg6[%c4, %c0_110, %c0_111] : memref<9x16x16xf32, #tpu.memory_space<vmem>>, vector<1x16x16xf32>
    %140 = vector.shape_cast %139 : vector<1x16x16xf32> to vector<16x16xf32>
    %cst_112 = arith.constant dense<0.000000e+00> : vector<16x128xf32>
    %141 = tpu.matmul %140, %109, %cst_112 {dimension_numbers = #tpu.dot_dimension_numbers<[1], [0], [0], [1], [0, 0, 1, 1], [], []>} : vector<16x16xf32>, vector<16x128xf32>, vector<16x128xf32> -> vector<16x128xf32>
    %c4_113 = arith.constant 4 : index
    %c0_114 = arith.constant 0 : index
    %c0_115 = arith.constant 0 : index
    %142 = vector.load %arg7[%c4_113, %c0_114, %c0_115] : memref<9x128x128xf32, #tpu.memory_space<vmem>>, vector<1x128x128xf32>
    %143 = vector.shape_cast %142 : vector<1x128x128xf32> to vector<128x128xf32>
    %cst_116 = arith.constant dense<0.000000e+00> : vector<16x128xf32>
    %144 = tpu.matmul %141, %143, %cst_116 {dimension_numbers = #tpu.dot_dimension_numbers<[1], [0], [0], [1], [0, 0, 1, 1], [], []>} : vector<16x128xf32>, vector<128x128xf32>, vector<16x128xf32> -> vector<16x128xf32>
    %145 = arith.addf %138, %144 : vector<16x128xf32>
    %c5 = arith.constant 5 : index
    %c0_117 = arith.constant 0 : index
    %c0_118 = arith.constant 0 : index
    %146 = vector.load %arg6[%c5, %c0_117, %c0_118] : memref<9x16x16xf32, #tpu.memory_space<vmem>>, vector<1x16x16xf32>
    %147 = vector.shape_cast %146 : vector<1x16x16xf32> to vector<16x16xf32>
    %cst_119 = arith.constant dense<0.000000e+00> : vector<16x128xf32>
    %148 = tpu.matmul %147, %109, %cst_119 {dimension_numbers = #tpu.dot_dimension_numbers<[1], [0], [0], [1], [0, 0, 1, 1], [], []>} : vector<16x16xf32>, vector<16x128xf32>, vector<16x128xf32> -> vector<16x128xf32>
    %c5_120 = arith.constant 5 : index
    %c0_121 = arith.constant 0 : index
    %c0_122 = arith.constant 0 : index
    %149 = vector.load %arg7[%c5_120, %c0_121, %c0_122] : memref<9x128x128xf32, #tpu.memory_space<vmem>>, vector<1x128x128xf32>
    %150 = vector.shape_cast %149 : vector<1x128x128xf32> to vector<128x128xf32>
    %cst_123 = arith.constant dense<0.000000e+00> : vector<16x128xf32>
    %151 = tpu.matmul %148, %150, %cst_123 {dimension_numbers = #tpu.dot_dimension_numbers<[1], [0], [0], [1], [0, 0, 1, 1], [], []>} : vector<16x128xf32>, vector<128x128xf32>, vector<16x128xf32> -> vector<16x128xf32>
    %152 = arith.addf %145, %151 : vector<16x128xf32>
    %c6 = arith.constant 6 : index
    %c0_124 = arith.constant 0 : index
    %c0_125 = arith.constant 0 : index
    %153 = vector.load %arg6[%c6, %c0_124, %c0_125] : memref<9x16x16xf32, #tpu.memory_space<vmem>>, vector<1x16x16xf32>
    %154 = vector.shape_cast %153 : vector<1x16x16xf32> to vector<16x16xf32>
    %cst_126 = arith.constant dense<0.000000e+00> : vector<16x128xf32>
    %155 = tpu.matmul %154, %109, %cst_126 {dimension_numbers = #tpu.dot_dimension_numbers<[1], [0], [0], [1], [0, 0, 1, 1], [], []>} : vector<16x16xf32>, vector<16x128xf32>, vector<16x128xf32> -> vector<16x128xf32>
    %c6_127 = arith.constant 6 : index
    %c0_128 = arith.constant 0 : index
    %c0_129 = arith.constant 0 : index
    %156 = vector.load %arg7[%c6_127, %c0_128, %c0_129] : memref<9x128x128xf32, #tpu.memory_space<vmem>>, vector<1x128x128xf32>
    %157 = vector.shape_cast %156 : vector<1x128x128xf32> to vector<128x128xf32>
    %cst_130 = arith.constant dense<0.000000e+00> : vector<16x128xf32>
    %158 = tpu.matmul %155, %157, %cst_130 {dimension_numbers = #tpu.dot_dimension_numbers<[1], [0], [0], [1], [0, 0, 1, 1], [], []>} : vector<16x128xf32>, vector<128x128xf32>, vector<16x128xf32> -> vector<16x128xf32>
    %159 = arith.addf %152, %158 : vector<16x128xf32>
    %c7 = arith.constant 7 : index
    %c0_131 = arith.constant 0 : index
    %c0_132 = arith.constant 0 : index
    %160 = vector.load %arg6[%c7, %c0_131, %c0_132] : memref<9x16x16xf32, #tpu.memory_space<vmem>>, vector<1x16x16xf32>
    %161 = vector.shape_cast %160 : vector<1x16x16xf32> to vector<16x16xf32>
    %cst_133 = arith.constant dense<0.000000e+00> : vector<16x128xf32>
    %162 = tpu.matmul %161, %109, %cst_133 {dimension_numbers = #tpu.dot_dimension_numbers<[1], [0], [0], [1], [0, 0, 1, 1], [], []>} : vector<16x16xf32>, vector<16x128xf32>, vector<16x128xf32> -> vector<16x128xf32>
    %c7_134 = arith.constant 7 : index
    %c0_135 = arith.constant 0 : index
    %c0_136 = arith.constant 0 : index
    %163 = vector.load %arg7[%c7_134, %c0_135, %c0_136] : memref<9x128x128xf32, #tpu.memory_space<vmem>>, vector<1x128x128xf32>
    %164 = vector.shape_cast %163 : vector<1x128x128xf32> to vector<128x128xf32>
    %cst_137 = arith.constant dense<0.000000e+00> : vector<16x128xf32>
    %165 = tpu.matmul %162, %164, %cst_137 {dimension_numbers = #tpu.dot_dimension_numbers<[1], [0], [0], [1], [0, 0, 1, 1], [], []>} : vector<16x128xf32>, vector<128x128xf32>, vector<16x128xf32> -> vector<16x128xf32>
    %166 = arith.addf %159, %165 : vector<16x128xf32>
    %c8_138 = arith.constant 8 : index
    %c0_139 = arith.constant 0 : index
    %c0_140 = arith.constant 0 : index
    %167 = vector.load %arg6[%c8_138, %c0_139, %c0_140] : memref<9x16x16xf32, #tpu.memory_space<vmem>>, vector<1x16x16xf32>
    %168 = vector.shape_cast %167 : vector<1x16x16xf32> to vector<16x16xf32>
    %cst_141 = arith.constant dense<0.000000e+00> : vector<16x128xf32>
    %169 = tpu.matmul %168, %109, %cst_141 {dimension_numbers = #tpu.dot_dimension_numbers<[1], [0], [0], [1], [0, 0, 1, 1], [], []>} : vector<16x16xf32>, vector<16x128xf32>, vector<16x128xf32> -> vector<16x128xf32>
    %c8_142 = arith.constant 8 : index
    %c0_143 = arith.constant 0 : index
    %c0_144 = arith.constant 0 : index
    %170 = vector.load %arg7[%c8_142, %c0_143, %c0_144] : memref<9x128x128xf32, #tpu.memory_space<vmem>>, vector<1x128x128xf32>
    %171 = vector.shape_cast %170 : vector<1x128x128xf32> to vector<128x128xf32>
    %cst_145 = arith.constant dense<0.000000e+00> : vector<16x128xf32>
    %172 = tpu.matmul %169, %171, %cst_145 {dimension_numbers = #tpu.dot_dimension_numbers<[1], [0], [0], [1], [0, 0, 1, 1], [], []>} : vector<16x128xf32>, vector<128x128xf32>, vector<16x128xf32> -> vector<16x128xf32>
    %173 = arith.addf %166, %172 : vector<16x128xf32>
    %c0_146 = arith.constant 0 : index
    %c0_147 = arith.constant 0 : index
    %174 = vector.load %arg8[%c0_146, %c0_147] : memref<128x128xf32, #tpu.memory_space<vmem>>, vector<128x128xf32>
    %cst_148 = arith.constant dense<0.000000e+00> : vector<16x128xf32>
    %175 = tpu.matmul %173, %174, %cst_148 {dimension_numbers = #tpu.dot_dimension_numbers<[1], [0], [0], [1], [0, 0, 1, 1], [], []>} : vector<16x128xf32>, vector<128x128xf32>, vector<16x128xf32> -> vector<16x128xf32>
    %176 = vector.shape_cast %175 : vector<16x128xf32> to vector<1x16x128xf32>
    %c0_149 = arith.constant 0 : index
    %c0_150 = arith.constant 0 : index
    %c0_151 = arith.constant 0 : index
    %177 = vector.load %arg9[%c0_149, %c0_150, %c0_151] : memref<1x16x128xf32, #tpu.memory_space<vmem>>, vector<1x16x128xf32>
    tpu.vector_store %arg9[%c0_149, %c0_150, %c0_151], %176 {strides = array<i32>} : memref<1x16x128xf32, #tpu.memory_space<vmem>>, vector<1x16x128xf32>,
    return
  }
  func.func @transform_0(%arg0: i32) -> (i32, i32, i32) {
    %c0_i32 = arith.constant 0 : i32
    %c0_i32_0 = arith.constant 0 : i32
    %c0_i32_1 = arith.constant 0 : i32
    return %arg0, %c0_i32, %c0_i32_0 : i32, i32, i32
  }
  func.func @transform_1(%arg0: i32) -> (i32, i32) {
    %c0_i32 = arith.constant 0 : i32
    %c0_i32_0 = arith.constant 0 : i32
    %c0_i32_1 = arith.constant 0 : i32
    return %c0_i32, %c0_i32_0 : i32, i32
  }
  func.func @transform_2(%arg0: i32) -> (i32, i32) {
    %c0_i32 = arith.constant 0 : i32
    %c0_i32_0 = arith.constant 0 : i32
    %c0_i32_1 = arith.constant 0 : i32
    return %c0_i32, %c0_i32_0 : i32, i32
  }
  func.func @transform_3(%arg0: i32) -> (i32, i32, i32) {
    %c0_i32 = arith.constant 0 : i32
    %c0_i32_0 = arith.constant 0 : i32
    %c0_i32_1 = arith.constant 0 : i32
    %c0_i32_2 = arith.constant 0 : i32
    return %c0_i32, %c0_i32_0, %c0_i32_1 : i32, i32, i32
  }
  func.func @transform_4(%arg0: i32) -> (i32, i32, i32) {
    %c0_i32 = arith.constant 0 : i32
    %c0_i32_0 = arith.constant 0 : i32
    %c0_i32_1 = arith.constant 0 : i32
    %c0_i32_2 = arith.constant 0 : i32
    return %c0_i32, %c0_i32_0, %c0_i32_1 : i32, i32, i32
  }
  func.func @transform_5(%arg0: i32) -> (i32, i32, i32) {
    %c0_i32 = arith.constant 0 : i32
    %c0_i32_0 = arith.constant 0 : i32
    %c0_i32_1 = arith.constant 0 : i32
    %c0_i32_2 = arith.constant 0 : i32
    return %c0_i32, %c0_i32_0, %c0_i32_1 : i32, i32, i32
  }
  func.func @transform_6(%arg0: i32) -> (i32, i32, i32) {
    %c0_i32 = arith.constant 0 : i32
    %c0_i32_0 = arith.constant 0 : i32
    %c0_i32_1 = arith.constant 0 : i32
    %c0_i32_2 = arith.constant 0 : i32
    return %c0_i32, %c0_i32_0, %c0_i32_1 : i32, i32, i32
  }
  func.func @transform_7(%arg0: i32) -> (i32, i32) {
    %c0_i32 = arith.constant 0 : i32
    %c0_i32_0 = arith.constant 0 : i32
    %c0_i32_1 = arith.constant 0 : i32
    return %c0_i32, %c0_i32_0 : i32, i32
  }
  func.func @transform_8(%arg0: i32) -> (i32, i32, i32) {
    %c0_i32 = arith.constant 0 : i32
    %c0_i32_0 = arith.constant 0 : i32
    %c0_i32_1 = arith.constant 0 : i32
    return %arg0, %c0_i32, %c0_i32_0 : i32, i32, i32
  }
}

</mosaic_0001>

<llo_original>
// kernel: tpu_custom_call.1
$region0: #{tpu_custom_call.1}
  #allocation0 [shape = 'u32[]', space=smem, size = 0x4, offset = 0x4, fixed_abs, tag = 'smem constant byte address 0x4 - core index']
  #allocation1 [shape = 'u32[144,128]{1,0:T(1,128)}', space=vmem, size = 0x12000, scoped, tag = 'internal scratch']
  #allocation2 [shape = 'f32[64,64]{1,0:T(8,128)}', space=vmem, size = 0x8000, scoped, tag = 'scratch operand']
  #allocation3 [shape = 'f32[64,128]{1,0:T(8,128)}', space=vmem, size = 0x8000, scoped, tag = 'scratch operand']
  %s0 = inlined_call_operand.vmem [shape: f32[2,64,32], index: 0, kind: input, shape index: {}]
  %s1 = inlined_call_operand.vmem [shape: f32[32,64], index: 1, kind: input, shape index: {}]
  %s2 = inlined_call_operand.hbm [shape: f32[32,128], index: 2, kind: input, shape index: {}]
  %s3 = inlined_call_operand.hbm [shape: f32[4,16,64], index: 3, kind: input, shape index: {}]
  %s4 = inlined_call_operand.hbm [shape: f32[4,32,128], index: 4, kind: input, shape index: {}]
  %s5 = inlined_call_operand.vmem [shape: f32[9,16,16], index: 5, kind: input, shape index: {}]
  %s6 = inlined_call_operand.hbm [shape: f32[9,128,128], index: 6, kind: input, shape index: {}]
  %s7 = inlined_call_operand.hbm [shape: f32[128,128], index: 7, kind: input, shape index: {}]
  %s8 = inlined_call_operand.hbm [shape: f32[2,16,128], index: 8, kind: output, shape index: {}]
  %s9 = sld [smem:[#allocation0]]
  $region85: #{tpu_custom_call.1} parent=0
    _
  %s11 = ssub.s32 1, %s9
  %s12 = scalar_select 0, %s11, %s9
  $region1: #{tpu_custom_call.1} parent=0
    #allocation4 [shape = 'u8[16384]{0}', space=vmem, size = 0x4000, scoped, tag = 'input window, operand 2, single buffered']
    #allocation5 [shape = 's32[2]{0}', space=sflag, size = 0x8, scoped, tag = 'scoped memory for tpu_custom_call.1']
    #allocation6 [shape = 's32[2]{0}', space=sflag, size = 0x8, scoped, tag = 'scoped memory for tpu_custom_call.1']
    #allocation7 [shape = 'u8[32768]{0}', space=vmem, size = 0x8000, scoped, tag = 'input window, operand 3, single buffered']
    #allocation8 [shape = 's32[1]{0}', space=sflag, size = 0x4, scoped, tag = 'scoped memory for tpu_custom_call.1']
    #allocation9 [shape = 'u8[65536]{0}', space=vmem, size = 0x10000, scoped, tag = 'input window, operand 4, single buffered']
    #allocation10 [shape = 'u8[589824]{0}', space=vmem, size = 0x90000, scoped, tag = 'input window, operand 6, single buffered']
    #allocation11 [shape = 's32[1]{0}', space=sflag, size = 0x4, scoped, tag = 'scoped memory for tpu_custom_call.1']
    #allocation12 [shape = 'u8[65536]{0}', space=vmem, size = 0x10000, scoped, tag = 'input window, operand 7, single buffered']
    #allocation13 [shape = 'u8[16384]{0}', space=vmem, size = 0x4000, scoped, tag = 'output window, operand 0']
    %13 = vsyncpa [#allocation5], 0
    %14 = vsyncpa [#allocation8], 0
    %15 = vsyncpa [#allocation11], 0
    %16 = vsyncpa [#allocation6], 0
    %s17 = scalar_lea.sflag [#allocation6], 1
    %18 = vsyncpa %s17, 0
    loop: start=0, step=1, limit=4
    $region2: #{tpu_custom_call.1} parent=1 // loop_pre_header
      _
    $region3: #{tpu_custom_call.1} parent=1 // loop_header
      %s20 = sphi 0, %s24
      %p21 = scmp.ge.s32.totalorder %s20, 4
      %s30 = sphi 0, %s32
      %s33 = sphi 0, %s30
      %s34 = sphi 0, %s33
      %s50 = sphi 0, %s34
      %s54 = sphi 0, %s54
      %s56 = sphi 0, %s54
      %s57 = sphi 0, %s56
      %s71 = sphi 0, %s57
      %s75 = sphi 0, %s75
      %s77 = sphi 0, %s75
      %s78 = sphi 0, %s77
      %s92 = sphi 0, %s78
      %s96 = sphi 0, %s96
      %s98 = sphi 0, %s96
      %s99 = sphi 0, %s98
      %s113 = sphi 0, %s99
      %s117 = sphi 0, %s117
      %s119 = sphi 0, %s117
      %s120 = sphi 0, %s119
      %s134 = sphi 0, %s120
      %s138 = sphi 0, %s138
      %s140 = sphi 0, %s138
      %s141 = sphi 0, %s140
      %s155 = sphi 0, %s141
      %s159 = sphi 0, %s159
      %s161 = sphi 0, %s159
      %s162 = sphi 0, %s161
      %s176 = sphi 0, %s162
      %s180 = sphi 0, %s180
      %s182 = sphi 0, %s180
      %s183 = sphi 0, %s182
      %s197 = sphi 0, %s183
      %s203 = sphi 0, %s205
      %s206 = sphi 0, %s203
      %s207 = sphi 0, %s206
      %s223 = sphi 0, %s207
    $region4: #{tpu_custom_call.1} parent=1 // loop_header_branch
      %23 = sbr.rel (%p21) target = $region8
    $region5: #{tpu_custom_call.1} parent=1 // loop_body
      %s25 = ssub.s32 %s20, 1
      %s26 = ssub.s32 %s20, 2
      %s27 = sadd.s32 %s20, 1
      %s28 = ssub.s32 %s20, %s27
      %p29 = scmp.eq.s32.totalorder %s28, 0
      %s31 = sadd.s32 %s30, 1
      %s32 = scalar_select %p29, %s30, %s31
      %p35 = pneg %p29
      %p36 = scmp.eq.s32.totalorder %s20, 1
      %p37 = por %p35, %p36
      %p38 = scmp.ne.s32.totalorder %s30, %s33
      %p39 = scmp.eq.s32.totalorder %s20, 0
      %p40 = por %p38, %p39
      %p41 = scmp.ne.s32.totalorder %s30, %s33
      %p42 = scmp.eq.s32.totalorder %s25, 1
      %p43 = por %p41, %p42
      %p44 = scmp.ne.s32.totalorder %s33, %s34
      %p45 = scmp.eq.s32.totalorder %s25, 0
      %p46 = por %p44, %p45
      %p47 = scmp.ne.s32.totalorder %s33, %s34
      %p48 = scmp.eq.s32.totalorder %s26, 1
      %p49 = por %p47, %p48
      %p51 = scmp.ne.s32.totalorder %s34, %s50
      %p52 = scmp.eq.s32.totalorder %s26, 0
      %p53 = por %p51, %p52
      %s55 = sadd.s32 %s54, 1
      %p58 = scmp.eq.s32.totalorder %s20, 1
      %p59 = scmp.ne.s32.totalorder %s54, %s56
      %p60 = scmp.eq.s32.totalorder %s20, 0
      %p61 = por %p59, %p60
      %p62 = scmp.ne.s32.totalorder %s54, %s56
      %p63 = scmp.eq.s32.totalorder %s25, 1
      %p64 = por %p62, %p63
      %p65 = scmp.ne.s32.totalorder %s56, %s57
      %p66 = scmp.eq.s32.totalorder %s25, 0
      %p67 = por %p65, %p66
      %p68 = scmp.ne.s32.totalorder %s56, %s57
      %p69 = scmp.eq.s32.totalorder %s26, 1
      %p70 = por %p68, %p69
      %p72 = scmp.ne.s32.totalorder %s57, %s71
      %p73 = scmp.eq.s32.totalorder %s26, 0
      %p74 = por %p72, %p73
      %s76 = sadd.s32 %s75, 1
      %p79 = scmp.eq.s32.totalorder %s20, 1
      %p80 = scmp.ne.s32.totalorder %s75, %s77
      %p81 = scmp.eq.s32.totalorder %s20, 0
      %p82 = por %p80, %p81
      %p83 = scmp.ne.s32.totalorder %s75, %s77
      %p84 = scmp.eq.s32.totalorder %s25, 1
      %p85 = por %p83, %p84
      %p86 = scmp.ne.s32.totalorder %s77, %s78
      %p87 = scmp.eq.s32.totalorder %s25, 0
      %p88 = por %p86, %p87
      %p89 = scmp.ne.s32.totalorder %s77, %s78
      %p90 = scmp.eq.s32.totalorder %s26, 1
      %p91 = por %p89, %p90
      %p93 = scmp.ne.s32.totalorder %s78, %s92
      %p94 = scmp.eq.s32.totalorder %s26, 0
      %p95 = por %p93, %p94
      %s97 = sadd.s32 %s96, 1
      %p100 = scmp.eq.s32.totalorder %s20, 1
      %p101 = scmp.ne.s32.totalorder %s96, %s98
      %p102 = scmp.eq.s32.totalorder %s20, 0
      %p103 = por %p101, %p102
      %p104 = scmp.ne.s32.totalorder %s96, %s98
      %p105 = scmp.eq.s32.totalorder %s25, 1
      %p106 = por %p104, %p105
      %p107 = scmp.ne.s32.totalorder %s98, %s99
      %p108 = scmp.eq.s32.totalorder %s25, 0
      %p109 = por %p107, %p108
      %p110 = scmp.ne.s32.totalorder %s98, %s99
      %p111 = scmp.eq.s32.totalorder %s26, 1
      %p112 = por %p110, %p111
      %p114 = scmp.ne.s32.totalorder %s99, %s113
      %p115 = scmp.eq.s32.totalorder %s26, 0
      %p116 = por %p114, %p115
      %s118 = sadd.s32 %s117, 1
      %p121 = scmp.eq.s32.totalorder %s20, 1
      %p122 = scmp.ne.s32.totalorder %s117, %s119
      %p123 = scmp.eq.s32.totalorder %s20, 0
      %p124 = por %p122, %p123
      %p125 = scmp.ne.s32.totalorder %s117, %s119
      %p126 = scmp.eq.s32.totalorder %s25, 1
      %p127 = por %p125, %p126
      %p128 = scmp.ne.s32.totalorder %s119, %s120
      %p129 = scmp.eq.s32.totalorder %s25, 0
      %p130 = por %p128, %p129
      %p131 = scmp.ne.s32.totalorder %s119, %s120
      %p132 = scmp.eq.s32.totalorder %s26, 1
      %p133 = por %p131, %p132
      %p135 = scmp.ne.s32.totalorder %s120, %s134
      %p136 = scmp.eq.s32.totalorder %s26, 0
      %p137 = por %p135, %p136
      %s139 = sadd.s32 %s138, 1
      %p142 = scmp.eq.s32.totalorder %s20, 1
      %p143 = scmp.ne.s32.totalorder %s138, %s140
      %p144 = scmp.eq.s32.totalorder %s20, 0
      %p145 = por %p143, %p144
      %p146 = scmp.ne.s32.totalorder %s138, %s140
      %p147 = scmp.eq.s32.totalorder %s25, 1
      %p148 = por %p146, %p147
      %p149 = scmp.ne.s32.totalorder %s140, %s141
      %p150 = scmp.eq.s32.totalorder %s25, 0
      %p151 = por %p149, %p150
      %p152 = scmp.ne.s32.totalorder %s140, %s141
      %p153 = scmp.eq.s32.totalorder %s26, 1
      %p154 = por %p152, %p153
      %p156 = scmp.ne.s32.totalorder %s141, %s155
      %p157 = scmp.eq.s32.totalorder %s26, 0
      %p158 = por %p156, %p157
      %s160 = sadd.s32 %s159, 1
      %p163 = scmp.eq.s32.totalorder %s20, 1
      %p164 = scmp.ne.s32.totalorder %s159, %s161
      %p165 = scmp.eq.s32.totalorder %s20, 0
      %p166 = por %p164, %p165
      %p167 = scmp.ne.s32.totalorder %s159, %s161
      %p168 = scmp.eq.s32.totalorder %s25, 1
      %p169 = por %p167, %p168
      %p170 = scmp.ne.s32.totalorder %s161, %s162
      %p171 = scmp.eq.s32.totalorder %s25, 0
      %p172 = por %p170, %p171
      %p173 = scmp.ne.s32.totalorder %s161, %s162
      %p174 = scmp.eq.s32.totalorder %s26, 1
      %p175 = por %p173, %p174
      %p177 = scmp.ne.s32.totalorder %s162, %s176
      %p178 = scmp.eq.s32.totalorder %s26, 0
      %p179 = por %p177, %p178
      %s181 = sadd.s32 %s180, 1
      %p184 = scmp.eq.s32.totalorder %s20, 1
      %p185 = scmp.ne.s32.totalorder %s180, %s182
      %p186 = scmp.eq.s32.totalorder %s20, 0
      %p187 = por %p185, %p186
      %p188 = scmp.ne.s32.totalorder %s180, %s182
      %p189 = scmp.eq.s32.totalorder %s25, 1
      %p190 = por %p188, %p189
      %p191 = scmp.ne.s32.totalorder %s182, %s183
      %p192 = scmp.eq.s32.totalorder %s25, 0
      %p193 = por %p191, %p192
      %p194 = scmp.ne.s32.totalorder %s182, %s183
      %p195 = scmp.eq.s32.totalorder %s26, 1
      %p196 = por %p194, %p195
      %p198 = scmp.ne.s32.totalorder %s183, %s197
      %p199 = scmp.eq.s32.totalorder %s26, 0
      %p200 = por %p198, %p199
      %s201 = ssub.s32 %s20, %s27
      %p202 = scmp.eq.s32.totalorder %s201, 0
      %s204 = sadd.s32 %s203, 1
      %s205 = scalar_select %p202, %s203, %s204
      %p208 = pneg %p202
      %p209 = scmp.eq.s32.totalorder %s20, 1
      %p210 = por %p208, %p209
      %p211 = scmp.ne.s32.totalorder %s203, %s206
      %p212 = scmp.eq.s32.totalorder %s20, 0
      %p213 = por %p211, %p212
      %p214 = scmp.ne.s32.totalorder %s203, %s206
      %p215 = scmp.eq.s32.totalorder %s25, 1
      %p216 = por %p214, %p215
      %p217 = scmp.ne.s32.totalorder %s206, %s207
      %p218 = scmp.eq.s32.totalorder %s25, 0
      %p219 = por %p217, %p218
      %p220 = scmp.ne.s32.totalorder %s206, %s207
      %p221 = scmp.eq.s32.totalorder %s26, 1
      %p222 = por %p220, %p221
      %p224 = scmp.ne.s32.totalorder %s207, %s223
      %p225 = scmp.eq.s32.totalorder %s26, 0
      %p226 = por %p224, %p225
      %p227 = scmp.le.s32.totalorder 1, %s20
      %p228 = scmp.lt.s32.totalorder %s20, 3
      %p229 = pnand %p227, %p228
      %p230 = pneg %p229
      // Predicated region
      $region9: #{tpu_custom_call.1} parent=5 // pred_check
        _
      $region10: #{tpu_custom_call.1} parent=5 // pred_check_branch
        %232 = sbr.rel (%p229) target = $region12
      $region11: #{tpu_custom_call.1} parent=5 // pred_region
        %s233 = ssub.s32 %s20, 1
        // Predicated region
        $region13: #{tpu_custom_call.1} parent=11 // pred_check
          %p234 = pneg %p67
        $region14: #{tpu_custom_call.1} parent=11 // pred_check_branch
          %236 = sbr.rel (%p234) target = $region16
        $region15: #{tpu_custom_call.1} parent=11 // pred_region
          _
        $region16: #{tpu_custom_call.1} parent=11 // pred_fallthru
          _
        // Predicated region
        $region17: #{tpu_custom_call.1} parent=11 // pred_check
          %p237 = pneg %p88
        $region18: #{tpu_custom_call.1} parent=11 // pred_check_branch
          %239 = sbr.rel (%p237) target = $region20
        $region19: #{tpu_custom_call.1} parent=11 // pred_region
          %s241 = ssub.s32 512, 512
          %242 = vsyncadd [#allocation5], %s241
          %s243 = sshll.u32 [#allocation4], 4
          %s244 = int_to_ptr.vmem [resolvable:$true] %s243
          %249 = dma.hbm_to_vmem [thread:$0]  %s2, 512, %s244, [#allocation5], 128, 128, 8
        $region20: #{tpu_custom_call.1} parent=11 // pred_fallthru
          _
        // Predicated region
        $region21: #{tpu_custom_call.1} parent=11 // pred_check
          %p250 = pneg %p109
        $region22: #{tpu_custom_call.1} parent=11 // pred_check_branch
          %252 = sbr.rel (%p250) target = $region24
        $region23: #{tpu_custom_call.1} parent=11 // pred_region
          %s254 = ssub.s32 1024, 1024
          %255 = vsyncadd [#allocation8], %s254
          %s256 = sshll.u32 [#allocation7], 4
          %s257 = int_to_ptr.vmem [resolvable:$true] %s256
          %262 = dma.hbm_to_vmem [thread:$0]  %s3, 1024, %s257, [#allocation8], 128, 128, 8
        $region24: #{tpu_custom_call.1} parent=11 // pred_fallthru
          _
        // Predicated region
        $region25: #{tpu_custom_call.1} parent=11 // pred_check
          %p263 = pneg %p130
        $region26: #{tpu_custom_call.1} parent=11 // pred_check_branch
          %265 = sbr.rel (%p263) target = $region28
        $region27: #{tpu_custom_call.1} parent=11 // pred_region
          %s267 = ssub.s32 2048, 2048
          %268 = vsyncadd [#allocation8], %s267
          %s269 = sshll.u32 [#allocation9], 4
          %s270 = int_to_ptr.vmem [resolvable:$true] %s269
          %275 = dma.hbm_to_vmem [thread:$0]  %s4, 2048, %s270, [#allocation8], 128, 128, 8
        $region28: #{tpu_custom_call.1} parent=11 // pred_fallthru
          _
        // Predicated region
        $region29: #{tpu_custom_call.1} parent=11 // pred_check
          %p276 = pneg %p151
        $region30: #{tpu_custom_call.1} parent=11 // pred_check_branch
          %278 = sbr.rel (%p276) target = $region32
        $region31: #{tpu_custom_call.1} parent=11 // pred_region
          _
        $region32: #{tpu_custom_call.1} parent=11 // pred_fallthru
          _
        // Predicated region
        $region33: #{tpu_custom_call.1} parent=11 // pred_check
          %p279 = pneg %p172
        $region34: #{tpu_custom_call.1} parent=11 // pred_check_branch
          %281 = sbr.rel (%p279) target = $region36
        $region35: #{tpu_custom_call.1} parent=11 // pred_region
          %s283 = ssub.s32 18432, 18432
          %284 = vsyncadd [#allocation11], %s283
          %s285 = sshll.u32 [#allocation10], 4
          %s286 = int_to_ptr.vmem [resolvable:$true] %s285
          %291 = dma.hbm_to_vmem [thread:$0]  %s6, 18432, %s286, [#allocation11], 128, 128, 8
        $region36: #{tpu_custom_call.1} parent=11 // pred_fallthru
          _
        // Predicated region
        $region37: #{tpu_custom_call.1} parent=11 // pred_check
          %p292 = pneg %p193
        $region38: #{tpu_custom_call.1} parent=11 // pred_check_branch
          %294 = sbr.rel (%p292) target = $region40
        $region39: #{tpu_custom_call.1} parent=11 // pred_region
          %s296 = ssub.s32 2048, 2048
          %297 = vsyncadd [#allocation11], %s296
          %s298 = sshll.u32 [#allocation12], 4
          %s299 = int_to_ptr.vmem [resolvable:$true] %s298
          %304 = dma.hbm_to_vmem [thread:$0]  %s7, 2048, %s299, [#allocation11], 128, 128, 8
        $region40: #{tpu_custom_call.1} parent=11 // pred_fallthru
          _
      $region12: #{tpu_custom_call.1} parent=5 // pred_fallthru
        _
      %p305 = scmp.lt.s32.totalorder %s20, 2
      // Predicated region
      $region41: #{tpu_custom_call.1} parent=5 // pred_check
        %p306 = pneg %p305
      $region42: #{tpu_custom_call.1} parent=5 // pred_check_branch
        %308 = sbr.rel (%p306) target = $region44
      $region43: #{tpu_custom_call.1} parent=5 // pred_region
        // Predicated region
        $region45: #{tpu_custom_call.1} parent=43 // pred_check
          %p309 = pneg %p40
        $region46: #{tpu_custom_call.1} parent=43 // pred_check_branch
          %311 = sbr.rel (%p309) target = $region48
        $region47: #{tpu_custom_call.1} parent=43 // pred_region
          %p312 = scmp.lt.s32.totalorder %s20, 1
          %s313 = scalar_select %p312, %s20, 1
          %s314 = smul.addr %s313, 8
          %s315 = smul.addr %s314, 8
          %s316 = scalar_lea.vmem %s0, %s315
        $region48: #{tpu_custom_call.1} parent=43 // pred_fallthru
          _
      $region44: #{tpu_custom_call.1} parent=5 // pred_fallthru
        _
      %p317 = scmp.le.s32.totalorder 1, %s20
      %p318 = scmp.lt.s32.totalorder %s20, 3
      %p319 = pnand %p317, %p318
      %p320 = pneg %p319
      // Predicated region
      $region49: #{tpu_custom_call.1} parent=5 // pred_check
        _
      $region50: #{tpu_custom_call.1} parent=5 // pred_check_branch
        %322 = sbr.rel (%p319) target = $region52
      $region51: #{tpu_custom_call.1} parent=5 // pred_region
        %s323 = ssub.s32 %s20, 1
        // Predicated region
        $region53: #{tpu_custom_call.1} parent=51 // pred_check
          %p324 = pneg %p88
        $region54: #{tpu_custom_call.1} parent=51 // pred_check_branch
          %326 = sbr.rel (%p324) target = $region56
        $region55: #{tpu_custom_call.1} parent=51 // pred_region
          %327 = dma.done [#allocation5], 512
        $region56: #{tpu_custom_call.1} parent=51 // pred_fallthru
          _
        // Predicated region
        $region57: #{tpu_custom_call.1} parent=51 // pred_check
          %p328 = pneg %p109
        $region58: #{tpu_custom_call.1} parent=51 // pred_check_branch
          %330 = sbr.rel (%p328) target = $region60
        $region59: #{tpu_custom_call.1} parent=51 // pred_region
          %331 = dma.done [#allocation8], 1024
        $region60: #{tpu_custom_call.1} parent=51 // pred_fallthru
          _
        // Predicated region
        $region61: #{tpu_custom_call.1} parent=51 // pred_check
          %p332 = pneg %p130
        $region62: #{tpu_custom_call.1} parent=51 // pred_check_branch
          %334 = sbr.rel (%p332) target = $region64
        $region63: #{tpu_custom_call.1} parent=51 // pred_region
          %335 = dma.done [#allocation8], 2048
        $region64: #{tpu_custom_call.1} parent=51 // pred_fallthru
          _
        // Predicated region
        $region65: #{tpu_custom_call.1} parent=51 // pred_check
          %p336 = pneg %p172
        $region66: #{tpu_custom_call.1} parent=51 // pred_check_branch
          %338 = sbr.rel (%p336) target = $region68
        $region67: #{tpu_custom_call.1} parent=51 // pred_region
          %339 = dma.done [#allocation11], 18432
        $region68: #{tpu_custom_call.1} parent=51 // pred_fallthru
          _
        // Predicated region
        $region69: #{tpu_custom_call.1} parent=51 // pred_check
          %p340 = pneg %p193
        $region70: #{tpu_custom_call.1} parent=51 // pred_check_branch
          %342 = sbr.rel (%p340) target = $region72
        $region71: #{tpu_custom_call.1} parent=51 // pred_region
          %343 = dma.done [#allocation11], 2048
        $region72: #{tpu_custom_call.1} parent=51 // pred_fallthru
          _
        %p344 = scmp.lt.s32.totalorder %s25, 1
        %s345 = scalar_select %p344, %s25, 1
        %s346 = smul.addr %s345, 8
        %s347 = smul.addr %s346, 8
        %s348 = scalar_lea.vmem %s0, %s347
        %p349 = pneg %p46
        %p350 = pneg %p43
        %p351 = pneg %p67
        %p352 = pneg %p64
        %p353 = pneg %p88
        %p354 = pneg %p85
        %p355 = pneg %p109
        %p356 = pneg %p106
        %p357 = pneg %p130
        %p358 = pneg %p127
        %p359 = pneg %p151
        %p360 = pneg %p148
        %p361 = pneg %p172
        %p362 = pneg %p169
        %p363 = pneg %p193
        %p364 = pneg %p190
        %p365 = pneg %p219
        %p366 = pneg %p216
        %s367 = sand.u32 %s206, 1
        %s368 = scalar_lea.sflag [#allocation6], %s367
        %s369 = sand.u32 %s206, 1
        %s370 = smul.addr %s369, 16
        %s371 = scalar_lea.vmem [#allocation13], %s370
        %p372 = scmp.lt.s32.totalorder %s25, 1
        %s373 = scalar_select %p372, %s25, 1
        %s374 = smul.addr %s373, 8
        %s375 = smul.addr %s374, 8
        %s376 = scalar_lea.vmem %s0, %s375
        %v377 = vld [vmem:[%s376] sm:$0xff]
        %v378 = vld [vmem:[%s376 + $0x8] sm:$0xff]
        %v379 = vld [vmem:[%s376 + $0x10] sm:$0xff]
        %v380 = vld [vmem:[%s376 + $0x18] sm:$0xff]
        %v381 = vld [vmem:[%s376 + $0x20] sm:$0xff]
        %v382 = vld [vmem:[%s376 + $0x28] sm:$0xff]
        %v383 = vld [vmem:[%s376 + $0x30] sm:$0xff]
        %v384 = vld [vmem:[%s376 + $0x38] sm:$0xff]
        %v385 = vld [vmem:[%s1] sm:$0xff]
        %v386 = vld [vmem:[%s1 + $0x8] sm:$0xff]
        %v387 = vld [vmem:[%s1 + $0x10] sm:$0xff]
        %v388 = vld [vmem:[%s1 + $0x18] sm:$0xff]
        %vm389 = vcmask 261120
        %v391 = vsel %vm389, %v377, 0
        %v394 = vsel %vm389, %v378, 0
        %v397 = vsel %vm389, %v379, 0
        %v400 = vsel %vm389, %v380, 0
        %v403 = vsel %vm389, %v381, 0
        %v406 = vsel %vm389, %v382, 0
        %v409 = vsel %vm389, %v383, 0
        %v412 = vsel %vm389, %v384, 0
        %414 = vmatprep.subr.mxu0 0.0
        %415 = vmatpush1.msra.mxu0 0.0
        %416 = vmatprep.subr.mxu0 0.0
        %417 = vmatpush1.msra.mxu0 0.0
        %418 = vmatprep.subr.mxu0 0.0
        %419 = vmatpush1.msra.mxu0 0.0
        %420 = vmatprep.subr.mxu0 0.0
        %421 = vmatpush1.msra.mxu0 0.0
        %422 = vmatprep.subr.mxu0 0.0
        %423 = vmatpush1.msra.mxu0 0.0
        %424 = vmatprep.subr.mxu0 0.0
        %425 = vmatpush1.msra.mxu0 0.0
        %426 = vmatprep.subr.mxu0 0.0
        %427 = vmatpush1.msra.mxu0 0.0
        %428 = vmatprep.subr.mxu0 0.0
        %429 = vmatpush1.msra.mxu0 0.0
        %430 = vmatprep.subr.mxu0 0.0
        %431 = vmatpush1.msra.mxu0 0.0
        %432 = vmatprep.subr.mxu0 0.0
        %433 = vmatpush1.msra.mxu0 0.0
        %434 = vmatprep.subr.mxu0 0.0
        %435 = vmatpush1.msra.mxu0 0.0
        %436 = vmatprep.subr.mxu0 0.0
        %437 = vmatpush1.msra.mxu0 0.0
        %438 = vmatprep.subr.mxu0 0.0
        %439 = vmatpush1.msra.mxu0 %v388
        %440 = vmatprep.subr.mxu0 0.0
        %441 = vmatpush1.msra.mxu0 %v387
        %442 = vmatprep.subr.mxu0 0.0
        %443 = vmatpush1.msra.mxu0 %v386
        %444 = vmatprep.subr.mxu0 0.0
        %445 = vmatpush1.msra.mxu0 %v385
        %446 = vmatprep.subr.mxu0 0.0
        %447 = vmatpush2.msra.mxu0 0.0
        %448 = vmatprep.subr.mxu0 0.0
        %449 = vmatpush2.msra.mxu0 0.0
        %450 = vmatprep.subr.mxu0 0.0
        %451 = vmatpush2.msra.mxu0 0.0
        %452 = vmatprep.subr.mxu0 0.0
        %453 = vmatpush2.msra.mxu0 0.0
        %454 = vmatprep.subr.mxu0 0.0
        %455 = vmatpush2.msra.mxu0 0.0
        %456 = vmatprep.subr.mxu0 0.0
        %457 = vmatpush2.msra.mxu0 0.0
        %458 = vmatprep.subr.mxu0 0.0
        %459 = vmatpush2.msra.mxu0 0.0
        %460 = vmatprep.subr.mxu0 0.0
        %461 = vmatpush2.msra.mxu0 0.0
        %462 = vmatprep.subr.mxu0 0.0
        %463 = vmatpush2.msra.mxu0 0.0
        %464 = vmatprep.subr.mxu0 0.0
        %465 = vmatpush2.msra.mxu0 0.0
        %466 = vmatprep.subr.mxu0 0.0
        %467 = vmatpush2.msra.mxu0 0.0
        %468 = vmatprep.subr.mxu0 0.0
        %469 = vmatpush2.msra.mxu0 0.0
        %470 = vmatprep.subr.mxu0 0.0
        %471 = vmatpush2.msra.mxu0 0.0
        %472 = vmatprep.subr.mxu0 0.0
        %473 = vmatpush2.msra.mxu0 0.0
        %474 = vmatprep.subr.mxu0 0.0
        %475 = vmatpush2.msra.mxu0 0.0
        %476 = vmatprep.subr.mxu0 0.0
        %477 = vmatpush2.msra.mxu0 0.0
        %478 = vmatprep.mubr.f32.mxu0 0.0
        %479 = vmatmul.mubr.f32.gmra.mxu0 %v391
        %v480 = vpop.f32.mrf.mxu0
        %v481 = vadd.f32 0.0, %v480
        %v482 = vpop.f32.mrf.mxu0
        %483 = vmatprep.mubr.f32.mxu0 0.0
        %484 = vmatmul.mubr.f32.gmra.mxu0 %v394
        %v485 = vpop.f32.mrf.mxu0
        %v486 = vadd.f32 0.0, %v485
        %v487 = vpop.f32.mrf.mxu0
        %488 = vmatprep.mubr.f32.mxu0 0.0
        %489 = vmatmul.mubr.f32.gmra.mxu0 %v397
        %v490 = vpop.f32.mrf.mxu0
        %v491 = vadd.f32 0.0, %v490
        %v492 = vpop.f32.mrf.mxu0
        %493 = vmatprep.mubr.f32.mxu0 0.0
        %494 = vmatmul.mubr.f32.gmra.mxu0 %v400
        %v495 = vpop.f32.mrf.mxu0
        %v496 = vadd.f32 0.0, %v495
        %v497 = vpop.f32.mrf.mxu0
        %498 = vmatprep.mubr.f32.mxu0 0.0
        %499 = vmatmul.mubr.f32.gmra.mxu0 %v403
        %v500 = vpop.f32.mrf.mxu0
        %v501 = vadd.f32 0.0, %v500
        %v502 = vpop.f32.mrf.mxu0
        %503 = vmatprep.mubr.f32.mxu0 0.0
        %504 = vmatmul.mubr.f32.gmra.mxu0 %v406
        %v505 = vpop.f32.mrf.mxu0
        %v506 = vadd.f32 0.0, %v505
        %v507 = vpop.f32.mrf.mxu0
        %508 = vmatprep.mubr.f32.mxu0 0.0
        %509 = vmatmul.mubr.f32.gmra.mxu0 %v409
        %v510 = vpop.f32.mrf.mxu0
        %v511 = vadd.f32 0.0, %v510
        %v512 = vpop.f32.mrf.mxu0
        %513 = vmatprep.mubr.f32.mxu0 0.0
        %514 = vmatmul.mubr.f32.gmra.mxu0 %v412
        %v515 = vpop.f32.mrf.mxu0
        %v516 = vadd.f32 0.0, %v515
        %v517 = vpop.f32.mrf.mxu0
        %518 = vdwg.mxu0
        %vm519 = vcmask 523264
        %520 = vst.msk [vmem:[#allocation2] sm:$0xff] %vm519, %v481
        %521 = vst.msk [vmem:[#allocation2 + $0x8] sm:$0xff] %vm519, %v486
        %522 = vst.msk [vmem:[#allocation2 + $0x10] sm:$0xff] %vm519, %v491
        %523 = vst.msk [vmem:[#allocation2 + $0x18] sm:$0xff] %vm519, %v496
        %524 = vst.msk [vmem:[#allocation2 + $0x20] sm:$0xff] %vm519, %v501
        %525 = vst.msk [vmem:[#allocation2 + $0x28] sm:$0xff] %vm519, %v506
        %526 = vst.msk [vmem:[#allocation2 + $0x30] sm:$0xff] %vm519, %v511
        %527 = vst.msk [vmem:[#allocation2 + $0x38] sm:$0xff] %vm519, %v516
        %v528 = vld [vmem:[#allocation4] sm:$0xff]
        %v529 = vld [vmem:[#allocation4 + $0x8] sm:$0xff]
        %v530 = vld [vmem:[#allocation4 + $0x10] sm:$0xff]
        %v531 = vld [vmem:[#allocation4 + $0x18] sm:$0xff]
        %532 = vmatprep.subr.mxu0 0.0
        %533 = vmatpush1.msra.mxu0 0.0
        %534 = vmatprep.subr.mxu0 0.0
        %535 = vmatpush1.msra.mxu0 0.0
        %536 = vmatprep.subr.mxu0 0.0
        %537 = vmatpush1.msra.mxu0 0.0
        %538 = vmatprep.subr.mxu0 0.0
        %539 = vmatpush1.msra.mxu0 0.0
        %540 = vmatprep.subr.mxu0 0.0
        %541 = vmatpush1.msra.mxu0 0.0
        %542 = vmatprep.subr.mxu0 0.0
        %543 = vmatpush1.msra.mxu0 0.0
        %544 = vmatprep.subr.mxu0 0.0
        %545 = vmatpush1.msra.mxu0 0.0
        %546 = vmatprep.subr.mxu0 0.0
        %547 = vmatpush1.msra.mxu0 0.0
        %548 = vmatprep.subr.mxu0 0.0
        %549 = vmatpush1.msra.mxu0 0.0
        %550 = vmatprep.subr.mxu0 0.0
        %551 = vmatpush1.msra.mxu0 0.0
        %552 = vmatprep.subr.mxu0 0.0
        %553 = vmatpush1.msra.mxu0 0.0
        %554 = vmatprep.subr.mxu0 0.0
        %555 = vmatpush1.msra.mxu0 0.0
        %556 = vmatprep.subr.mxu0 0.0
        %557 = vmatpush1.msra.mxu0 %v531
        %558 = vmatprep.subr.mxu0 0.0
        %559 = vmatpush1.msra.mxu0 %v530
        %560 = vmatprep.subr.mxu0 0.0
        %561 = vmatpush1.msra.mxu0 %v529
        %562 = vmatprep.subr.mxu0 0.0
        %563 = vmatpush1.msra.mxu0 %v528
        %564 = vmatprep.subr.mxu0 0.0
        %565 = vmatpush2.msra.mxu0 0.0
        %566 = vmatprep.subr.mxu0 0.0
        %567 = vmatpush2.msra.mxu0 0.0
        %568 = vmatprep.subr.mxu0 0.0
        %569 = vmatpush2.msra.mxu0 0.0
        %570 = vmatprep.subr.mxu0 0.0
        %571 = vmatpush2.msra.mxu0 0.0
        %572 = vmatprep.subr.mxu0 0.0
        %573 = vmatpush2.msra.mxu0 0.0
        %574 = vmatprep.subr.mxu0 0.0
        %575 = vmatpush2.msra.mxu0 0.0
        %576 = vmatprep.subr.mxu0 0.0
        %577 = vmatpush2.msra.mxu0 0.0
        %578 = vmatprep.subr.mxu0 0.0
        %579 = vmatpush2.msra.mxu0 0.0
        %580 = vmatprep.subr.mxu0 0.0
        %581 = vmatpush2.msra.mxu0 0.0
        %582 = vmatprep.subr.mxu0 0.0
        %583 = vmatpush2.msra.mxu0 0.0
        %584 = vmatprep.subr.mxu0 0.0
        %585 = vmatpush2.msra.mxu0 0.0
        %586 = vmatprep.subr.mxu0 0.0
        %587 = vmatpush2.msra.mxu0 0.0
        %588 = vmatprep.subr.mxu0 0.0
        %589 = vmatpush2.msra.mxu0 0.0
        %590 = vmatprep.subr.mxu0 0.0
        %591 = vmatpush2.msra.mxu0 0.0
        %592 = vmatprep.subr.mxu0 0.0
        %593 = vmatpush2.msra.mxu0 0.0
        %594 = vmatprep.subr.mxu0 0.0
        %595 = vmatpush2.msra.mxu0 0.0
        %596 = vmatprep.mubr.f32.mxu0 0.0
        %597 = vmatmul.mubr.f32.gmra.mxu0 %v391
        %v598 = vpop.f32.mrf.mxu0
        %v599 = vadd.f32 0.0, %v598
        %v600 = vpop.f32.mrf.mxu0
        %601 = vmatprep.mubr.f32.mxu0 0.0
        %602 = vmatmul.mubr.f32.gmra.mxu0 %v394
        %v603 = vpop.f32.mrf.mxu0
        %v604 = vadd.f32 0.0, %v603
        %v605 = vpop.f32.mrf.mxu0
        %606 = vmatprep.mubr.f32.mxu0 0.0
        %607 = vmatmul.mubr.f32.gmra.mxu0 %v397
        %v608 = vpop.f32.mrf.mxu0
        %v609 = vadd.f32 0.0, %v608
        %v610 = vpop.f32.mrf.mxu0
        %611 = vmatprep.mubr.f32.mxu0 0.0
        %612 = vmatmul.mubr.f32.gmra.mxu0 %v400
        %v613 = vpop.f32.mrf.mxu0
        %v614 = vadd.f32 0.0, %v613
        %v615 = vpop.f32.mrf.mxu0
        %616 = vmatprep.mubr.f32.mxu0 0.0
        %617 = vmatmul.mubr.f32.gmra.mxu0 %v403
        %v618 = vpop.f32.mrf.mxu0
        %v619 = vadd.f32 0.0, %v618
        %v620 = vpop.f32.mrf.mxu0
        %621 = vmatprep.mubr.f32.mxu0 0.0
        %622 = vmatmul.mubr.f32.gmra.mxu0 %v406
        %v623 = vpop.f32.mrf.mxu0
        %v624 = vadd.f32 0.0, %v623
        %v625 = vpop.f32.mrf.mxu0
        %626 = vmatprep.mubr.f32.mxu0 0.0
        %627 = vmatmul.mubr.f32.gmra.mxu0 %v409
        %v628 = vpop.f32.mrf.mxu0
        %v629 = vadd.f32 0.0, %v628
        %v630 = vpop.f32.mrf.mxu0
        %631 = vmatprep.mubr.f32.mxu0 0.0
        %632 = vmatmul.mubr.f32.gmra.mxu0 %v412
        %v633 = vpop.f32.mrf.mxu0
        %v634 = vadd.f32 0.0, %v633
        %v635 = vpop.f32.mrf.mxu0
        %636 = vdwg.mxu0
        %637 = vst [vmem:[#allocation3] sm:$0xff] %v599
        %638 = vst [vmem:[#allocation3 + $0x8] sm:$0xff] %v604
        %639 = vst [vmem:[#allocation3 + $0x10] sm:$0xff] %v609
        %640 = vst [vmem:[#allocation3 + $0x18] sm:$0xff] %v614
        %641 = vst [vmem:[#allocation3 + $0x20] sm:$0xff] %v619
        %642 = vst [vmem:[#allocation3 + $0x28] sm:$0xff] %v624
        %643 = vst [vmem:[#allocation3 + $0x30] sm:$0xff] %v629
        %644 = vst [vmem:[#allocation3 + $0x38] sm:$0xff] %v634
        %v645 = vld [vmem:[#allocation2] sm:$0xff]
        %v646 = vld [vmem:[#allocation2 + $0x8] sm:$0xff]
        %v647 = vld [vmem:[#allocation2 + $0x10] sm:$0xff]
        %v648 = vld [vmem:[#allocation2 + $0x18] sm:$0xff]
        %v649 = vld [vmem:[#allocation2 + $0x20] sm:$0xff]
        %v650 = vld [vmem:[#allocation2 + $0x28] sm:$0xff]
        %v651 = vld [vmem:[#allocation2 + $0x30] sm:$0xff]
        %v652 = vld [vmem:[#allocation2 + $0x38] sm:$0xff]
        %v653 = vmul.f32 %v645, 0.35355338
        %v654 = vmul.f32 %v646, 0.35355338
        %v655 = vmul.f32 %v647, 0.35355338
        %v656 = vmul.f32 %v648, 0.35355338
        %v657 = vmul.f32 %v649, 0.35355338
        %v658 = vmul.f32 %v650, 0.35355338
        %v659 = vmul.f32 %v651, 0.35355338
        %v660 = vmul.f32 %v652, 0.35355338
        %669 = vrot.lane.b32.xlu0 %v645, 96
        %v670 = vpop.permute.xlu0 %669
        %671 = vrot.lane.b32.xlu0 %v646, 96
        %v672 = vpop.permute.xlu0 %671
        %673 = vrot.lane.b32.xlu0 %v647, 96
        %v674 = vpop.permute.xlu0 %673
        %675 = vrot.lane.b32.xlu0 %v648, 96
        %v676 = vpop.permute.xlu0 %675
        %677 = vrot.lane.b32.xlu0 %v649, 96
        %v678 = vpop.permute.xlu0 %677
        %679 = vrot.lane.b32.xlu0 %v650, 96
        %v680 = vpop.permute.xlu0 %679
        %681 = vrot.lane.b32.xlu0 %v651, 96
        %v682 = vpop.permute.xlu0 %681
        %683 = vrot.lane.b32.xlu0 %v652, 96
        %v684 = vpop.permute.xlu0 %683
        %vm685 = vcmask 64512
        %v687 = vsel %vm685, %v653, 0
        %v690 = vsel %vm685, %v654, 0
        %v693 = vsel %vm685, %v655, 0
        %v696 = vsel %vm685, %v656, 0
        %v699 = vsel %vm685, %v657, 0
        %v702 = vsel %vm685, %v658, 0
        %v705 = vsel %vm685, %v659, 0
        %v708 = vsel %vm685, %v660, 0
        %v710 = vsel %vm685, %v670, 0
        %v712 = vsel %vm685, %v672, 0
        %v714 = vsel %vm685, %v674, 0
        %v716 = vsel %vm685, %v676, 0
        %v718 = vsel %vm685, %v678, 0
        %v720 = vsel %vm685, %v680, 0
        %v722 = vsel %vm685, %v682, 0
        %v724 = vsel %vm685, %v684, 0
        %726 = vmatprep.subr.mxu0 0.0
        %727 = vmatpush1.xpose.msra.mxu0 0.0
        %728 = vmatprep.subr.mxu0 0.0
        %729 = vmatpush1.xpose.msra.mxu0 0.0
        %730 = vmatprep.subr.mxu0 0.0
        %731 = vmatpush1.xpose.msra.mxu0 0.0
        %732 = vmatprep.subr.mxu0 0.0
        %733 = vmatpush1.xpose.msra.mxu0 0.0
        %734 = vmatprep.subr.mxu0 0.0
        %735 = vmatpush1.xpose.msra.mxu0 0.0
        %736 = vmatprep.subr.mxu0 0.0
        %737 = vmatpush1.xpose.msra.mxu0 0.0
        %738 = vmatprep.subr.mxu0 0.0
        %739 = vmatpush1.xpose.msra.mxu0 0.0
        %740 = vmatprep.subr.mxu0 0.0
        %741 = vmatpush1.xpose.msra.mxu0 0.0
        %742 = vmatprep.subr.mxu0 0.0
        %743 = vmatpush1.xpose.msra.mxu0 %v724
        %744 = vmatprep.subr.mxu0 0.0
        %745 = vmatpush1.xpose.msra.mxu0 %v722
        %746 = vmatprep.subr.mxu0 0.0
        %747 = vmatpush1.xpose.msra.mxu0 %v720
        %748 = vmatprep.subr.mxu0 0.0
        %749 = vmatpush1.xpose.msra.mxu0 %v718
        %750 = vmatprep.subr.mxu0 0.0
        %751 = vmatpush1.xpose.msra.mxu0 %v716
        %752 = vmatprep.subr.mxu0 0.0
        %753 = vmatpush1.xpose.msra.mxu0 %v714
        %754 = vmatprep.subr.mxu0 0.0
        %755 = vmatpush1.xpose.msra.mxu0 %v712
        %756 = vmatprep.subr.mxu0 0.0
        %757 = vmatpush1.xpose.msra.mxu0 %v710
        %758 = vmatprep.subr.mxu0 0.0
        %759 = vmatpush2.xpose.msra.mxu0 0.0
        %760 = vmatprep.subr.mxu0 0.0
        %761 = vmatpush2.xpose.msra.mxu0 0.0
        %762 = vmatprep.subr.mxu0 0.0
        %763 = vmatpush2.xpose.msra.mxu0 0.0
        %764 = vmatprep.subr.mxu0 0.0
        %765 = vmatpush2.xpose.msra.mxu0 0.0
        %766 = vmatprep.subr.mxu0 0.0
        %767 = vmatpush2.xpose.msra.mxu0 0.0
        %768 = vmatprep.subr.mxu0 0.0
        %769 = vmatpush2.xpose.msra.mxu0 0.0
        %770 = vmatprep.subr.mxu0 0.0
        %771 = vmatpush2.xpose.msra.mxu0 0.0
        %772 = vmatprep.subr.mxu0 0.0
        %773 = vmatpush2.xpose.msra.mxu0 0.0
        %774 = vmatprep.subr.mxu0 0.0
        %775 = vmatpush2.xpose.msra.mxu0 0.0
        %776 = vmatprep.subr.mxu0 0.0
        %777 = vmatpush2.xpose.msra.mxu0 0.0
        %778 = vmatprep.subr.mxu0 0.0
        %779 = vmatpush2.xpose.msra.mxu0 0.0
        %780 = vmatprep.subr.mxu0 0.0
        %781 = vmatpush2.xpose.msra.mxu0 0.0
        %782 = vmatprep.subr.mxu0 0.0
        %783 = vmatpush2.xpose.msra.mxu0 0.0
        %784 = vmatprep.subr.mxu0 0.0
        %785 = vmatpush2.xpose.msra.mxu0 0.0
        %786 = vmatprep.subr.mxu0 0.0
        %787 = vmatpush2.xpose.msra.mxu0 0.0
        %788 = vmatprep.subr.mxu0 0.0
        %789 = vmatpush2.xpose.msra.mxu0 0.0
        %790 = vmatprep.mubr.f32.mxu0 0.0
        %791 = vmatmul.mubr.f32.gmra.mxu0 %v687
        %v792 = vpop.f32.mrf.mxu0
        %v793 = vadd.f32 0.0, %v792
        %v794 = vpop.f32.mrf.mxu0
        %795 = vmatprep.mubr.f32.mxu0 0.0
        %796 = vmatmul.mubr.f32.gmra.mxu0 %v690
        %v797 = vpop.f32.mrf.mxu0
        %v798 = vadd.f32 0.0, %v797
        %v799 = vpop.f32.mrf.mxu0
        %800 = vmatprep.mubr.f32.mxu0 0.0
        %801 = vmatmul.mubr.f32.gmra.mxu0 %v693
        %v802 = vpop.f32.mrf.mxu0
        %v803 = vadd.f32 0.0, %v802
        %v804 = vpop.f32.mrf.mxu0
        %805 = vmatprep.mubr.f32.mxu0 0.0
        %806 = vmatmul.mubr.f32.gmra.mxu0 %v696
        %v807 = vpop.f32.mrf.mxu0
        %v808 = vadd.f32 0.0, %v807
        %v809 = vpop.f32.mrf.mxu0
        %810 = vmatprep.mubr.f32.mxu0 0.0
        %811 = vmatmul.mubr.f32.gmra.mxu0 %v699
        %v812 = vpop.f32.mrf.mxu0
        %v813 = vadd.f32 0.0, %v812
        %v814 = vpop.f32.mrf.mxu0
        %815 = vmatprep.mubr.f32.mxu0 0.0
        %816 = vmatmul.mubr.f32.gmra.mxu0 %v702
        %v817 = vpop.f32.mrf.mxu0
        %v818 = vadd.f32 0.0, %v817
        %v819 = vpop.f32.mrf.mxu0
        %820 = vmatprep.mubr.f32.mxu0 0.0
        %821 = vmatmul.mubr.f32.gmra.mxu0 %v705
        %v822 = vpop.f32.mrf.mxu0
        %v823 = vadd.f32 0.0, %v822
        %v824 = vpop.f32.mrf.mxu0
        %825 = vmatprep.mubr.f32.mxu0 0.0
        %826 = vmatmul.mubr.f32.gmra.mxu0 %v708
        %v827 = vpop.f32.mrf.mxu0
        %v828 = vadd.f32 0.0, %v827
        %v829 = vpop.f32.mrf.mxu0
        %830 = vdwg.mxu0
        %v831 = vsel %vm519, %v793, -inf
        %832 = vmax.xlane.f32.xlu0 %v831
        %v833 = vpop.xlane.xlu0 %832
        %v834 = vsel %vm519, %v798, -inf
        %835 = vmax.xlane.f32.xlu0 %v834
        %v836 = vpop.xlane.xlu0 %835
        %v837 = vsel %vm519, %v803, -inf
        %838 = vmax.xlane.f32.xlu0 %v837
        %v839 = vpop.xlane.xlu0 %838
        %v840 = vsel %vm519, %v808, -inf
        %841 = vmax.xlane.f32.xlu0 %v840
        %v842 = vpop.xlane.xlu0 %841
        %v843 = vsel %vm519, %v813, -inf
        %844 = vmax.xlane.f32.xlu0 %v843
        %v845 = vpop.xlane.xlu0 %844
        %v846 = vsel %vm519, %v818, -inf
        %847 = vmax.xlane.f32.xlu0 %v846
        %v848 = vpop.xlane.xlu0 %847
        %v849 = vsel %vm519, %v823, -inf
        %850 = vmax.xlane.f32.xlu0 %v849
        %v851 = vpop.xlane.xlu0 %850
        %v852 = vsel %vm519, %v828, -inf
        %853 = vmax.xlane.f32.xlu0 %v852
        %v854 = vpop.xlane.xlu0 %853
        %v855 = vsub.f32 %v793, %v833
        %v856 = vsub.f32 %v798, %v836
        %v857 = vsub.f32 %v803, %v839
        %v858 = vsub.f32 %v808, %v842
        %v859 = vsub.f32 %v813, %v845
        %v860 = vsub.f32 %v818, %v848
        %v861 = vsub.f32 %v823, %v851
        %v862 = vsub.f32 %v828, %v854
        %v863 = vmul.f32 %v855, 1.442695
        %v864 = vpow.pop %v863
        %v865 = vmul.f32 %v856, 1.442695
        %v866 = vpow.pop %v865
        %v867 = vmul.f32 %v857, 1.442695
        %v868 = vpow.pop %v867
        %v869 = vmul.f32 %v858, 1.442695
        %v870 = vpow.pop %v869
        %v871 = vmul.f32 %v859, 1.442695
        %v872 = vpow.pop %v871
        %v873 = vmul.f32 %v860, 1.442695
        %v874 = vpow.pop %v873
        %v875 = vmul.f32 %v861, 1.442695
        %v876 = vpow.pop %v875
        %v877 = vmul.f32 %v862, 1.442695
        %v878 = vpow.pop %v877
        %v879 = vsel %vm519, %v864, 0.0
        %880 = vadd.xlane.f32.xlu0 %v879
        %v881 = vpop.xlane.xlu0 %880
        %v882 = vsel %vm519, %v866, 0.0
        %883 = vadd.xlane.f32.xlu0 %v882
        %v884 = vpop.xlane.xlu0 %883
        %v885 = vsel %vm519, %v868, 0.0
        %886 = vadd.xlane.f32.xlu0 %v885
        %v887 = vpop.xlane.xlu0 %886
        %v888 = vsel %vm519, %v870, 0.0
        %889 = vadd.xlane.f32.xlu0 %v888
        %v890 = vpop.xlane.xlu0 %889
        %v891 = vsel %vm519, %v872, 0.0
        %892 = vadd.xlane.f32.xlu0 %v891
        %v893 = vpop.xlane.xlu0 %892
        %v894 = vsel %vm519, %v874, 0.0
        %895 = vadd.xlane.f32.xlu0 %v894
        %v896 = vpop.xlane.xlu0 %895
        %v897 = vsel %vm519, %v876, 0.0
        %898 = vadd.xlane.f32.xlu0 %v897
        %v899 = vpop.xlane.xlu0 %898
        %v900 = vsel %vm519, %v878, 0.0
        %901 = vadd.xlane.f32.xlu0 %v900
        %v902 = vpop.xlane.xlu0 %901
        %v903 = vrcp.pop %v881
        %v904 = vrcp.pop %v884
        %v905 = vrcp.pop %v887
        %v906 = vrcp.pop %v890
        %v907 = vrcp.pop %v893
        %v908 = vrcp.pop %v896
        %v909 = vrcp.pop %v899
        %v910 = vrcp.pop %v902
        %v911 = vmul.f32 %v864, %v903
        %v912 = vmul.f32 %v866, %v904
        %v913 = vmul.f32 %v868, %v905
        %v914 = vmul.f32 %v870, %v906
        %v915 = vmul.f32 %v872, %v907
        %v916 = vmul.f32 %v874, %v908
        %v917 = vmul.f32 %v876, %v909
        %v918 = vmul.f32 %v878, %v910
        %v919 = vld [vmem:[#allocation3] sm:$0xff]
        %v920 = vld [vmem:[#allocation3 + $0x8] sm:$0xff]
        %v921 = vld [vmem:[#allocation3 + $0x10] sm:$0xff]
        %v922 = vld [vmem:[#allocation3 + $0x18] sm:$0xff]
        %v923 = vld [vmem:[#allocation3 + $0x20] sm:$0xff]
        %v924 = vld [vmem:[#allocation3 + $0x28] sm:$0xff]
        %v925 = vld [vmem:[#allocation3 + $0x30] sm:$0xff]
        %v926 = vld [vmem:[#allocation3 + $0x38] sm:$0xff]
        %927 = vrot.lane.b32.xlu0 %v653, 120
        %v928 = vpop.permute.xlu0 %927
        %929 = vrot.lane.b32.xlu0 %v654, 120
        %v930 = vpop.permute.xlu0 %929
        %931 = vrot.lane.b32.xlu0 %v655, 120
        %v932 = vpop.permute.xlu0 %931
        %933 = vrot.lane.b32.xlu0 %v656, 120
        %v934 = vpop.permute.xlu0 %933
        %935 = vrot.lane.b32.xlu0 %v657, 120
        %v936 = vpop.permute.xlu0 %935
        %937 = vrot.lane.b32.xlu0 %v658, 120
        %v938 = vpop.permute.xlu0 %937
        %939 = vrot.lane.b32.xlu0 %v659, 120
        %v940 = vpop.permute.xlu0 %939
        %941 = vrot.lane.b32.xlu0 %v660, 120
        %v942 = vpop.permute.xlu0 %941
        %943 = vrot.lane.b32.xlu0 %v645, 88
        %v944 = vpop.permute.xlu0 %943
        %945 = vrot.lane.b32.xlu0 %v646, 88
        %v946 = vpop.permute.xlu0 %945
        %947 = vrot.lane.b32.xlu0 %v647, 88
        %v948 = vpop.permute.xlu0 %947
        %949 = vrot.lane.b32.xlu0 %v648, 88
        %v950 = vpop.permute.xlu0 %949
        %951 = vrot.lane.b32.xlu0 %v649, 88
        %v952 = vpop.permute.xlu0 %951
        %953 = vrot.lane.b32.xlu0 %v650, 88
        %v954 = vpop.permute.xlu0 %953
        %955 = vrot.lane.b32.xlu0 %v651, 88
        %v956 = vpop.permute.xlu0 %955
        %957 = vrot.lane.b32.xlu0 %v652, 88
        %v958 = vpop.permute.xlu0 %957
        %v959 = vsel %vm685, %v928, 0
        %v961 = vsel %vm685, %v930, 0
        %v963 = vsel %vm685, %v932, 0
        %v965 = vsel %vm685, %v934, 0
        %v967 = vsel %vm685, %v936, 0
        %v969 = vsel %vm685, %v938, 0
        %v971 = vsel %vm685, %v940, 0
        %v973 = vsel %vm685, %v942, 0
        %v975 = vsel %vm685, %v944, 0
        %v977 = vsel %vm685, %v946, 0
        %v979 = vsel %vm685, %v948, 0
        %v981 = vsel %vm685, %v950, 0
        %v983 = vsel %vm685, %v952, 0
        %v985 = vsel %vm685, %v954, 0
        %v987 = vsel %vm685, %v956, 0
        %v989 = vsel %vm685, %v958, 0
        %991 = vmatprep.subr.mxu0 0.0
        %992 = vmatpush1.xpose.msra.mxu0 0.0
        %993 = vmatprep.subr.mxu0 0.0
        %994 = vmatpush1.xpose.msra.mxu0 0.0
        %995 = vmatprep.subr.mxu0 0.0
        %996 = vmatpush1.xpose.msra.mxu0 0.0
        %997 = vmatprep.subr.mxu0 0.0
        %998 = vmatpush1.xpose.msra.mxu0 0.0
        %999 = vmatprep.subr.mxu0 0.0
        %1000 = vmatpush1.xpose.msra.mxu0 0.0
        %1001 = vmatprep.subr.mxu0 0.0
        %1002 = vmatpush1.xpose.msra.mxu0 0.0
        %1003 = vmatprep.subr.mxu0 0.0
        %1004 = vmatpush1.xpose.msra.mxu0 0.0
        %1005 = vmatprep.subr.mxu0 0.0
        %1006 = vmatpush1.xpose.msra.mxu0 0.0
        %1007 = vmatprep.subr.mxu0 0.0
        %1008 = vmatpush1.xpose.msra.mxu0 %v989
        %1009 = vmatprep.subr.mxu0 0.0
        %1010 = vmatpush1.xpose.msra.mxu0 %v987
        %1011 = vmatprep.subr.mxu0 0.0
        %1012 = vmatpush1.xpose.msra.mxu0 %v985
        %1013 = vmatprep.subr.mxu0 0.0
        %1014 = vmatpush1.xpose.msra.mxu0 %v983
        %1015 = vmatprep.subr.mxu0 0.0
        %1016 = vmatpush1.xpose.msra.mxu0 %v981
        %1017 = vmatprep.subr.mxu0 0.0
        %1018 = vmatpush1.xpose.msra.mxu0 %v979
        %1019 = vmatprep.subr.mxu0 0.0
        %1020 = vmatpush1.xpose.msra.mxu0 %v977
        %1021 = vmatprep.subr.mxu0 0.0
        %1022 = vmatpush1.xpose.msra.mxu0 %v975
        %1023 = vmatprep.subr.mxu0 0.0
        %1024 = vmatpush2.xpose.msra.mxu0 0.0
        %1025 = vmatprep.subr.mxu0 0.0
        %1026 = vmatpush2.xpose.msra.mxu0 0.0
        %1027 = vmatprep.subr.mxu0 0.0
        %1028 = vmatpush2.xpose.msra.mxu0 0.0
        %1029 = vmatprep.subr.mxu0 0.0
        %1030 = vmatpush2.xpose.msra.mxu0 0.0
        %1031 = vmatprep.subr.mxu0 0.0
        %1032 = vmatpush2.xpose.msra.mxu0 0.0
        %1033 = vmatprep.subr.mxu0 0.0
        %1034 = vmatpush2.xpose.msra.mxu0 0.0
        %1035 = vmatprep.subr.mxu0 0.0
        %1036 = vmatpush2.xpose.msra.mxu0 0.0
        %1037 = vmatprep.subr.mxu0 0.0
        %1038 = vmatpush2.xpose.msra.mxu0 0.0
        %1039 = vmatprep.subr.mxu0 0.0
        %1040 = vmatpush2.xpose.msra.mxu0 0.0
        %1041 = vmatprep.subr.mxu0 0.0
        %1042 = vmatpush2.xpose.msra.mxu0 0.0
        %1043 = vmatprep.subr.mxu0 0.0
        %1044 = vmatpush2.xpose.msra.mxu0 0.0
        %1045 = vmatprep.subr.mxu0 0.0
        %1046 = vmatpush2.xpose.msra.mxu0 0.0
        %1047 = vmatprep.subr.mxu0 0.0
        %1048 = vmatpush2.xpose.msra.mxu0 0.0
        %1049 = vmatprep.subr.mxu0 0.0
        %1050 = vmatpush2.xpose.msra.mxu0 0.0
        %1051 = vmatprep.subr.mxu0 0.0
        %1052 = vmatpush2.xpose.msra.mxu0 0.0
        %1053 = vmatprep.subr.mxu0 0.0
        %1054 = vmatpush2.xpose.msra.mxu0 0.0
        %1055 = vmatprep.mubr.f32.mxu0 0.0
        %1056 = vmatmul.mubr.f32.gmra.mxu0 %v959
        %v1057 = vpop.f32.mrf.mxu0
        %v1058 = vadd.f32 0.0, %v1057
        %v1059 = vpop.f32.mrf.mxu0
        %1060 = vmatprep.mubr.f32.mxu0 0.0
        %1061 = vmatmul.mubr.f32.gmra.mxu0 %v961
        %v1062 = vpop.f32.mrf.mxu0
        %v1063 = vadd.f32 0.0, %v1062
        %v1064 = vpop.f32.mrf.mxu0
        %1065 = vmatprep.mubr.f32.mxu0 0.0
        %1066 = vmatmul.mubr.f32.gmra.mxu0 %v963
        %v1067 = vpop.f32.mrf.mxu0
        %v1068 = vadd.f32 0.0, %v1067
        %v1069 = vpop.f32.mrf.mxu0
        %1070 = vmatprep.mubr.f32.mxu0 0.0
        %1071 = vmatmul.mubr.f32.gmra.mxu0 %v965
        %v1072 = vpop.f32.mrf.mxu0
        %v1073 = vadd.f32 0.0, %v1072
        %v1074 = vpop.f32.mrf.mxu0
        %1075 = vmatprep.mubr.f32.mxu0 0.0
        %1076 = vmatmul.mubr.f32.gmra.mxu0 %v967
        %v1077 = vpop.f32.mrf.mxu0
        %v1078 = vadd.f32 0.0, %v1077
        %v1079 = vpop.f32.mrf.mxu0
        %1080 = vmatprep.mubr.f32.mxu0 0.0
        %1081 = vmatmul.mubr.f32.gmra.mxu0 %v969
        %v1082 = vpop.f32.mrf.mxu0
        %v1083 = vadd.f32 0.0, %v1082
        %v1084 = vpop.f32.mrf.mxu0
        %1085 = vmatprep.mubr.f32.mxu0 0.0
        %1086 = vmatmul.mubr.f32.gmra.mxu0 %v971
        %v1087 = vpop.f32.mrf.mxu0
        %v1088 = vadd.f32 0.0, %v1087
        %v1089 = vpop.f32.mrf.mxu0
        %1090 = vmatprep.mubr.f32.mxu0 0.0
        %1091 = vmatmul.mubr.f32.gmra.mxu0 %v973
        %v1092 = vpop.f32.mrf.mxu0
        %v1093 = vadd.f32 0.0, %v1092
        %v1094 = vpop.f32.mrf.mxu0
        %1095 = vdwg.mxu0
        %v1096 = vsel %vm519, %v1058, -inf
        %1097 = vmax.xlane.f32.xlu0 %v1096
        %v1098 = vpop.xlane.xlu0 %1097
        %v1099 = vsel %vm519, %v1063, -inf
        %1100 = vmax.xlane.f32.xlu0 %v1099
        %v1101 = vpop.xlane.xlu0 %1100
        %v1102 = vsel %vm519, %v1068, -inf
        %1103 = vmax.xlane.f32.xlu0 %v1102
        %v1104 = vpop.xlane.xlu0 %1103
        %v1105 = vsel %vm519, %v1073, -inf
        %1106 = vmax.xlane.f32.xlu0 %v1105
        %v1107 = vpop.xlane.xlu0 %1106
        %v1108 = vsel %vm519, %v1078, -inf
        %1109 = vmax.xlane.f32.xlu0 %v1108
        %v1110 = vpop.xlane.xlu0 %1109
        %v1111 = vsel %vm519, %v1083, -inf
        %1112 = vmax.xlane.f32.xlu0 %v1111
        %v1113 = vpop.xlane.xlu0 %1112
        %v1114 = vsel %vm519, %v1088, -inf
        %1115 = vmax.xlane.f32.xlu0 %v1114
        %v1116 = vpop.xlane.xlu0 %1115
        %v1117 = vsel %vm519, %v1093, -inf
        %1118 = vmax.xlane.f32.xlu0 %v1117
        %v1119 = vpop.xlane.xlu0 %1118
        %v1120 = vsub.f32 %v1058, %v1098
        %v1121 = vsub.f32 %v1063, %v1101
        %v1122 = vsub.f32 %v1068, %v1104
        %v1123 = vsub.f32 %v1073, %v1107
        %v1124 = vsub.f32 %v1078, %v1110
        %v1125 = vsub.f32 %v1083, %v1113
        %v1126 = vsub.f32 %v1088, %v1116
        %v1127 = vsub.f32 %v1093, %v1119
        %v1128 = vmul.f32 %v1120, 1.442695
        %v1129 = vpow.pop %v1128
        %v1130 = vmul.f32 %v1121, 1.442695
        %v1131 = vpow.pop %v1130
        %v1132 = vmul.f32 %v1122, 1.442695
        %v1133 = vpow.pop %v1132
        %v1134 = vmul.f32 %v1123, 1.442695
        %v1135 = vpow.pop %v1134
        %v1136 = vmul.f32 %v1124, 1.442695
        %v1137 = vpow.pop %v1136
        %v1138 = vmul.f32 %v1125, 1.442695
        %v1139 = vpow.pop %v1138
        %v1140 = vmul.f32 %v1126, 1.442695
        %v1141 = vpow.pop %v1140
        %v1142 = vmul.f32 %v1127, 1.442695
        %v1143 = vpow.pop %v1142
        %v1144 = vsel %vm519, %v1129, 0.0
        %1145 = vadd.xlane.f32.xlu0 %v1144
        %v1146 = vpop.xlane.xlu0 %1145
        %v1147 = vsel %vm519, %v1131, 0.0
        %1148 = vadd.xlane.f32.xlu0 %v1147
        %v1149 = vpop.xlane.xlu0 %1148
        %v1150 = vsel %vm519, %v1133, 0.0
        %1151 = vadd.xlane.f32.xlu0 %v1150
        %v1152 = vpop.xlane.xlu0 %1151
        %v1153 = vsel %vm519, %v1135, 0.0
        %1154 = vadd.xlane.f32.xlu0 %v1153
        %v1155 = vpop.xlane.xlu0 %1154
        %v1156 = vsel %vm519, %v1137, 0.0
        %1157 = vadd.xlane.f32.xlu0 %v1156
        %v1158 = vpop.xlane.xlu0 %1157
        %v1159 = vsel %vm519, %v1139, 0.0
        %1160 = vadd.xlane.f32.xlu0 %v1159
        %v1161 = vpop.xlane.xlu0 %1160
        %v1162 = vsel %vm519, %v1141, 0.0
        %1163 = vadd.xlane.f32.xlu0 %v1162
        %v1164 = vpop.xlane.xlu0 %1163
        %v1165 = vsel %vm519, %v1143, 0.0
        %1166 = vadd.xlane.f32.xlu0 %v1165
        %v1167 = vpop.xlane.xlu0 %1166
        %v1168 = vrcp.pop %v1146
        %v1169 = vrcp.pop %v1149
        %v1170 = vrcp.pop %v1152
        %v1171 = vrcp.pop %v1155
        %v1172 = vrcp.pop %v1158
        %v1173 = vrcp.pop %v1161
        %v1174 = vrcp.pop %v1164
        %v1175 = vrcp.pop %v1167
        %v1176 = vmul.f32 %v1129, %v1168
        %v1177 = vmul.f32 %v1131, %v1169
        %v1178 = vmul.f32 %v1133, %v1170
        %v1179 = vmul.f32 %v1135, %v1171
        %v1180 = vmul.f32 %v1137, %v1172
        %v1181 = vmul.f32 %v1139, %v1173
        %v1182 = vmul.f32 %v1141, %v1174
        %v1183 = vmul.f32 %v1143, %v1175
        %1192 = vrot.lane.b32.xlu0 %v919, 96
        %v1193 = vpop.permute.xlu0 %1192
        %1194 = vrot.lane.b32.xlu0 %v920, 96
        %v1195 = vpop.permute.xlu0 %1194
        %1196 = vrot.lane.b32.xlu0 %v921, 96
        %v1197 = vpop.permute.xlu0 %1196
        %1198 = vrot.lane.b32.xlu0 %v922, 96
        %v1199 = vpop.permute.xlu0 %1198
        %1200 = vrot.lane.b32.xlu0 %v923, 96
        %v1201 = vpop.permute.xlu0 %1200
        %1202 = vrot.lane.b32.xlu0 %v924, 96
        %v1203 = vpop.permute.xlu0 %1202
        %1204 = vrot.lane.b32.xlu0 %v925, 96
        %v1205 = vpop.permute.xlu0 %1204
        %1206 = vrot.lane.b32.xlu0 %v926, 96
        %v1207 = vpop.permute.xlu0 %1206
        %v1217 = vsel %vm519, %v1176, 0
        %v1220 = vsel %vm519, %v1177, 0
        %v1223 = vsel %vm519, %v1178, 0
        %v1226 = vsel %vm519, %v1179, 0
        %v1229 = vsel %vm519, %v1180, 0
        %v1232 = vsel %vm519, %v1181, 0
        %v1235 = vsel %vm519, %v1182, 0
        %v1238 = vsel %vm519, %v1183, 0
        %1240 = vmatprep.subr.mxu0 0.0
        %1241 = vmatpush1.msra.mxu0 0.0
        %1242 = vmatprep.subr.mxu0 0.0
        %1243 = vmatpush1.msra.mxu0 0.0
        %1244 = vmatprep.subr.mxu0 0.0
        %1245 = vmatpush1.msra.mxu0 0.0
        %1246 = vmatprep.subr.mxu0 0.0
        %1247 = vmatpush1.msra.mxu0 0.0
        %1248 = vmatprep.subr.mxu0 0.0
        %1249 = vmatpush1.msra.mxu0 0.0
        %1250 = vmatprep.subr.mxu0 0.0
        %1251 = vmatpush1.msra.mxu0 0.0
        %1252 = vmatprep.subr.mxu0 0.0
        %1253 = vmatpush1.msra.mxu0 0.0
        %1254 = vmatprep.subr.mxu0 0.0
        %1255 = vmatpush1.msra.mxu0 0.0
        %1256 = vmatprep.subr.mxu0 0.0
        %1257 = vmatpush1.msra.mxu0 %v1207
        %1258 = vmatprep.subr.mxu0 0.0
        %1259 = vmatpush1.msra.mxu0 %v1205
        %1260 = vmatprep.subr.mxu0 0.0
        %1261 = vmatpush1.msra.mxu0 %v1203
        %1262 = vmatprep.subr.mxu0 0.0
        %1263 = vmatpush1.msra.mxu0 %v1201
        %1264 = vmatprep.subr.mxu0 0.0
        %1265 = vmatpush1.msra.mxu0 %v1199
        %1266 = vmatprep.subr.mxu0 0.0
        %1267 = vmatpush1.msra.mxu0 %v1197
        %1268 = vmatprep.subr.mxu0 0.0
        %1269 = vmatpush1.msra.mxu0 %v1195
        %1270 = vmatprep.subr.mxu0 0.0
        %1271 = vmatpush1.msra.mxu0 %v1193
        %1272 = vmatprep.subr.mxu0 0.0
        %1273 = vmatpush2.msra.mxu0 0.0
        %1274 = vmatprep.subr.mxu0 0.0
        %1275 = vmatpush2.msra.mxu0 0.0
        %1276 = vmatprep.subr.mxu0 0.0
        %1277 = vmatpush2.msra.mxu0 0.0
        %1278 = vmatprep.subr.mxu0 0.0
        %1279 = vmatpush2.msra.mxu0 0.0
        %1280 = vmatprep.subr.mxu0 0.0
        %1281 = vmatpush2.msra.mxu0 0.0
        %1282 = vmatprep.subr.mxu0 0.0
        %1283 = vmatpush2.msra.mxu0 0.0
        %1284 = vmatprep.subr.mxu0 0.0
        %1285 = vmatpush2.msra.mxu0 0.0
        %1286 = vmatprep.subr.mxu0 0.0
        %1287 = vmatpush2.msra.mxu0 0.0
        %1288 = vmatprep.subr.mxu0 0.0
        %1289 = vmatpush2.msra.mxu0 0.0
        %1290 = vmatprep.subr.mxu0 0.0
        %1291 = vmatpush2.msra.mxu0 0.0
        %1292 = vmatprep.subr.mxu0 0.0
        %1293 = vmatpush2.msra.mxu0 0.0
        %1294 = vmatprep.subr.mxu0 0.0
        %1295 = vmatpush2.msra.mxu0 0.0
        %1296 = vmatprep.subr.mxu0 0.0
        %1297 = vmatpush2.msra.mxu0 0.0
        %1298 = vmatprep.subr.mxu0 0.0
        %1299 = vmatpush2.msra.mxu0 0.0
        %1300 = vmatprep.subr.mxu0 0.0
        %1301 = vmatpush2.msra.mxu0 0.0
        %1302 = vmatprep.subr.mxu0 0.0
        %1303 = vmatpush2.msra.mxu0 0.0
        %1304 = vmatprep.mubr.f32.mxu0 0.0
        %1305 = vmatmul.mubr.f32.gmra.mxu0 %v1217
        %v1306 = vpop.f32.mrf.mxu0
        %v1307 = vadd.f32 0.0, %v1306
        %v1308 = vpop.f32.mrf.mxu0
        %1309 = vmatprep.mubr.f32.mxu0 0.0
        %1310 = vmatmul.mubr.f32.gmra.mxu0 %v1220
        %v1311 = vpop.f32.mrf.mxu0
        %v1312 = vadd.f32 0.0, %v1311
        %v1313 = vpop.f32.mrf.mxu0
        %1314 = vmatprep.mubr.f32.mxu0 0.0
        %1315 = vmatmul.mubr.f32.gmra.mxu0 %v1223
        %v1316 = vpop.f32.mrf.mxu0
        %v1317 = vadd.f32 0.0, %v1316
        %v1318 = vpop.f32.mrf.mxu0
        %1319 = vmatprep.mubr.f32.mxu0 0.0
        %1320 = vmatmul.mubr.f32.gmra.mxu0 %v1226
        %v1321 = vpop.f32.mrf.mxu0
        %v1322 = vadd.f32 0.0, %v1321
        %v1323 = vpop.f32.mrf.mxu0
        %1324 = vmatprep.mubr.f32.mxu0 0.0
        %1325 = vmatmul.mubr.f32.gmra.mxu0 %v1229
        %v1326 = vpop.f32.mrf.mxu0
        %v1327 = vadd.f32 0.0, %v1326
        %v1328 = vpop.f32.mrf.mxu0
        %1329 = vmatprep.mubr.f32.mxu0 0.0
        %1330 = vmatmul.mubr.f32.gmra.mxu0 %v1232
        %v1331 = vpop.f32.mrf.mxu0
        %v1332 = vadd.f32 0.0, %v1331
        %v1333 = vpop.f32.mrf.mxu0
        %1334 = vmatprep.mubr.f32.mxu0 0.0
        %1335 = vmatmul.mubr.f32.gmra.mxu0 %v1235
        %v1336 = vpop.f32.mrf.mxu0
        %v1337 = vadd.f32 0.0, %v1336
        %v1338 = vpop.f32.mrf.mxu0
        %1339 = vmatprep.mubr.f32.mxu0 0.0
        %1340 = vmatmul.mubr.f32.gmra.mxu0 %v1238
        %v1341 = vpop.f32.mrf.mxu0
        %v1342 = vadd.f32 0.0, %v1341
        %v1343 = vpop.f32.mrf.mxu0
        %1344 = vdwg.mxu0
        %v1346 = vsel %vm519, %v911, 0
        %v1349 = vsel %vm519, %v912, 0
        %v1352 = vsel %vm519, %v913, 0
        %v1355 = vsel %vm519, %v914, 0
        %v1358 = vsel %vm519, %v915, 0
        %v1361 = vsel %vm519, %v916, 0
        %v1364 = vsel %vm519, %v917, 0
        %v1367 = vsel %vm519, %v918, 0
        %1369 = vmatprep.subr.mxu0 0.0
        %1370 = vmatpush1.msra.mxu0 0.0
        %1371 = vmatprep.subr.mxu0 0.0
        %1372 = vmatpush1.msra.mxu0 0.0
        %1373 = vmatprep.subr.mxu0 0.0
        %1374 = vmatpush1.msra.mxu0 0.0
        %1375 = vmatprep.subr.mxu0 0.0
        %1376 = vmatpush1.msra.mxu0 0.0
        %1377 = vmatprep.subr.mxu0 0.0
        %1378 = vmatpush1.msra.mxu0 0.0
        %1379 = vmatprep.subr.mxu0 0.0
        %1380 = vmatpush1.msra.mxu0 0.0
        %1381 = vmatprep.subr.mxu0 0.0
        %1382 = vmatpush1.msra.mxu0 0.0
        %1383 = vmatprep.subr.mxu0 0.0
        %1384 = vmatpush1.msra.mxu0 0.0
        %1385 = vmatprep.subr.mxu0 0.0
        %1386 = vmatpush1.msra.mxu0 %v926
        %1387 = vmatprep.subr.mxu0 0.0
        %1388 = vmatpush1.msra.mxu0 %v925
        %1389 = vmatprep.subr.mxu0 0.0
        %1390 = vmatpush1.msra.mxu0 %v924
        %1391 = vmatprep.subr.mxu0 0.0
        %1392 = vmatpush1.msra.mxu0 %v923
        %1393 = vmatprep.subr.mxu0 0.0
        %1394 = vmatpush1.msra.mxu0 %v922
        %1395 = vmatprep.subr.mxu0 0.0
        %1396 = vmatpush1.msra.mxu0 %v921
        %1397 = vmatprep.subr.mxu0 0.0
        %1398 = vmatpush1.msra.mxu0 %v920
        %1399 = vmatprep.subr.mxu0 0.0
        %1400 = vmatpush1.msra.mxu0 %v919
        %1401 = vmatprep.subr.mxu0 0.0
        %1402 = vmatpush2.msra.mxu0 0.0
        %1403 = vmatprep.subr.mxu0 0.0
        %1404 = vmatpush2.msra.mxu0 0.0
        %1405 = vmatprep.subr.mxu0 0.0
        %1406 = vmatpush2.msra.mxu0 0.0
        %1407 = vmatprep.subr.mxu0 0.0
        %1408 = vmatpush2.msra.mxu0 0.0
        %1409 = vmatprep.subr.mxu0 0.0
        %1410 = vmatpush2.msra.mxu0 0.0
        %1411 = vmatprep.subr.mxu0 0.0
        %1412 = vmatpush2.msra.mxu0 0.0
        %1413 = vmatprep.subr.mxu0 0.0
        %1414 = vmatpush2.msra.mxu0 0.0
        %1415 = vmatprep.subr.mxu0 0.0
        %1416 = vmatpush2.msra.mxu0 0.0
        %1417 = vmatprep.subr.mxu0 0.0
        %1418 = vmatpush2.msra.mxu0 0.0
        %1419 = vmatprep.subr.mxu0 0.0
        %1420 = vmatpush2.msra.mxu0 0.0
        %1421 = vmatprep.subr.mxu0 0.0
        %1422 = vmatpush2.msra.mxu0 0.0
        %1423 = vmatprep.subr.mxu0 0.0
        %1424 = vmatpush2.msra.mxu0 0.0
        %1425 = vmatprep.subr.mxu0 0.0
        %1426 = vmatpush2.msra.mxu0 0.0
        %1427 = vmatprep.subr.mxu0 0.0
        %1428 = vmatpush2.msra.mxu0 0.0
        %1429 = vmatprep.subr.mxu0 0.0
        %1430 = vmatpush2.msra.mxu0 0.0
        %1431 = vmatprep.subr.mxu0 0.0
        %1432 = vmatpush2.msra.mxu0 0.0
        %1433 = vmatprep.mubr.f32.mxu0 0.0
        %1434 = vmatmul.mubr.f32.gmra.mxu0 %v1346
        %v1435 = vpop.f32.mrf.mxu0
        %v1436 = vadd.f32 %v1307, %v1435
        %v1437 = vpop.f32.mrf.mxu0
        %1438 = vmatprep.mubr.f32.mxu0 0.0
        %1439 = vmatmul.mubr.f32.gmra.mxu0 %v1349
        %v1440 = vpop.f32.mrf.mxu0
        %v1441 = vadd.f32 %v1312, %v1440
        %v1442 = vpop.f32.mrf.mxu0
        %1443 = vmatprep.mubr.f32.mxu0 0.0
        %1444 = vmatmul.mubr.f32.gmra.mxu0 %v1352
        %v1445 = vpop.f32.mrf.mxu0
        %v1446 = vadd.f32 %v1317, %v1445
        %v1447 = vpop.f32.mrf.mxu0
        %1448 = vmatprep.mubr.f32.mxu0 0.0
        %1449 = vmatmul.mubr.f32.gmra.mxu0 %v1355
        %v1450 = vpop.f32.mrf.mxu0
        %v1451 = vadd.f32 %v1322, %v1450
        %v1452 = vpop.f32.mrf.mxu0
        %1453 = vmatprep.mubr.f32.mxu0 0.0
        %1454 = vmatmul.mubr.f32.gmra.mxu0 %v1358
        %v1455 = vpop.f32.mrf.mxu0
        %v1456 = vadd.f32 %v1327, %v1455
        %v1457 = vpop.f32.mrf.mxu0
        %1458 = vmatprep.mubr.f32.mxu0 0.0
        %1459 = vmatmul.mubr.f32.gmra.mxu0 %v1361
        %v1460 = vpop.f32.mrf.mxu0
        %v1461 = vadd.f32 %v1332, %v1460
        %v1462 = vpop.f32.mrf.mxu0
        %1463 = vmatprep.mubr.f32.mxu0 0.0
        %1464 = vmatmul.mubr.f32.gmra.mxu0 %v1364
        %v1465 = vpop.f32.mrf.mxu0
        %v1466 = vadd.f32 %v1337, %v1465
        %v1467 = vpop.f32.mrf.mxu0
        %1468 = vmatprep.mubr.f32.mxu0 0.0
        %1469 = vmatmul.mubr.f32.gmra.mxu0 %v1367
        %v1470 = vpop.f32.mrf.mxu0
        %v1471 = vadd.f32 %v1342, %v1470
        %v1472 = vpop.f32.mrf.mxu0
        %1473 = vdwg.mxu0
        %1474 = vrot.lane.b32.xlu0 %v653, 112
        %v1475 = vpop.permute.xlu0 %1474
        %1476 = vrot.lane.b32.xlu0 %v654, 112
        %v1477 = vpop.permute.xlu0 %1476
        %1478 = vrot.lane.b32.xlu0 %v655, 112
        %v1479 = vpop.permute.xlu0 %1478
        %1480 = vrot.lane.b32.xlu0 %v656, 112
        %v1481 = vpop.permute.xlu0 %1480
        %1482 = vrot.lane.b32.xlu0 %v657, 112
        %v1483 = vpop.permute.xlu0 %1482
        %1484 = vrot.lane.b32.xlu0 %v658, 112
        %v1485 = vpop.permute.xlu0 %1484
        %1486 = vrot.lane.b32.xlu0 %v659, 112
        %v1487 = vpop.permute.xlu0 %1486
        %1488 = vrot.lane.b32.xlu0 %v660, 112
        %v1489 = vpop.permute.xlu0 %1488
        %1490 = vrot.lane.b32.xlu0 %v645, 80
        %v1491 = vpop.permute.xlu0 %1490
        %1492 = vrot.lane.b32.xlu0 %v646, 80
        %v1493 = vpop.permute.xlu0 %1492
        %1494 = vrot.lane.b32.xlu0 %v647, 80
        %v1495 = vpop.permute.xlu0 %1494
        %1496 = vrot.lane.b32.xlu0 %v648, 80
        %v1497 = vpop.permute.xlu0 %1496
        %1498 = vrot.lane.b32.xlu0 %v649, 80
        %v1499 = vpop.permute.xlu0 %1498
        %1500 = vrot.lane.b32.xlu0 %v650, 80
        %v1501 = vpop.permute.xlu0 %1500
        %1502 = vrot.lane.b32.xlu0 %v651, 80
        %v1503 = vpop.permute.xlu0 %1502
        %1504 = vrot.lane.b32.xlu0 %v652, 80
        %v1505 = vpop.permute.xlu0 %1504
        %v1506 = vsel %vm685, %v1475, 0
        %v1508 = vsel %vm685, %v1477, 0
        %v1510 = vsel %vm685, %v1479, 0
        %v1512 = vsel %vm685, %v1481, 0
        %v1514 = vsel %vm685, %v1483, 0
        %v1516 = vsel %vm685, %v1485, 0
        %v1518 = vsel %vm685, %v1487, 0
        %v1520 = vsel %vm685, %v1489, 0
        %v1522 = vsel %vm685, %v1491, 0
        %v1524 = vsel %vm685, %v1493, 0
        %v1526 = vsel %vm685, %v1495, 0
        %v1528 = vsel %vm685, %v1497, 0
        %v1530 = vsel %vm685, %v1499, 0
        %v1532 = vsel %vm685, %v1501, 0
        %v1534 = vsel %vm685, %v1503, 0
        %v1536 = vsel %vm685, %v1505, 0
        %1538 = vmatprep.subr.mxu0 0.0
        %1539 = vmatpush1.xpose.msra.mxu0 0.0
        %1540 = vmatprep.subr.mxu0 0.0
        %1541 = vmatpush1.xpose.msra.mxu0 0.0
        %1542 = vmatprep.subr.mxu0 0.0
        %1543 = vmatpush1.xpose.msra.mxu0 0.0
        %1544 = vmatprep.subr.mxu0 0.0
        %1545 = vmatpush1.xpose.msra.mxu0 0.0
        %1546 = vmatprep.subr.mxu0 0.0
        %1547 = vmatpush1.xpose.msra.mxu0 0.0
        %1548 = vmatprep.subr.mxu0 0.0
        %1549 = vmatpush1.xpose.msra.mxu0 0.0
        %1550 = vmatprep.subr.mxu0 0.0
        %1551 = vmatpush1.xpose.msra.mxu0 0.0
        %1552 = vmatprep.subr.mxu0 0.0
        %1553 = vmatpush1.xpose.msra.mxu0 0.0
        %1554 = vmatprep.subr.mxu0 0.0
        %1555 = vmatpush1.xpose.msra.mxu0 %v1536
        %1556 = vmatprep.subr.mxu0 0.0
        %1557 = vmatpush1.xpose.msra.mxu0 %v1534
        %1558 = vmatprep.subr.mxu0 0.0
        %1559 = vmatpush1.xpose.msra.mxu0 %v1532
        %1560 = vmatprep.subr.mxu0 0.0
        %1561 = vmatpush1.xpose.msra.mxu0 %v1530
        %1562 = vmatprep.subr.mxu0 0.0
        %1563 = vmatpush1.xpose.msra.mxu0 %v1528
        %1564 = vmatprep.subr.mxu0 0.0
        %1565 = vmatpush1.xpose.msra.mxu0 %v1526
        %1566 = vmatprep.subr.mxu0 0.0
        %1567 = vmatpush1.xpose.msra.mxu0 %v1524
        %1568 = vmatprep.subr.mxu0 0.0
        %1569 = vmatpush1.xpose.msra.mxu0 %v1522
        %1570 = vmatprep.subr.mxu0 0.0
        %1571 = vmatpush2.xpose.msra.mxu0 0.0
        %1572 = vmatprep.subr.mxu0 0.0
        %1573 = vmatpush2.xpose.msra.mxu0 0.0
        %1574 = vmatprep.subr.mxu0 0.0
        %1575 = vmatpush2.xpose.msra.mxu0 0.0
        %1576 = vmatprep.subr.mxu0 0.0
        %1577 = vmatpush2.xpose.msra.mxu0 0.0
        %1578 = vmatprep.subr.mxu0 0.0
        %1579 = vmatpush2.xpose.msra.mxu0 0.0
        %1580 = vmatprep.subr.mxu0 0.0
        %1581 = vmatpush2.xpose.msra.mxu0 0.0
        %1582 = vmatprep.subr.mxu0 0.0
        %1583 = vmatpush2.xpose.msra.mxu0 0.0
        %1584 = vmatprep.subr.mxu0 0.0
        %1585 = vmatpush2.xpose.msra.mxu0 0.0
        %1586 = vmatprep.subr.mxu0 0.0
        %1587 = vmatpush2.xpose.msra.mxu0 0.0
        %1588 = vmatprep.subr.mxu0 0.0
        %1589 = vmatpush2.xpose.msra.mxu0 0.0
        %1590 = vmatprep.subr.mxu0 0.0
        %1591 = vmatpush2.xpose.msra.mxu0 0.0
        %1592 = vmatprep.subr.mxu0 0.0
        %1593 = vmatpush2.xpose.msra.mxu0 0.0
        %1594 = vmatprep.subr.mxu0 0.0
        %1595 = vmatpush2.xpose.msra.mxu0 0.0
        %1596 = vmatprep.subr.mxu0 0.0
        %1597 = vmatpush2.xpose.msra.mxu0 0.0
        %1598 = vmatprep.subr.mxu0 0.0
        %1599 = vmatpush2.xpose.msra.mxu0 0.0
        %1600 = vmatprep.subr.mxu0 0.0
        %1601 = vmatpush2.xpose.msra.mxu0 0.0
        %1602 = vmatprep.mubr.f32.mxu0 0.0
        %1603 = vmatmul.mubr.f32.gmra.mxu0 %v1506
        %v1604 = vpop.f32.mrf.mxu0
        %v1605 = vadd.f32 0.0, %v1604
        %v1606 = vpop.f32.mrf.mxu0
        %1607 = vmatprep.mubr.f32.mxu0 0.0
        %1608 = vmatmul.mubr.f32.gmra.mxu0 %v1508
        %v1609 = vpop.f32.mrf.mxu0
        %v1610 = vadd.f32 0.0, %v1609
        %v1611 = vpop.f32.mrf.mxu0
        %1612 = vmatprep.mubr.f32.mxu0 0.0
        %1613 = vmatmul.mubr.f32.gmra.mxu0 %v1510
        %v1614 = vpop.f32.mrf.mxu0
        %v1615 = vadd.f32 0.0, %v1614
        %v1616 = vpop.f32.mrf.mxu0
        %1617 = vmatprep.mubr.f32.mxu0 0.0
        %1618 = vmatmul.mubr.f32.gmra.mxu0 %v1512
        %v1619 = vpop.f32.mrf.mxu0
        %v1620 = vadd.f32 0.0, %v1619
        %v1621 = vpop.f32.mrf.mxu0
        %1622 = vmatprep.mubr.f32.mxu0 0.0
        %1623 = vmatmul.mubr.f32.gmra.mxu0 %v1514
        %v1624 = vpop.f32.mrf.mxu0
        %v1625 = vadd.f32 0.0, %v1624
        %v1626 = vpop.f32.mrf.mxu0
        %1627 = vmatprep.mubr.f32.mxu0 0.0
        %1628 = vmatmul.mubr.f32.gmra.mxu0 %v1516
        %v1629 = vpop.f32.mrf.mxu0
        %v1630 = vadd.f32 0.0, %v1629
        %v1631 = vpop.f32.mrf.mxu0
        %1632 = vmatprep.mubr.f32.mxu0 0.0
        %1633 = vmatmul.mubr.f32.gmra.mxu0 %v1518
        %v1634 = vpop.f32.mrf.mxu0
        %v1635 = vadd.f32 0.0, %v1634
        %v1636 = vpop.f32.mrf.mxu0
        %1637 = vmatprep.mubr.f32.mxu0 0.0
        %1638 = vmatmul.mubr.f32.gmra.mxu0 %v1520
        %v1639 = vpop.f32.mrf.mxu0
        %v1640 = vadd.f32 0.0, %v1639
        %v1641 = vpop.f32.mrf.mxu0
        %1642 = vdwg.mxu0
        %v1643 = vsel %vm519, %v1605, -inf
        %1644 = vmax.xlane.f32.xlu0 %v1643
        %v1645 = vpop.xlane.xlu0 %1644
        %v1646 = vsel %vm519, %v1610, -inf
        %1647 = vmax.xlane.f32.xlu0 %v1646
        %v1648 = vpop.xlane.xlu0 %1647
        %v1649 = vsel %vm519, %v1615, -inf
        %1650 = vmax.xlane.f32.xlu0 %v1649
        %v1651 = vpop.xlane.xlu0 %1650
        %v1652 = vsel %vm519, %v1620, -inf
        %1653 = vmax.xlane.f32.xlu0 %v1652
        %v1654 = vpop.xlane.xlu0 %1653
        %v1655 = vsel %vm519, %v1625, -inf
        %1656 = vmax.xlane.f32.xlu0 %v1655
        %v1657 = vpop.xlane.xlu0 %1656
        %v1658 = vsel %vm519, %v1630, -inf
        %1659 = vmax.xlane.f32.xlu0 %v1658
        %v1660 = vpop.xlane.xlu0 %1659
        %v1661 = vsel %vm519, %v1635, -inf
        %1662 = vmax.xlane.f32.xlu0 %v1661
        %v1663 = vpop.xlane.xlu0 %1662
        %v1664 = vsel %vm519, %v1640, -inf
        %1665 = vmax.xlane.f32.xlu0 %v1664
        %v1666 = vpop.xlane.xlu0 %1665
        %v1667 = vsub.f32 %v1605, %v1645
        %v1668 = vsub.f32 %v1610, %v1648
        %v1669 = vsub.f32 %v1615, %v1651
        %v1670 = vsub.f32 %v1620, %v1654
        %v1671 = vsub.f32 %v1625, %v1657
        %v1672 = vsub.f32 %v1630, %v1660
        %v1673 = vsub.f32 %v1635, %v1663
        %v1674 = vsub.f32 %v1640, %v1666
        %v1675 = vmul.f32 %v1667, 1.442695
        %v1676 = vpow.pop %v1675
        %v1677 = vmul.f32 %v1668, 1.442695
        %v1678 = vpow.pop %v1677
        %v1679 = vmul.f32 %v1669, 1.442695
        %v1680 = vpow.pop %v1679
        %v1681 = vmul.f32 %v1670, 1.442695
        %v1682 = vpow.pop %v1681
        %v1683 = vmul.f32 %v1671, 1.442695
        %v1684 = vpow.pop %v1683
        %v1685 = vmul.f32 %v1672, 1.442695
        %v1686 = vpow.pop %v1685
        %v1687 = vmul.f32 %v1673, 1.442695
        %v1688 = vpow.pop %v1687
        %v1689 = vmul.f32 %v1674, 1.442695
        %v1690 = vpow.pop %v1689
        %v1691 = vsel %vm519, %v1676, 0.0
        %1692 = vadd.xlane.f32.xlu0 %v1691
        %v1693 = vpop.xlane.xlu0 %1692
        %v1694 = vsel %vm519, %v1678, 0.0
        %1695 = vadd.xlane.f32.xlu0 %v1694
        %v1696 = vpop.xlane.xlu0 %1695
        %v1697 = vsel %vm519, %v1680, 0.0
        %1698 = vadd.xlane.f32.xlu0 %v1697
        %v1699 = vpop.xlane.xlu0 %1698
        %v1700 = vsel %vm519, %v1682, 0.0
        %1701 = vadd.xlane.f32.xlu0 %v1700
        %v1702 = vpop.xlane.xlu0 %1701
        %v1703 = vsel %vm519, %v1684, 0.0
        %1704 = vadd.xlane.f32.xlu0 %v1703
        %v1705 = vpop.xlane.xlu0 %1704
        %v1706 = vsel %vm519, %v1686, 0.0
        %1707 = vadd.xlane.f32.xlu0 %v1706
        %v1708 = vpop.xlane.xlu0 %1707
        %v1709 = vsel %vm519, %v1688, 0.0
        %1710 = vadd.xlane.f32.xlu0 %v1709
        %v1711 = vpop.xlane.xlu0 %1710
        %v1712 = vsel %vm519, %v1690, 0.0
        %1713 = vadd.xlane.f32.xlu0 %v1712
        %v1714 = vpop.xlane.xlu0 %1713
        %v1715 = vrcp.pop %v1693
        %v1716 = vrcp.pop %v1696
        %v1717 = vrcp.pop %v1699
        %v1718 = vrcp.pop %v1702
        %v1719 = vrcp.pop %v1705
        %v1720 = vrcp.pop %v1708
        %v1721 = vrcp.pop %v1711
        %v1722 = vrcp.pop %v1714
        %v1723 = vmul.f32 %v1676, %v1715
        %v1724 = vmul.f32 %v1678, %v1716
        %v1725 = vmul.f32 %v1680, %v1717
        %v1726 = vmul.f32 %v1682, %v1718
        %v1727 = vmul.f32 %v1684, %v1719
        %v1728 = vmul.f32 %v1686, %v1720
        %v1729 = vmul.f32 %v1688, %v1721
        %v1730 = vmul.f32 %v1690, %v1722
        %1731 = vrot.lane.b32.xlu0 %v919, 64
        %v1732 = vpop.permute.xlu0 %1731
        %1733 = vrot.lane.b32.xlu0 %v920, 64
        %v1734 = vpop.permute.xlu0 %1733
        %1735 = vrot.lane.b32.xlu0 %v921, 64
        %v1736 = vpop.permute.xlu0 %1735
        %1737 = vrot.lane.b32.xlu0 %v922, 64
        %v1738 = vpop.permute.xlu0 %1737
        %1739 = vrot.lane.b32.xlu0 %v923, 64
        %v1740 = vpop.permute.xlu0 %1739
        %1741 = vrot.lane.b32.xlu0 %v924, 64
        %v1742 = vpop.permute.xlu0 %1741
        %1743 = vrot.lane.b32.xlu0 %v925, 64
        %v1744 = vpop.permute.xlu0 %1743
        %1745 = vrot.lane.b32.xlu0 %v926, 64
        %v1746 = vpop.permute.xlu0 %1745
        %v1756 = vsel %vm519, %v1723, 0
        %v1759 = vsel %vm519, %v1724, 0
        %v1762 = vsel %vm519, %v1725, 0
        %v1765 = vsel %vm519, %v1726, 0
        %v1768 = vsel %vm519, %v1727, 0
        %v1771 = vsel %vm519, %v1728, 0
        %v1774 = vsel %vm519, %v1729, 0
        %v1777 = vsel %vm519, %v1730, 0
        %1779 = vmatprep.subr.mxu0 0.0
        %1780 = vmatpush1.msra.mxu0 0.0
        %1781 = vmatprep.subr.mxu0 0.0
        %1782 = vmatpush1.msra.mxu0 0.0
        %1783 = vmatprep.subr.mxu0 0.0
        %1784 = vmatpush1.msra.mxu0 0.0
        %1785 = vmatprep.subr.mxu0 0.0
        %1786 = vmatpush1.msra.mxu0 0.0
        %1787 = vmatprep.subr.mxu0 0.0
        %1788 = vmatpush1.msra.mxu0 0.0
        %1789 = vmatprep.subr.mxu0 0.0
        %1790 = vmatpush1.msra.mxu0 0.0
        %1791 = vmatprep.subr.mxu0 0.0
        %1792 = vmatpush1.msra.mxu0 0.0
        %1793 = vmatprep.subr.mxu0 0.0
        %1794 = vmatpush1.msra.mxu0 0.0
        %1795 = vmatprep.subr.mxu0 0.0
        %1796 = vmatpush1.msra.mxu0 %v1746
        %1797 = vmatprep.subr.mxu0 0.0
        %1798 = vmatpush1.msra.mxu0 %v1744
        %1799 = vmatprep.subr.mxu0 0.0
        %1800 = vmatpush1.msra.mxu0 %v1742
        %1801 = vmatprep.subr.mxu0 0.0
        %1802 = vmatpush1.msra.mxu0 %v1740
        %1803 = vmatprep.subr.mxu0 0.0
        %1804 = vmatpush1.msra.mxu0 %v1738
        %1805 = vmatprep.subr.mxu0 0.0
        %1806 = vmatpush1.msra.mxu0 %v1736
        %1807 = vmatprep.subr.mxu0 0.0
        %1808 = vmatpush1.msra.mxu0 %v1734
        %1809 = vmatprep.subr.mxu0 0.0
        %1810 = vmatpush1.msra.mxu0 %v1732
        %1811 = vmatprep.subr.mxu0 0.0
        %1812 = vmatpush2.msra.mxu0 0.0
        %1813 = vmatprep.subr.mxu0 0.0
        %1814 = vmatpush2.msra.mxu0 0.0
        %1815 = vmatprep.subr.mxu0 0.0
        %1816 = vmatpush2.msra.mxu0 0.0
        %1817 = vmatprep.subr.mxu0 0.0
        %1818 = vmatpush2.msra.mxu0 0.0
        %1819 = vmatprep.subr.mxu0 0.0
        %1820 = vmatpush2.msra.mxu0 0.0
        %1821 = vmatprep.subr.mxu0 0.0
        %1822 = vmatpush2.msra.mxu0 0.0
        %1823 = vmatprep.subr.mxu0 0.0
        %1824 = vmatpush2.msra.mxu0 0.0
        %1825 = vmatprep.subr.mxu0 0.0
        %1826 = vmatpush2.msra.mxu0 0.0
        %1827 = vmatprep.subr.mxu0 0.0
        %1828 = vmatpush2.msra.mxu0 0.0
        %1829 = vmatprep.subr.mxu0 0.0
        %1830 = vmatpush2.msra.mxu0 0.0
        %1831 = vmatprep.subr.mxu0 0.0
        %1832 = vmatpush2.msra.mxu0 0.0
        %1833 = vmatprep.subr.mxu0 0.0
        %1834 = vmatpush2.msra.mxu0 0.0
        %1835 = vmatprep.subr.mxu0 0.0
        %1836 = vmatpush2.msra.mxu0 0.0
        %1837 = vmatprep.subr.mxu0 0.0
        %1838 = vmatpush2.msra.mxu0 0.0
        %1839 = vmatprep.subr.mxu0 0.0
        %1840 = vmatpush2.msra.mxu0 0.0
        %1841 = vmatprep.subr.mxu0 0.0
        %1842 = vmatpush2.msra.mxu0 0.0
        %1843 = vmatprep.mubr.f32.mxu0 0.0
        %1844 = vmatmul.mubr.f32.gmra.mxu0 %v1756
        %v1845 = vpop.f32.mrf.mxu0
        %v1846 = vadd.f32 0.0, %v1845
        %v1847 = vpop.f32.mrf.mxu0
        %1848 = vmatprep.mubr.f32.mxu0 0.0
        %1849 = vmatmul.mubr.f32.gmra.mxu0 %v1759
        %v1850 = vpop.f32.mrf.mxu0
        %v1851 = vadd.f32 0.0, %v1850
        %v1852 = vpop.f32.mrf.mxu0
        %1853 = vmatprep.mubr.f32.mxu0 0.0
        %1854 = vmatmul.mubr.f32.gmra.mxu0 %v1762
        %v1855 = vpop.f32.mrf.mxu0
        %v1856 = vadd.f32 0.0, %v1855
        %v1857 = vpop.f32.mrf.mxu0
        %1858 = vmatprep.mubr.f32.mxu0 0.0
        %1859 = vmatmul.mubr.f32.gmra.mxu0 %v1765
        %v1860 = vpop.f32.mrf.mxu0
        %v1861 = vadd.f32 0.0, %v1860
        %v1862 = vpop.f32.mrf.mxu0
        %1863 = vmatprep.mubr.f32.mxu0 0.0
        %1864 = vmatmul.mubr.f32.gmra.mxu0 %v1768
        %v1865 = vpop.f32.mrf.mxu0
        %v1866 = vadd.f32 0.0, %v1865
        %v1867 = vpop.f32.mrf.mxu0
        %1868 = vmatprep.mubr.f32.mxu0 0.0
        %1869 = vmatmul.mubr.f32.gmra.mxu0 %v1771
        %v1870 = vpop.f32.mrf.mxu0
        %v1871 = vadd.f32 0.0, %v1870
        %v1872 = vpop.f32.mrf.mxu0
        %1873 = vmatprep.mubr.f32.mxu0 0.0
        %1874 = vmatmul.mubr.f32.gmra.mxu0 %v1774
        %v1875 = vpop.f32.mrf.mxu0
        %v1876 = vadd.f32 0.0, %v1875
        %v1877 = vpop.f32.mrf.mxu0
        %1878 = vmatprep.mubr.f32.mxu0 0.0
        %1879 = vmatmul.mubr.f32.gmra.mxu0 %v1777
        %v1880 = vpop.f32.mrf.mxu0
        %v1881 = vadd.f32 0.0, %v1880
        %v1882 = vpop.f32.mrf.mxu0
        %1883 = vdwg.mxu0
        %v1884 = vadd.f32 %v1436, %v1846
        %v1885 = vadd.f32 %v1441, %v1851
        %v1886 = vadd.f32 %v1446, %v1856
        %v1887 = vadd.f32 %v1451, %v1861
        %v1888 = vadd.f32 %v1456, %v1866
        %v1889 = vadd.f32 %v1461, %v1871
        %v1890 = vadd.f32 %v1466, %v1876
        %v1891 = vadd.f32 %v1471, %v1881
        %1892 = vrot.lane.b32.xlu0 %v653, 104
        %v1893 = vpop.permute.xlu0 %1892
        %1894 = vrot.lane.b32.xlu0 %v654, 104
        %v1895 = vpop.permute.xlu0 %1894
        %1896 = vrot.lane.b32.xlu0 %v655, 104
        %v1897 = vpop.permute.xlu0 %1896
        %1898 = vrot.lane.b32.xlu0 %v656, 104
        %v1899 = vpop.permute.xlu0 %1898
        %1900 = vrot.lane.b32.xlu0 %v657, 104
        %v1901 = vpop.permute.xlu0 %1900
        %1902 = vrot.lane.b32.xlu0 %v658, 104
        %v1903 = vpop.permute.xlu0 %1902
        %1904 = vrot.lane.b32.xlu0 %v659, 104
        %v1905 = vpop.permute.xlu0 %1904
        %1906 = vrot.lane.b32.xlu0 %v660, 104
        %v1907 = vpop.permute.xlu0 %1906
        %1908 = vrot.lane.b32.xlu0 %v645, 72
        %v1909 = vpop.permute.xlu0 %1908
        %1910 = vrot.lane.b32.xlu0 %v646, 72
        %v1911 = vpop.permute.xlu0 %1910
        %1912 = vrot.lane.b32.xlu0 %v647, 72
        %v1913 = vpop.permute.xlu0 %1912
        %1914 = vrot.lane.b32.xlu0 %v648, 72
        %v1915 = vpop.permute.xlu0 %1914
        %1916 = vrot.lane.b32.xlu0 %v649, 72
        %v1917 = vpop.permute.xlu0 %1916
        %1918 = vrot.lane.b32.xlu0 %v650, 72
        %v1919 = vpop.permute.xlu0 %1918
        %1920 = vrot.lane.b32.xlu0 %v651, 72
        %v1921 = vpop.permute.xlu0 %1920
        %1922 = vrot.lane.b32.xlu0 %v652, 72
        %v1923 = vpop.permute.xlu0 %1922
        %v1924 = vsel %vm685, %v1893, 0
        %v1926 = vsel %vm685, %v1895, 0
        %v1928 = vsel %vm685, %v1897, 0
        %v1930 = vsel %vm685, %v1899, 0
        %v1932 = vsel %vm685, %v1901, 0
        %v1934 = vsel %vm685, %v1903, 0
        %v1936 = vsel %vm685, %v1905, 0
        %v1938 = vsel %vm685, %v1907, 0
        %v1940 = vsel %vm685, %v1909, 0
        %v1942 = vsel %vm685, %v1911, 0
        %v1944 = vsel %vm685, %v1913, 0
        %v1946 = vsel %vm685, %v1915, 0
        %v1948 = vsel %vm685, %v1917, 0
        %v1950 = vsel %vm685, %v1919, 0
        %v1952 = vsel %vm685, %v1921, 0
        %v1954 = vsel %vm685, %v1923, 0
        %1956 = vmatprep.subr.mxu0 0.0
        %1957 = vmatpush1.xpose.msra.mxu0 0.0
        %1958 = vmatprep.subr.mxu0 0.0
        %1959 = vmatpush1.xpose.msra.mxu0 0.0
        %1960 = vmatprep.subr.mxu0 0.0
        %1961 = vmatpush1.xpose.msra.mxu0 0.0
        %1962 = vmatprep.subr.mxu0 0.0
        %1963 = vmatpush1.xpose.msra.mxu0 0.0
        %1964 = vmatprep.subr.mxu0 0.0
        %1965 = vmatpush1.xpose.msra.mxu0 0.0
        %1966 = vmatprep.subr.mxu0 0.0
        %1967 = vmatpush1.xpose.msra.mxu0 0.0
        %1968 = vmatprep.subr.mxu0 0.0
        %1969 = vmatpush1.xpose.msra.mxu0 0.0
        %1970 = vmatprep.subr.mxu0 0.0
        %1971 = vmatpush1.xpose.msra.mxu0 0.0
        %1972 = vmatprep.subr.mxu0 0.0
        %1973 = vmatpush1.xpose.msra.mxu0 %v1954
        %1974 = vmatprep.subr.mxu0 0.0
        %1975 = vmatpush1.xpose.msra.mxu0 %v1952
        %1976 = vmatprep.subr.mxu0 0.0
        %1977 = vmatpush1.xpose.msra.mxu0 %v1950
        %1978 = vmatprep.subr.mxu0 0.0
        %1979 = vmatpush1.xpose.msra.mxu0 %v1948
        %1980 = vmatprep.subr.mxu0 0.0
        %1981 = vmatpush1.xpose.msra.mxu0 %v1946
        %1982 = vmatprep.subr.mxu0 0.0
        %1983 = vmatpush1.xpose.msra.mxu0 %v1944
        %1984 = vmatprep.subr.mxu0 0.0
        %1985 = vmatpush1.xpose.msra.mxu0 %v1942
        %1986 = vmatprep.subr.mxu0 0.0
        %1987 = vmatpush1.xpose.msra.mxu0 %v1940
        %1988 = vmatprep.subr.mxu0 0.0
        %1989 = vmatpush2.xpose.msra.mxu0 0.0
        %1990 = vmatprep.subr.mxu0 0.0
        %1991 = vmatpush2.xpose.msra.mxu0 0.0
        %1992 = vmatprep.subr.mxu0 0.0
        %1993 = vmatpush2.xpose.msra.mxu0 0.0
        %1994 = vmatprep.subr.mxu0 0.0
        %1995 = vmatpush2.xpose.msra.mxu0 0.0
        %1996 = vmatprep.subr.mxu0 0.0
        %1997 = vmatpush2.xpose.msra.mxu0 0.0
        %1998 = vmatprep.subr.mxu0 0.0
        %1999 = vmatpush2.xpose.msra.mxu0 0.0
        %2000 = vmatprep.subr.mxu0 0.0
        %2001 = vmatpush2.xpose.msra.mxu0 0.0
        %2002 = vmatprep.subr.mxu0 0.0
        %2003 = vmatpush2.xpose.msra.mxu0 0.0
        %2004 = vmatprep.subr.mxu0 0.0
        %2005 = vmatpush2.xpose.msra.mxu0 0.0
        %2006 = vmatprep.subr.mxu0 0.0
        %2007 = vmatpush2.xpose.msra.mxu0 0.0
        %2008 = vmatprep.subr.mxu0 0.0
        %2009 = vmatpush2.xpose.msra.mxu0 0.0
        %2010 = vmatprep.subr.mxu0 0.0
        %2011 = vmatpush2.xpose.msra.mxu0 0.0
        %2012 = vmatprep.subr.mxu0 0.0
        %2013 = vmatpush2.xpose.msra.mxu0 0.0
        %2014 = vmatprep.subr.mxu0 0.0
        %2015 = vmatpush2.xpose.msra.mxu0 0.0
        %2016 = vmatprep.subr.mxu0 0.0
        %2017 = vmatpush2.xpose.msra.mxu0 0.0
        %2018 = vmatprep.subr.mxu0 0.0
        %2019 = vmatpush2.xpose.msra.mxu0 0.0
        %2020 = vmatprep.mubr.f32.mxu0 0.0
        %2021 = vmatmul.mubr.f32.gmra.mxu0 %v1924
        %v2022 = vpop.f32.mrf.mxu0
        %v2023 = vadd.f32 0.0, %v2022
        %v2024 = vpop.f32.mrf.mxu0
        %2025 = vmatprep.mubr.f32.mxu0 0.0
        %2026 = vmatmul.mubr.f32.gmra.mxu0 %v1926
        %v2027 = vpop.f32.mrf.mxu0
        %v2028 = vadd.f32 0.0, %v2027
        %v2029 = vpop.f32.mrf.mxu0
        %2030 = vmatprep.mubr.f32.mxu0 0.0
        %2031 = vmatmul.mubr.f32.gmra.mxu0 %v1928
        %v2032 = vpop.f32.mrf.mxu0
        %v2033 = vadd.f32 0.0, %v2032
        %v2034 = vpop.f32.mrf.mxu0
        %2035 = vmatprep.mubr.f32.mxu0 0.0
        %2036 = vmatmul.mubr.f32.gmra.mxu0 %v1930
        %v2037 = vpop.f32.mrf.mxu0
        %v2038 = vadd.f32 0.0, %v2037
        %v2039 = vpop.f32.mrf.mxu0
        %2040 = vmatprep.mubr.f32.mxu0 0.0
        %2041 = vmatmul.mubr.f32.gmra.mxu0 %v1932
        %v2042 = vpop.f32.mrf.mxu0
        %v2043 = vadd.f32 0.0, %v2042
        %v2044 = vpop.f32.mrf.mxu0
        %2045 = vmatprep.mubr.f32.mxu0 0.0
        %2046 = vmatmul.mubr.f32.gmra.mxu0 %v1934
        %v2047 = vpop.f32.mrf.mxu0
        %v2048 = vadd.f32 0.0, %v2047
        %v2049 = vpop.f32.mrf.mxu0
        %2050 = vmatprep.mubr.f32.mxu0 0.0
        %2051 = vmatmul.mubr.f32.gmra.mxu0 %v1936
        %v2052 = vpop.f32.mrf.mxu0
        %v2053 = vadd.f32 0.0, %v2052
        %v2054 = vpop.f32.mrf.mxu0
        %2055 = vmatprep.mubr.f32.mxu0 0.0
        %2056 = vmatmul.mubr.f32.gmra.mxu0 %v1938
        %v2057 = vpop.f32.mrf.mxu0
        %v2058 = vadd.f32 0.0, %v2057
        %v2059 = vpop.f32.mrf.mxu0
        %2060 = vdwg.mxu0
        %v2061 = vsel %vm519, %v2023, -inf
        %2062 = vmax.xlane.f32.xlu0 %v2061
        %v2063 = vpop.xlane.xlu0 %2062
        %v2064 = vsel %vm519, %v2028, -inf
        %2065 = vmax.xlane.f32.xlu0 %v2064
        %v2066 = vpop.xlane.xlu0 %2065
        %v2067 = vsel %vm519, %v2033, -inf
        %2068 = vmax.xlane.f32.xlu0 %v2067
        %v2069 = vpop.xlane.xlu0 %2068
        %v2070 = vsel %vm519, %v2038, -inf
        %2071 = vmax.xlane.f32.xlu0 %v2070
        %v2072 = vpop.xlane.xlu0 %2071
        %v2073 = vsel %vm519, %v2043, -inf
        %2074 = vmax.xlane.f32.xlu0 %v2073
        %v2075 = vpop.xlane.xlu0 %2074
        %v2076 = vsel %vm519, %v2048, -inf
        %2077 = vmax.xlane.f32.xlu0 %v2076
        %v2078 = vpop.xlane.xlu0 %2077
        %v2079 = vsel %vm519, %v2053, -inf
        %2080 = vmax.xlane.f32.xlu0 %v2079
        %v2081 = vpop.xlane.xlu0 %2080
        %v2082 = vsel %vm519, %v2058, -inf
        %2083 = vmax.xlane.f32.xlu0 %v2082
        %v2084 = vpop.xlane.xlu0 %2083
        %v2085 = vsub.f32 %v2023, %v2063
        %v2086 = vsub.f32 %v2028, %v2066
        %v2087 = vsub.f32 %v2033, %v2069
        %v2088 = vsub.f32 %v2038, %v2072
        %v2089 = vsub.f32 %v2043, %v2075
        %v2090 = vsub.f32 %v2048, %v2078
        %v2091 = vsub.f32 %v2053, %v2081
        %v2092 = vsub.f32 %v2058, %v2084
        %v2093 = vmul.f32 %v2085, 1.442695
        %v2094 = vpow.pop %v2093
        %v2095 = vmul.f32 %v2086, 1.442695
        %v2096 = vpow.pop %v2095
        %v2097 = vmul.f32 %v2087, 1.442695
        %v2098 = vpow.pop %v2097
        %v2099 = vmul.f32 %v2088, 1.442695
        %v2100 = vpow.pop %v2099
        %v2101 = vmul.f32 %v2089, 1.442695
        %v2102 = vpow.pop %v2101
        %v2103 = vmul.f32 %v2090, 1.442695
        %v2104 = vpow.pop %v2103
        %v2105 = vmul.f32 %v2091, 1.442695
        %v2106 = vpow.pop %v2105
        %v2107 = vmul.f32 %v2092, 1.442695
        %v2108 = vpow.pop %v2107
        %v2109 = vsel %vm519, %v2094, 0.0
        %2110 = vadd.xlane.f32.xlu0 %v2109
        %v2111 = vpop.xlane.xlu0 %2110
        %v2112 = vsel %vm519, %v2096, 0.0
        %2113 = vadd.xlane.f32.xlu0 %v2112
        %v2114 = vpop.xlane.xlu0 %2113
        %v2115 = vsel %vm519, %v2098, 0.0
        %2116 = vadd.xlane.f32.xlu0 %v2115
        %v2117 = vpop.xlane.xlu0 %2116
        %v2118 = vsel %vm519, %v2100, 0.0
        %2119 = vadd.xlane.f32.xlu0 %v2118
        %v2120 = vpop.xlane.xlu0 %2119
        %v2121 = vsel %vm519, %v2102, 0.0
        %2122 = vadd.xlane.f32.xlu0 %v2121
        %v2123 = vpop.xlane.xlu0 %2122
        %v2124 = vsel %vm519, %v2104, 0.0
        %2125 = vadd.xlane.f32.xlu0 %v2124
        %v2126 = vpop.xlane.xlu0 %2125
        %v2127 = vsel %vm519, %v2106, 0.0
        %2128 = vadd.xlane.f32.xlu0 %v2127
        %v2129 = vpop.xlane.xlu0 %2128
        %v2130 = vsel %vm519, %v2108, 0.0
        %2131 = vadd.xlane.f32.xlu0 %v2130
        %v2132 = vpop.xlane.xlu0 %2131
        %v2133 = vrcp.pop %v2111
        %v2134 = vrcp.pop %v2114
        %v2135 = vrcp.pop %v2117
        %v2136 = vrcp.pop %v2120
        %v2137 = vrcp.pop %v2123
        %v2138 = vrcp.pop %v2126
        %v2139 = vrcp.pop %v2129
        %v2140 = vrcp.pop %v2132
        %v2141 = vmul.f32 %v2094, %v2133
        %v2142 = vmul.f32 %v2096, %v2134
        %v2143 = vmul.f32 %v2098, %v2135
        %v2144 = vmul.f32 %v2100, %v2136
        %v2145 = vmul.f32 %v2102, %v2137
        %v2146 = vmul.f32 %v2104, %v2138
        %v2147 = vmul.f32 %v2106, %v2139
        %v2148 = vmul.f32 %v2108, %v2140
        %2149 = vrot.lane.b32.xlu0 %v919, 32
        %v2150 = vpop.permute.xlu0 %2149
        %2151 = vrot.lane.b32.xlu0 %v920, 32
        %v2152 = vpop.permute.xlu0 %2151
        %2153 = vrot.lane.b32.xlu0 %v921, 32
        %v2154 = vpop.permute.xlu0 %2153
        %2155 = vrot.lane.b32.xlu0 %v922, 32
        %v2156 = vpop.permute.xlu0 %2155
        %2157 = vrot.lane.b32.xlu0 %v923, 32
        %v2158 = vpop.permute.xlu0 %2157
        %2159 = vrot.lane.b32.xlu0 %v924, 32
        %v2160 = vpop.permute.xlu0 %2159
        %2161 = vrot.lane.b32.xlu0 %v925, 32
        %v2162 = vpop.permute.xlu0 %2161
        %2163 = vrot.lane.b32.xlu0 %v926, 32
        %v2164 = vpop.permute.xlu0 %2163
        %v2174 = vsel %vm519, %v2141, 0
        %v2177 = vsel %vm519, %v2142, 0
        %v2180 = vsel %vm519, %v2143, 0
        %v2183 = vsel %vm519, %v2144, 0
        %v2186 = vsel %vm519, %v2145, 0
        %v2189 = vsel %vm519, %v2146, 0
        %v2192 = vsel %vm519, %v2147, 0
        %v2195 = vsel %vm519, %v2148, 0
        %2197 = vmatprep.subr.mxu0 0.0
        %2198 = vmatpush1.msra.mxu0 0.0
        %2199 = vmatprep.subr.mxu0 0.0
        %2200 = vmatpush1.msra.mxu0 0.0
        %2201 = vmatprep.subr.mxu0 0.0
        %2202 = vmatpush1.msra.mxu0 0.0
        %2203 = vmatprep.subr.mxu0 0.0
        %2204 = vmatpush1.msra.mxu0 0.0
        %2205 = vmatprep.subr.mxu0 0.0
        %2206 = vmatpush1.msra.mxu0 0.0
        %2207 = vmatprep.subr.mxu0 0.0
        %2208 = vmatpush1.msra.mxu0 0.0
        %2209 = vmatprep.subr.mxu0 0.0
        %2210 = vmatpush1.msra.mxu0 0.0
        %2211 = vmatprep.subr.mxu0 0.0
        %2212 = vmatpush1.msra.mxu0 0.0
        %2213 = vmatprep.subr.mxu0 0.0
        %2214 = vmatpush1.msra.mxu0 %v2164
        %2215 = vmatprep.subr.mxu0 0.0
        %2216 = vmatpush1.msra.mxu0 %v2162
        %2217 = vmatprep.subr.mxu0 0.0
        %2218 = vmatpush1.msra.mxu0 %v2160
        %2219 = vmatprep.subr.mxu0 0.0
        %2220 = vmatpush1.msra.mxu0 %v2158
        %2221 = vmatprep.subr.mxu0 0.0
        %2222 = vmatpush1.msra.mxu0 %v2156
        %2223 = vmatprep.subr.mxu0 0.0
        %2224 = vmatpush1.msra.mxu0 %v2154
        %2225 = vmatprep.subr.mxu0 0.0
        %2226 = vmatpush1.msra.mxu0 %v2152
        %2227 = vmatprep.subr.mxu0 0.0
        %2228 = vmatpush1.msra.mxu0 %v2150
        %2229 = vmatprep.subr.mxu0 0.0
        %2230 = vmatpush2.msra.mxu0 0.0
        %2231 = vmatprep.subr.mxu0 0.0
        %2232 = vmatpush2.msra.mxu0 0.0
        %2233 = vmatprep.subr.mxu0 0.0
        %2234 = vmatpush2.msra.mxu0 0.0
        %2235 = vmatprep.subr.mxu0 0.0
        %2236 = vmatpush2.msra.mxu0 0.0
        %2237 = vmatprep.subr.mxu0 0.0
        %2238 = vmatpush2.msra.mxu0 0.0
        %2239 = vmatprep.subr.mxu0 0.0
        %2240 = vmatpush2.msra.mxu0 0.0
        %2241 = vmatprep.subr.mxu0 0.0
        %2242 = vmatpush2.msra.mxu0 0.0
        %2243 = vmatprep.subr.mxu0 0.0
        %2244 = vmatpush2.msra.mxu0 0.0
        %2245 = vmatprep.subr.mxu0 0.0
        %2246 = vmatpush2.msra.mxu0 0.0
        %2247 = vmatprep.subr.mxu0 0.0
        %2248 = vmatpush2.msra.mxu0 0.0
        %2249 = vmatprep.subr.mxu0 0.0
        %2250 = vmatpush2.msra.mxu0 0.0
        %2251 = vmatprep.subr.mxu0 0.0
        %2252 = vmatpush2.msra.mxu0 0.0
        %2253 = vmatprep.subr.mxu0 0.0
        %2254 = vmatpush2.msra.mxu0 0.0
        %2255 = vmatprep.subr.mxu0 0.0
        %2256 = vmatpush2.msra.mxu0 0.0
        %2257 = vmatprep.subr.mxu0 0.0
        %2258 = vmatpush2.msra.mxu0 0.0
        %2259 = vmatprep.subr.mxu0 0.0
        %2260 = vmatpush2.msra.mxu0 0.0
        %2261 = vmatprep.mubr.f32.mxu0 0.0
        %2262 = vmatmul.mubr.f32.gmra.mxu0 %v2174
        %v2263 = vpop.f32.mrf.mxu0
        %v2264 = vadd.f32 0.0, %v2263
        %v2265 = vpop.f32.mrf.mxu0
        %2266 = vmatprep.mubr.f32.mxu0 0.0
        %2267 = vmatmul.mubr.f32.gmra.mxu0 %v2177
        %v2268 = vpop.f32.mrf.mxu0
        %v2269 = vadd.f32 0.0, %v2268
        %v2270 = vpop.f32.mrf.mxu0
        %2271 = vmatprep.mubr.f32.mxu0 0.0
        %2272 = vmatmul.mubr.f32.gmra.mxu0 %v2180
        %v2273 = vpop.f32.mrf.mxu0
        %v2274 = vadd.f32 0.0, %v2273
        %v2275 = vpop.f32.mrf.mxu0
        %2276 = vmatprep.mubr.f32.mxu0 0.0
        %2277 = vmatmul.mubr.f32.gmra.mxu0 %v2183
        %v2278 = vpop.f32.mrf.mxu0
        %v2279 = vadd.f32 0.0, %v2278
        %v2280 = vpop.f32.mrf.mxu0
        %2281 = vmatprep.mubr.f32.mxu0 0.0
        %2282 = vmatmul.mubr.f32.gmra.mxu0 %v2186
        %v2283 = vpop.f32.mrf.mxu0
        %v2284 = vadd.f32 0.0, %v2283
        %v2285 = vpop.f32.mrf.mxu0
        %2286 = vmatprep.mubr.f32.mxu0 0.0
        %2287 = vmatmul.mubr.f32.gmra.mxu0 %v2189
        %v2288 = vpop.f32.mrf.mxu0
        %v2289 = vadd.f32 0.0, %v2288
        %v2290 = vpop.f32.mrf.mxu0
        %2291 = vmatprep.mubr.f32.mxu0 0.0
        %2292 = vmatmul.mubr.f32.gmra.mxu0 %v2192
        %v2293 = vpop.f32.mrf.mxu0
        %v2294 = vadd.f32 0.0, %v2293
        %v2295 = vpop.f32.mrf.mxu0
        %2296 = vmatprep.mubr.f32.mxu0 0.0
        %2297 = vmatmul.mubr.f32.gmra.mxu0 %v2195
        %v2298 = vpop.f32.mrf.mxu0
        %v2299 = vadd.f32 0.0, %v2298
        %v2300 = vpop.f32.mrf.mxu0
        %2301 = vdwg.mxu0
        %v2302 = vadd.f32 %v1884, %v2264
        %v2303 = vadd.f32 %v1885, %v2269
        %v2304 = vadd.f32 %v1886, %v2274
        %v2305 = vadd.f32 %v1887, %v2279
        %v2306 = vadd.f32 %v1888, %v2284
        %v2307 = vadd.f32 %v1889, %v2289
        %v2308 = vadd.f32 %v1890, %v2294
        %v2309 = vadd.f32 %v1891, %v2299
        %v2310 = vld [vmem:[#allocation7] sm:$0xff]
        %v2311 = vld [vmem:[#allocation7 + $0x8] sm:$0xff]
        %v2313 = vsel %vm519, %v2310, 0
        %v2316 = vsel %vm519, %v2311, 0
        %2318 = vmatprep.subr.mxu0 0.0
        %2319 = vmatpush1.msra.mxu0 0.0
        %2320 = vmatprep.subr.mxu0 0.0
        %2321 = vmatpush1.msra.mxu0 0.0
        %2322 = vmatprep.subr.mxu0 0.0
        %2323 = vmatpush1.msra.mxu0 0.0
        %2324 = vmatprep.subr.mxu0 0.0
        %2325 = vmatpush1.msra.mxu0 0.0
        %2326 = vmatprep.subr.mxu0 0.0
        %2327 = vmatpush1.msra.mxu0 0.0
        %2328 = vmatprep.subr.mxu0 0.0
        %2329 = vmatpush1.msra.mxu0 0.0
        %2330 = vmatprep.subr.mxu0 0.0
        %2331 = vmatpush1.msra.mxu0 0.0
        %2332 = vmatprep.subr.mxu0 0.0
        %2333 = vmatpush1.msra.mxu0 0.0
        %2334 = vmatprep.subr.mxu0 0.0
        %2335 = vmatpush1.msra.mxu0 %v2309
        %2336 = vmatprep.subr.mxu0 0.0
        %2337 = vmatpush1.msra.mxu0 %v2308
        %2338 = vmatprep.subr.mxu0 0.0
        %2339 = vmatpush1.msra.mxu0 %v2307
        %2340 = vmatprep.subr.mxu0 0.0
        %2341 = vmatpush1.msra.mxu0 %v2306
        %2342 = vmatprep.subr.mxu0 0.0
        %2343 = vmatpush1.msra.mxu0 %v2305
        %2344 = vmatprep.subr.mxu0 0.0
        %2345 = vmatpush1.msra.mxu0 %v2304
        %2346 = vmatprep.subr.mxu0 0.0
        %2347 = vmatpush1.msra.mxu0 %v2303
        %2348 = vmatprep.subr.mxu0 0.0
        %2349 = vmatpush1.msra.mxu0 %v2302
        %2350 = vmatprep.subr.mxu0 0.0
        %2351 = vmatpush2.msra.mxu0 0.0
        %2352 = vmatprep.subr.mxu0 0.0
        %2353 = vmatpush2.msra.mxu0 0.0
        %2354 = vmatprep.subr.mxu0 0.0
        %2355 = vmatpush2.msra.mxu0 0.0
        %2356 = vmatprep.subr.mxu0 0.0
        %2357 = vmatpush2.msra.mxu0 0.0
        %2358 = vmatprep.subr.mxu0 0.0
        %2359 = vmatpush2.msra.mxu0 0.0
        %2360 = vmatprep.subr.mxu0 0.0
        %2361 = vmatpush2.msra.mxu0 0.0
        %2362 = vmatprep.subr.mxu0 0.0
        %2363 = vmatpush2.msra.mxu0 0.0
        %2364 = vmatprep.subr.mxu0 0.0
        %2365 = vmatpush2.msra.mxu0 0.0
        %2366 = vmatprep.subr.mxu0 0.0
        %2367 = vmatpush2.msra.mxu0 0.0
        %2368 = vmatprep.subr.mxu0 0.0
        %2369 = vmatpush2.msra.mxu0 0.0
        %2370 = vmatprep.subr.mxu0 0.0
        %2371 = vmatpush2.msra.mxu0 0.0
        %2372 = vmatprep.subr.mxu0 0.0
        %2373 = vmatpush2.msra.mxu0 0.0
        %2374 = vmatprep.subr.mxu0 0.0
        %2375 = vmatpush2.msra.mxu0 0.0
        %2376 = vmatprep.subr.mxu0 0.0
        %2377 = vmatpush2.msra.mxu0 0.0
        %2378 = vmatprep.subr.mxu0 0.0
        %2379 = vmatpush2.msra.mxu0 0.0
        %2380 = vmatprep.subr.mxu0 0.0
        %2381 = vmatpush2.msra.mxu0 0.0
        %2382 = vmatprep.mubr.f32.mxu0 0.0
        %2383 = vmatmul.mubr.f32.gmra.mxu0 %v2313
        %v2384 = vpop.f32.mrf.mxu0
        %v2385 = vadd.f32 0.0, %v2384
        %v2386 = vpop.f32.mrf.mxu0
        %2387 = vmatprep.mubr.f32.mxu0 0.0
        %2388 = vmatmul.mubr.f32.gmra.mxu0 %v2316
        %v2389 = vpop.f32.mrf.mxu0
        %v2390 = vadd.f32 0.0, %v2389
        %v2391 = vpop.f32.mrf.mxu0
        %2392 = vdwg.mxu0
        %v2393 = vld [vmem:[#allocation9] sm:$0xff]
        %v2394 = vld [vmem:[#allocation9 + $0x8] sm:$0xff]
        %v2395 = vld [vmem:[#allocation9 + $0x10] sm:$0xff]
        %v2396 = vld [vmem:[#allocation9 + $0x18] sm:$0xff]
        %s2397 = scalar_lea.vmem [#allocation7], 16
        %v2398 = vld [vmem:[%s2397] sm:$0xff]
        %v2399 = vld [vmem:[%s2397 + $0x8] sm:$0xff]
        %v2401 = vsel %vm519, %v2398, 0
        %v2404 = vsel %vm519, %v2399, 0
        %2406 = vmatprep.subr.mxu0 0.0
        %2407 = vmatpush1.msra.mxu0 0.0
        %2408 = vmatprep.subr.mxu0 0.0
        %2409 = vmatpush1.msra.mxu0 0.0
        %2410 = vmatprep.subr.mxu0 0.0
        %2411 = vmatpush1.msra.mxu0 0.0
        %2412 = vmatprep.subr.mxu0 0.0
        %2413 = vmatpush1.msra.mxu0 0.0
        %2414 = vmatprep.subr.mxu0 0.0
        %2415 = vmatpush1.msra.mxu0 0.0
        %2416 = vmatprep.subr.mxu0 0.0
        %2417 = vmatpush1.msra.mxu0 0.0
        %2418 = vmatprep.subr.mxu0 0.0
        %2419 = vmatpush1.msra.mxu0 0.0
        %2420 = vmatprep.subr.mxu0 0.0
        %2421 = vmatpush1.msra.mxu0 0.0
        %2422 = vmatprep.subr.mxu0 0.0
        %2423 = vmatpush1.msra.mxu0 %v2309
        %2424 = vmatprep.subr.mxu0 0.0
        %2425 = vmatpush1.msra.mxu0 %v2308
        %2426 = vmatprep.subr.mxu0 0.0
        %2427 = vmatpush1.msra.mxu0 %v2307
        %2428 = vmatprep.subr.mxu0 0.0
        %2429 = vmatpush1.msra.mxu0 %v2306
        %2430 = vmatprep.subr.mxu0 0.0
        %2431 = vmatpush1.msra.mxu0 %v2305
        %2432 = vmatprep.subr.mxu0 0.0
        %2433 = vmatpush1.msra.mxu0 %v2304
        %2434 = vmatprep.subr.mxu0 0.0
        %2435 = vmatpush1.msra.mxu0 %v2303
        %2436 = vmatprep.subr.mxu0 0.0
        %2437 = vmatpush1.msra.mxu0 %v2302
        %2438 = vmatprep.subr.mxu0 0.0
        %2439 = vmatpush2.msra.mxu0 0.0
        %2440 = vmatprep.subr.mxu0 0.0
        %2441 = vmatpush2.msra.mxu0 0.0
        %2442 = vmatprep.subr.mxu0 0.0
        %2443 = vmatpush2.msra.mxu0 0.0
        %2444 = vmatprep.subr.mxu0 0.0
        %2445 = vmatpush2.msra.mxu0 0.0
        %2446 = vmatprep.subr.mxu0 0.0
        %2447 = vmatpush2.msra.mxu0 0.0
        %2448 = vmatprep.subr.mxu0 0.0
        %2449 = vmatpush2.msra.mxu0 0.0
        %2450 = vmatprep.subr.mxu0 0.0
        %2451 = vmatpush2.msra.mxu0 0.0
        %2452 = vmatprep.subr.mxu0 0.0
        %2453 = vmatpush2.msra.mxu0 0.0
        %2454 = vmatprep.subr.mxu0 0.0
        %2455 = vmatpush2.msra.mxu0 0.0
        %2456 = vmatprep.subr.mxu0 0.0
        %2457 = vmatpush2.msra.mxu0 0.0
        %2458 = vmatprep.subr.mxu0 0.0
        %2459 = vmatpush2.msra.mxu0 0.0
        %2460 = vmatprep.subr.mxu0 0.0
        %2461 = vmatpush2.msra.mxu0 0.0
        %2462 = vmatprep.subr.mxu0 0.0
        %2463 = vmatpush2.msra.mxu0 0.0
        %2464 = vmatprep.subr.mxu0 0.0
        %2465 = vmatpush2.msra.mxu0 0.0
        %2466 = vmatprep.subr.mxu0 0.0
        %2467 = vmatpush2.msra.mxu0 0.0
        %2468 = vmatprep.subr.mxu0 0.0
        %2469 = vmatpush2.msra.mxu0 0.0
        %2470 = vmatprep.mubr.f32.mxu0 0.0
        %2471 = vmatmul.mubr.f32.gmra.mxu0 %v2401
        %v2472 = vpop.f32.mrf.mxu0
        %v2473 = vadd.f32 0.0, %v2472
        %v2474 = vpop.f32.mrf.mxu0
        %2475 = vmatprep.mubr.f32.mxu0 0.0
        %2476 = vmatmul.mubr.f32.gmra.mxu0 %v2404
        %v2477 = vpop.f32.mrf.mxu0
        %v2478 = vadd.f32 0.0, %v2477
        %v2479 = vpop.f32.mrf.mxu0
        %2480 = vdwg.mxu0
        %s2481 = scalar_lea.vmem [#allocation9], 32
        %v2482 = vld [vmem:[%s2481] sm:$0xff]
        %v2483 = vld [vmem:[%s2481 + $0x8] sm:$0xff]
        %v2484 = vld [vmem:[%s2481 + $0x10] sm:$0xff]
        %v2485 = vld [vmem:[%s2481 + $0x18] sm:$0xff]
        %v2487 = vsel %vm389, %v2473, 0
        %v2490 = vsel %vm389, %v2478, 0
        %2492 = vmatprep.subr.mxu0 0.0
        %2493 = vmatpush1.msra.mxu0 0.0
        %2494 = vmatprep.subr.mxu0 0.0
        %2495 = vmatpush1.msra.mxu0 0.0
        %2496 = vmatprep.subr.mxu0 0.0
        %2497 = vmatpush1.msra.mxu0 0.0
        %2498 = vmatprep.subr.mxu0 0.0
        %2499 = vmatpush1.msra.mxu0 0.0
        %2500 = vmatprep.subr.mxu0 0.0
        %2501 = vmatpush1.msra.mxu0 0.0
        %2502 = vmatprep.subr.mxu0 0.0
        %2503 = vmatpush1.msra.mxu0 0.0
        %2504 = vmatprep.subr.mxu0 0.0
        %2505 = vmatpush1.msra.mxu0 0.0
        %2506 = vmatprep.subr.mxu0 0.0
        %2507 = vmatpush1.msra.mxu0 0.0
        %2508 = vmatprep.subr.mxu0 0.0
        %2509 = vmatpush1.msra.mxu0 0.0
        %2510 = vmatprep.subr.mxu0 0.0
        %2511 = vmatpush1.msra.mxu0 0.0
        %2512 = vmatprep.subr.mxu0 0.0
        %2513 = vmatpush1.msra.mxu0 0.0
        %2514 = vmatprep.subr.mxu0 0.0
        %2515 = vmatpush1.msra.mxu0 0.0
        %2516 = vmatprep.subr.mxu0 0.0
        %2517 = vmatpush1.msra.mxu0 %v2485
        %2518 = vmatprep.subr.mxu0 0.0
        %2519 = vmatpush1.msra.mxu0 %v2484
        %2520 = vmatprep.subr.mxu0 0.0
        %2521 = vmatpush1.msra.mxu0 %v2483
        %2522 = vmatprep.subr.mxu0 0.0
        %2523 = vmatpush1.msra.mxu0 %v2482
        %2524 = vmatprep.subr.mxu0 0.0
        %2525 = vmatpush2.msra.mxu0 0.0
        %2526 = vmatprep.subr.mxu0 0.0
        %2527 = vmatpush2.msra.mxu0 0.0
        %2528 = vmatprep.subr.mxu0 0.0
        %2529 = vmatpush2.msra.mxu0 0.0
        %2530 = vmatprep.subr.mxu0 0.0
        %2531 = vmatpush2.msra.mxu0 0.0
        %2532 = vmatprep.subr.mxu0 0.0
        %2533 = vmatpush2.msra.mxu0 0.0
        %2534 = vmatprep.subr.mxu0 0.0
        %2535 = vmatpush2.msra.mxu0 0.0
        %2536 = vmatprep.subr.mxu0 0.0
        %2537 = vmatpush2.msra.mxu0 0.0
        %2538 = vmatprep.subr.mxu0 0.0
        %2539 = vmatpush2.msra.mxu0 0.0
        %2540 = vmatprep.subr.mxu0 0.0
        %2541 = vmatpush2.msra.mxu0 0.0
        %2542 = vmatprep.subr.mxu0 0.0
        %2543 = vmatpush2.msra.mxu0 0.0
        %2544 = vmatprep.subr.mxu0 0.0
        %2545 = vmatpush2.msra.mxu0 0.0
        %2546 = vmatprep.subr.mxu0 0.0
        %2547 = vmatpush2.msra.mxu0 0.0
        %2548 = vmatprep.subr.mxu0 0.0
        %2549 = vmatpush2.msra.mxu0 0.0
        %2550 = vmatprep.subr.mxu0 0.0
        %2551 = vmatpush2.msra.mxu0 0.0
        %2552 = vmatprep.subr.mxu0 0.0
        %2553 = vmatpush2.msra.mxu0 0.0
        %2554 = vmatprep.subr.mxu0 0.0
        %2555 = vmatpush2.msra.mxu0 0.0
        %2556 = vmatprep.mubr.f32.mxu0 0.0
        %2557 = vmatmul.mubr.f32.gmra.mxu0 %v2487
        %v2558 = vpop.f32.mrf.mxu0
        %v2559 = vadd.f32 0.0, %v2558
        %v2560 = vpop.f32.mrf.mxu0
        %2561 = vmatprep.mubr.f32.mxu0 0.0
        %2562 = vmatmul.mubr.f32.gmra.mxu0 %v2490
        %v2563 = vpop.f32.mrf.mxu0
        %v2564 = vadd.f32 0.0, %v2563
        %v2565 = vpop.f32.mrf.mxu0
        %2566 = vdwg.mxu0
        %v2568 = vsel %vm389, %v2385, 0
        %v2571 = vsel %vm389, %v2390, 0
        %2573 = vmatprep.subr.mxu0 0.0
        %2574 = vmatpush1.msra.mxu0 0.0
        %2575 = vmatprep.subr.mxu0 0.0
        %2576 = vmatpush1.msra.mxu0 0.0
        %2577 = vmatprep.subr.mxu0 0.0
        %2578 = vmatpush1.msra.mxu0 0.0
        %2579 = vmatprep.subr.mxu0 0.0
        %2580 = vmatpush1.msra.mxu0 0.0
        %2581 = vmatprep.subr.mxu0 0.0
        %2582 = vmatpush1.msra.mxu0 0.0
        %2583 = vmatprep.subr.mxu0 0.0
        %2584 = vmatpush1.msra.mxu0 0.0
        %2585 = vmatprep.subr.mxu0 0.0
        %2586 = vmatpush1.msra.mxu0 0.0
        %2587 = vmatprep.subr.mxu0 0.0
        %2588 = vmatpush1.msra.mxu0 0.0
        %2589 = vmatprep.subr.mxu0 0.0
        %2590 = vmatpush1.msra.mxu0 0.0
        %2591 = vmatprep.subr.mxu0 0.0
        %2592 = vmatpush1.msra.mxu0 0.0
        %2593 = vmatprep.subr.mxu0 0.0
        %2594 = vmatpush1.msra.mxu0 0.0
        %2595 = vmatprep.subr.mxu0 0.0
        %2596 = vmatpush1.msra.mxu0 0.0
        %2597 = vmatprep.subr.mxu0 0.0
        %2598 = vmatpush1.msra.mxu0 %v2396
        %2599 = vmatprep.subr.mxu0 0.0
        %2600 = vmatpush1.msra.mxu0 %v2395
        %2601 = vmatprep.subr.mxu0 0.0
        %2602 = vmatpush1.msra.mxu0 %v2394
        %2603 = vmatprep.subr.mxu0 0.0
        %2604 = vmatpush1.msra.mxu0 %v2393
        %2605 = vmatprep.subr.mxu0 0.0
        %2606 = vmatpush2.msra.mxu0 0.0
        %2607 = vmatprep.subr.mxu0 0.0
        %2608 = vmatpush2.msra.mxu0 0.0
        %2609 = vmatprep.subr.mxu0 0.0
        %2610 = vmatpush2.msra.mxu0 0.0
        %2611 = vmatprep.subr.mxu0 0.0
        %2612 = vmatpush2.msra.mxu0 0.0
        %2613 = vmatprep.subr.mxu0 0.0
        %2614 = vmatpush2.msra.mxu0 0.0
        %2615 = vmatprep.subr.mxu0 0.0
        %2616 = vmatpush2.msra.mxu0 0.0
        %2617 = vmatprep.subr.mxu0 0.0
        %2618 = vmatpush2.msra.mxu0 0.0
        %2619 = vmatprep.subr.mxu0 0.0
        %2620 = vmatpush2.msra.mxu0 0.0
        %2621 = vmatprep.subr.mxu0 0.0
        %2622 = vmatpush2.msra.mxu0 0.0
        %2623 = vmatprep.subr.mxu0 0.0
        %2624 = vmatpush2.msra.mxu0 0.0
        %2625 = vmatprep.subr.mxu0 0.0
        %2626 = vmatpush2.msra.mxu0 0.0
        %2627 = vmatprep.subr.mxu0 0.0
        %2628 = vmatpush2.msra.mxu0 0.0
        %2629 = vmatprep.subr.mxu0 0.0
        %2630 = vmatpush2.msra.mxu0 0.0
        %2631 = vmatprep.subr.mxu0 0.0
        %2632 = vmatpush2.msra.mxu0 0.0
        %2633 = vmatprep.subr.mxu0 0.0
        %2634 = vmatpush2.msra.mxu0 0.0
        %2635 = vmatprep.subr.mxu0 0.0
        %2636 = vmatpush2.msra.mxu0 0.0
        %2637 = vmatprep.mubr.f32.mxu0 0.0
        %2638 = vmatmul.mubr.f32.gmra.mxu0 %v2568
        %v2639 = vpop.f32.mrf.mxu0
        %v2640 = vadd.f32 %v2559, %v2639
        %v2641 = vpop.f32.mrf.mxu0
        %2642 = vmatprep.mubr.f32.mxu0 0.0
        %2643 = vmatmul.mubr.f32.gmra.mxu0 %v2571
        %v2644 = vpop.f32.mrf.mxu0
        %v2645 = vadd.f32 %v2564, %v2644
        %v2646 = vpop.f32.mrf.mxu0
        %2647 = vdwg.mxu0
        %s2648 = scalar_lea.vmem [#allocation7], 32
        %v2649 = vld [vmem:[%s2648] sm:$0xff]
        %v2650 = vld [vmem:[%s2648 + $0x8] sm:$0xff]
        %v2652 = vsel %vm519, %v2649, 0
        %v2655 = vsel %vm519, %v2650, 0
        %2657 = vmatprep.subr.mxu0 0.0
        %2658 = vmatpush1.msra.mxu0 0.0
        %2659 = vmatprep.subr.mxu0 0.0
        %2660 = vmatpush1.msra.mxu0 0.0
        %2661 = vmatprep.subr.mxu0 0.0
        %2662 = vmatpush1.msra.mxu0 0.0
        %2663 = vmatprep.subr.mxu0 0.0
        %2664 = vmatpush1.msra.mxu0 0.0
        %2665 = vmatprep.subr.mxu0 0.0
        %2666 = vmatpush1.msra.mxu0 0.0
        %2667 = vmatprep.subr.mxu0 0.0
        %2668 = vmatpush1.msra.mxu0 0.0
        %2669 = vmatprep.subr.mxu0 0.0
        %2670 = vmatpush1.msra.mxu0 0.0
        %2671 = vmatprep.subr.mxu0 0.0
        %2672 = vmatpush1.msra.mxu0 0.0
        %2673 = vmatprep.subr.mxu0 0.0
        %2674 = vmatpush1.msra.mxu0 %v2309
        %2675 = vmatprep.subr.mxu0 0.0
        %2676 = vmatpush1.msra.mxu0 %v2308
        %2677 = vmatprep.subr.mxu0 0.0
        %2678 = vmatpush1.msra.mxu0 %v2307
        %2679 = vmatprep.subr.mxu0 0.0
        %2680 = vmatpush1.msra.mxu0 %v2306
        %2681 = vmatprep.subr.mxu0 0.0
        %2682 = vmatpush1.msra.mxu0 %v2305
        %2683 = vmatprep.subr.mxu0 0.0
        %2684 = vmatpush1.msra.mxu0 %v2304
        %2685 = vmatprep.subr.mxu0 0.0
        %2686 = vmatpush1.msra.mxu0 %v2303
        %2687 = vmatprep.subr.mxu0 0.0
        %2688 = vmatpush1.msra.mxu0 %v2302
        %2689 = vmatprep.subr.mxu0 0.0
        %2690 = vmatpush2.msra.mxu0 0.0
        %2691 = vmatprep.subr.mxu0 0.0
        %2692 = vmatpush2.msra.mxu0 0.0
        %2693 = vmatprep.subr.mxu0 0.0
        %2694 = vmatpush2.msra.mxu0 0.0
        %2695 = vmatprep.subr.mxu0 0.0
        %2696 = vmatpush2.msra.mxu0 0.0
        %2697 = vmatprep.subr.mxu0 0.0
        %2698 = vmatpush2.msra.mxu0 0.0
        %2699 = vmatprep.subr.mxu0 0.0
        %2700 = vmatpush2.msra.mxu0 0.0
        %2701 = vmatprep.subr.mxu0 0.0
        %2702 = vmatpush2.msra.mxu0 0.0
        %2703 = vmatprep.subr.mxu0 0.0
        %2704 = vmatpush2.msra.mxu0 0.0
        %2705 = vmatprep.subr.mxu0 0.0
        %2706 = vmatpush2.msra.mxu0 0.0
        %2707 = vmatprep.subr.mxu0 0.0
        %2708 = vmatpush2.msra.mxu0 0.0
        %2709 = vmatprep.subr.mxu0 0.0
        %2710 = vmatpush2.msra.mxu0 0.0
        %2711 = vmatprep.subr.mxu0 0.0
        %2712 = vmatpush2.msra.mxu0 0.0
        %2713 = vmatprep.subr.mxu0 0.0
        %2714 = vmatpush2.msra.mxu0 0.0
        %2715 = vmatprep.subr.mxu0 0.0
        %2716 = vmatpush2.msra.mxu0 0.0
        %2717 = vmatprep.subr.mxu0 0.0
        %2718 = vmatpush2.msra.mxu0 0.0
        %2719 = vmatprep.subr.mxu0 0.0
        %2720 = vmatpush2.msra.mxu0 0.0
        %2721 = vmatprep.mubr.f32.mxu0 0.0
        %2722 = vmatmul.mubr.f32.gmra.mxu0 %v2652
        %v2723 = vpop.f32.mrf.mxu0
        %v2724 = vadd.f32 0.0, %v2723
        %v2725 = vpop.f32.mrf.mxu0
        %2726 = vmatprep.mubr.f32.mxu0 0.0
        %2727 = vmatmul.mubr.f32.gmra.mxu0 %v2655
        %v2728 = vpop.f32.mrf.mxu0
        %v2729 = vadd.f32 0.0, %v2728
        %v2730 = vpop.f32.mrf.mxu0
        %2731 = vdwg.mxu0
        %s2732 = scalar_lea.vmem [#allocation9], 64
        %v2733 = vld [vmem:[%s2732] sm:$0xff]
        %v2734 = vld [vmem:[%s2732 + $0x8] sm:$0xff]
        %v2735 = vld [vmem:[%s2732 + $0x10] sm:$0xff]
        %v2736 = vld [vmem:[%s2732 + $0x18] sm:$0xff]
        %v2738 = vsel %vm389, %v2724, 0
        %v2741 = vsel %vm389, %v2729, 0
        %2743 = vmatprep.subr.mxu0 0.0
        %2744 = vmatpush1.msra.mxu0 0.0
        %2745 = vmatprep.subr.mxu0 0.0
        %2746 = vmatpush1.msra.mxu0 0.0
        %2747 = vmatprep.subr.mxu0 0.0
        %2748 = vmatpush1.msra.mxu0 0.0
        %2749 = vmatprep.subr.mxu0 0.0
        %2750 = vmatpush1.msra.mxu0 0.0
        %2751 = vmatprep.subr.mxu0 0.0
        %2752 = vmatpush1.msra.mxu0 0.0
        %2753 = vmatprep.subr.mxu0 0.0
        %2754 = vmatpush1.msra.mxu0 0.0
        %2755 = vmatprep.subr.mxu0 0.0
        %2756 = vmatpush1.msra.mxu0 0.0
        %2757 = vmatprep.subr.mxu0 0.0
        %2758 = vmatpush1.msra.mxu0 0.0
        %2759 = vmatprep.subr.mxu0 0.0
        %2760 = vmatpush1.msra.mxu0 0.0
        %2761 = vmatprep.subr.mxu0 0.0
        %2762 = vmatpush1.msra.mxu0 0.0
        %2763 = vmatprep.subr.mxu0 0.0
        %2764 = vmatpush1.msra.mxu0 0.0
        %2765 = vmatprep.subr.mxu0 0.0
        %2766 = vmatpush1.msra.mxu0 0.0
        %2767 = vmatprep.subr.mxu0 0.0
        %2768 = vmatpush1.msra.mxu0 %v2736
        %2769 = vmatprep.subr.mxu0 0.0
        %2770 = vmatpush1.msra.mxu0 %v2735
        %2771 = vmatprep.subr.mxu0 0.0
        %2772 = vmatpush1.msra.mxu0 %v2734
        %2773 = vmatprep.subr.mxu0 0.0
        %2774 = vmatpush1.msra.mxu0 %v2733
        %2775 = vmatprep.subr.mxu0 0.0
        %2776 = vmatpush2.msra.mxu0 0.0
        %2777 = vmatprep.subr.mxu0 0.0
        %2778 = vmatpush2.msra.mxu0 0.0
        %2779 = vmatprep.subr.mxu0 0.0
        %2780 = vmatpush2.msra.mxu0 0.0
        %2781 = vmatprep.subr.mxu0 0.0
        %2782 = vmatpush2.msra.mxu0 0.0
        %2783 = vmatprep.subr.mxu0 0.0
        %2784 = vmatpush2.msra.mxu0 0.0
        %2785 = vmatprep.subr.mxu0 0.0
        %2786 = vmatpush2.msra.mxu0 0.0
        %2787 = vmatprep.subr.mxu0 0.0
        %2788 = vmatpush2.msra.mxu0 0.0
        %2789 = vmatprep.subr.mxu0 0.0
        %2790 = vmatpush2.msra.mxu0 0.0
        %2791 = vmatprep.subr.mxu0 0.0
        %2792 = vmatpush2.msra.mxu0 0.0
        %2793 = vmatprep.subr.mxu0 0.0
        %2794 = vmatpush2.msra.mxu0 0.0
        %2795 = vmatprep.subr.mxu0 0.0
        %2796 = vmatpush2.msra.mxu0 0.0
        %2797 = vmatprep.subr.mxu0 0.0
        %2798 = vmatpush2.msra.mxu0 0.0
        %2799 = vmatprep.subr.mxu0 0.0
        %2800 = vmatpush2.msra.mxu0 0.0
        %2801 = vmatprep.subr.mxu0 0.0
        %2802 = vmatpush2.msra.mxu0 0.0
        %2803 = vmatprep.subr.mxu0 0.0
        %2804 = vmatpush2.msra.mxu0 0.0
        %2805 = vmatprep.subr.mxu0 0.0
        %2806 = vmatpush2.msra.mxu0 0.0
        %2807 = vmatprep.mubr.f32.mxu0 0.0
        %2808 = vmatmul.mubr.f32.gmra.mxu0 %v2738
        %v2809 = vpop.f32.mrf.mxu0
        %v2810 = vadd.f32 0.0, %v2809
        %v2811 = vpop.f32.mrf.mxu0
        %2812 = vmatprep.mubr.f32.mxu0 0.0
        %2813 = vmatmul.mubr.f32.gmra.mxu0 %v2741
        %v2814 = vpop.f32.mrf.mxu0
        %v2815 = vadd.f32 0.0, %v2814
        %v2816 = vpop.f32.mrf.mxu0
        %2817 = vdwg.mxu0
        %v2818 = vadd.f32 %v2640, %v2810
        %v2819 = vadd.f32 %v2645, %v2815
        %s2820 = scalar_lea.vmem [#allocation7], 48
        %v2821 = vld [vmem:[%s2820] sm:$0xff]
        %v2822 = vld [vmem:[%s2820 + $0x8] sm:$0xff]
        %v2824 = vsel %vm519, %v2821, 0
        %v2827 = vsel %vm519, %v2822, 0
        %2829 = vmatprep.subr.mxu0 0.0
        %2830 = vmatpush1.msra.mxu0 0.0
        %2831 = vmatprep.subr.mxu0 0.0
        %2832 = vmatpush1.msra.mxu0 0.0
        %2833 = vmatprep.subr.mxu0 0.0
        %2834 = vmatpush1.msra.mxu0 0.0
        %2835 = vmatprep.subr.mxu0 0.0
        %2836 = vmatpush1.msra.mxu0 0.0
        %2837 = vmatprep.subr.mxu0 0.0
        %2838 = vmatpush1.msra.mxu0 0.0
        %2839 = vmatprep.subr.mxu0 0.0
        %2840 = vmatpush1.msra.mxu0 0.0
        %2841 = vmatprep.subr.mxu0 0.0
        %2842 = vmatpush1.msra.mxu0 0.0
        %2843 = vmatprep.subr.mxu0 0.0
        %2844 = vmatpush1.msra.mxu0 0.0
        %2845 = vmatprep.subr.mxu0 0.0
        %2846 = vmatpush1.msra.mxu0 %v2309
        %2847 = vmatprep.subr.mxu0 0.0
        %2848 = vmatpush1.msra.mxu0 %v2308
        %2849 = vmatprep.subr.mxu0 0.0
        %2850 = vmatpush1.msra.mxu0 %v2307
        %2851 = vmatprep.subr.mxu0 0.0
        %2852 = vmatpush1.msra.mxu0 %v2306
        %2853 = vmatprep.subr.mxu0 0.0
        %2854 = vmatpush1.msra.mxu0 %v2305
        %2855 = vmatprep.subr.mxu0 0.0
        %2856 = vmatpush1.msra.mxu0 %v2304
        %2857 = vmatprep.subr.mxu0 0.0
        %2858 = vmatpush1.msra.mxu0 %v2303
        %2859 = vmatprep.subr.mxu0 0.0
        %2860 = vmatpush1.msra.mxu0 %v2302
        %2861 = vmatprep.subr.mxu0 0.0
        %2862 = vmatpush2.msra.mxu0 0.0
        %2863 = vmatprep.subr.mxu0 0.0
        %2864 = vmatpush2.msra.mxu0 0.0
        %2865 = vmatprep.subr.mxu0 0.0
        %2866 = vmatpush2.msra.mxu0 0.0
        %2867 = vmatprep.subr.mxu0 0.0
        %2868 = vmatpush2.msra.mxu0 0.0
        %2869 = vmatprep.subr.mxu0 0.0
        %2870 = vmatpush2.msra.mxu0 0.0
        %2871 = vmatprep.subr.mxu0 0.0
        %2872 = vmatpush2.msra.mxu0 0.0
        %2873 = vmatprep.subr.mxu0 0.0
        %2874 = vmatpush2.msra.mxu0 0.0
        %2875 = vmatprep.subr.mxu0 0.0
        %2876 = vmatpush2.msra.mxu0 0.0
        %2877 = vmatprep.subr.mxu0 0.0
        %2878 = vmatpush2.msra.mxu0 0.0
        %2879 = vmatprep.subr.mxu0 0.0
        %2880 = vmatpush2.msra.mxu0 0.0
        %2881 = vmatprep.subr.mxu0 0.0
        %2882 = vmatpush2.msra.mxu0 0.0
        %2883 = vmatprep.subr.mxu0 0.0
        %2884 = vmatpush2.msra.mxu0 0.0
        %2885 = vmatprep.subr.mxu0 0.0
        %2886 = vmatpush2.msra.mxu0 0.0
        %2887 = vmatprep.subr.mxu0 0.0
        %2888 = vmatpush2.msra.mxu0 0.0
        %2889 = vmatprep.subr.mxu0 0.0
        %2890 = vmatpush2.msra.mxu0 0.0
        %2891 = vmatprep.subr.mxu0 0.0
        %2892 = vmatpush2.msra.mxu0 0.0
        %2893 = vmatprep.mubr.f32.mxu0 0.0
        %2894 = vmatmul.mubr.f32.gmra.mxu0 %v2824
        %v2895 = vpop.f32.mrf.mxu0
        %v2896 = vadd.f32 0.0, %v2895
        %v2897 = vpop.f32.mrf.mxu0
        %2898 = vmatprep.mubr.f32.mxu0 0.0
        %2899 = vmatmul.mubr.f32.gmra.mxu0 %v2827
        %v2900 = vpop.f32.mrf.mxu0
        %v2901 = vadd.f32 0.0, %v2900
        %v2902 = vpop.f32.mrf.mxu0
        %2903 = vdwg.mxu0
        %s2904 = scalar_lea.vmem [#allocation9], 96
        %v2905 = vld [vmem:[%s2904] sm:$0xff]
        %v2906 = vld [vmem:[%s2904 + $0x8] sm:$0xff]
        %v2907 = vld [vmem:[%s2904 + $0x10] sm:$0xff]
        %v2908 = vld [vmem:[%s2904 + $0x18] sm:$0xff]
        %v2910 = vsel %vm389, %v2896, 0
        %v2913 = vsel %vm389, %v2901, 0
        %2915 = vmatprep.subr.mxu0 0.0
        %2916 = vmatpush1.msra.mxu0 0.0
        %2917 = vmatprep.subr.mxu0 0.0
        %2918 = vmatpush1.msra.mxu0 0.0
        %2919 = vmatprep.subr.mxu0 0.0
        %2920 = vmatpush1.msra.mxu0 0.0
        %2921 = vmatprep.subr.mxu0 0.0
        %2922 = vmatpush1.msra.mxu0 0.0
        %2923 = vmatprep.subr.mxu0 0.0
        %2924 = vmatpush1.msra.mxu0 0.0
        %2925 = vmatprep.subr.mxu0 0.0
        %2926 = vmatpush1.msra.mxu0 0.0
        %2927 = vmatprep.subr.mxu0 0.0
        %2928 = vmatpush1.msra.mxu0 0.0
        %2929 = vmatprep.subr.mxu0 0.0
        %2930 = vmatpush1.msra.mxu0 0.0
        %2931 = vmatprep.subr.mxu0 0.0
        %2932 = vmatpush1.msra.mxu0 0.0
        %2933 = vmatprep.subr.mxu0 0.0
        %2934 = vmatpush1.msra.mxu0 0.0
        %2935 = vmatprep.subr.mxu0 0.0
        %2936 = vmatpush1.msra.mxu0 0.0
        %2937 = vmatprep.subr.mxu0 0.0
        %2938 = vmatpush1.msra.mxu0 0.0
        %2939 = vmatprep.subr.mxu0 0.0
        %2940 = vmatpush1.msra.mxu0 %v2908
        %2941 = vmatprep.subr.mxu0 0.0
        %2942 = vmatpush1.msra.mxu0 %v2907
        %2943 = vmatprep.subr.mxu0 0.0
        %2944 = vmatpush1.msra.mxu0 %v2906
        %2945 = vmatprep.subr.mxu0 0.0
        %2946 = vmatpush1.msra.mxu0 %v2905
        %2947 = vmatprep.subr.mxu0 0.0
        %2948 = vmatpush2.msra.mxu0 0.0
        %2949 = vmatprep.subr.mxu0 0.0
        %2950 = vmatpush2.msra.mxu0 0.0
        %2951 = vmatprep.subr.mxu0 0.0
        %2952 = vmatpush2.msra.mxu0 0.0
        %2953 = vmatprep.subr.mxu0 0.0
        %2954 = vmatpush2.msra.mxu0 0.0
        %2955 = vmatprep.subr.mxu0 0.0
        %2956 = vmatpush2.msra.mxu0 0.0
        %2957 = vmatprep.subr.mxu0 0.0
        %2958 = vmatpush2.msra.mxu0 0.0
        %2959 = vmatprep.subr.mxu0 0.0
        %2960 = vmatpush2.msra.mxu0 0.0
        %2961 = vmatprep.subr.mxu0 0.0
        %2962 = vmatpush2.msra.mxu0 0.0
        %2963 = vmatprep.subr.mxu0 0.0
        %2964 = vmatpush2.msra.mxu0 0.0
        %2965 = vmatprep.subr.mxu0 0.0
        %2966 = vmatpush2.msra.mxu0 0.0
        %2967 = vmatprep.subr.mxu0 0.0
        %2968 = vmatpush2.msra.mxu0 0.0
        %2969 = vmatprep.subr.mxu0 0.0
        %2970 = vmatpush2.msra.mxu0 0.0
        %2971 = vmatprep.subr.mxu0 0.0
        %2972 = vmatpush2.msra.mxu0 0.0
        %2973 = vmatprep.subr.mxu0 0.0
        %2974 = vmatpush2.msra.mxu0 0.0
        %2975 = vmatprep.subr.mxu0 0.0
        %2976 = vmatpush2.msra.mxu0 0.0
        %2977 = vmatprep.subr.mxu0 0.0
        %2978 = vmatpush2.msra.mxu0 0.0
        %2979 = vmatprep.mubr.f32.mxu0 0.0
        %2980 = vmatmul.mubr.f32.gmra.mxu0 %v2910
        %v2981 = vpop.f32.mrf.mxu0
        %v2982 = vadd.f32 0.0, %v2981
        %v2983 = vpop.f32.mrf.mxu0
        %2984 = vmatprep.mubr.f32.mxu0 0.0
        %2985 = vmatmul.mubr.f32.gmra.mxu0 %v2913
        %v2986 = vpop.f32.mrf.mxu0
        %v2987 = vadd.f32 0.0, %v2986
        %v2988 = vpop.f32.mrf.mxu0
        %2989 = vdwg.mxu0
        %v2990 = vadd.f32 %v2818, %v2982
        %v2991 = vadd.f32 %v2819, %v2987
        %v2992 = vld [vmem:[%s5] sm:$0xff]
        %v2993 = vld [vmem:[%s5 + $0x8] sm:$0xff]
        %vm2994 = vcmask 130048
        %v2996 = vsel %vm2994, %v2992, 0
        %v2999 = vsel %vm2994, %v2993, 0
        %3001 = vmatprep.subr.mxu0 0.0
        %3002 = vmatpush1.msra.mxu0 0.0
        %3003 = vmatprep.subr.mxu0 0.0
        %3004 = vmatpush1.msra.mxu0 0.0
        %3005 = vmatprep.subr.mxu0 0.0
        %3006 = vmatpush1.msra.mxu0 0.0
        %3007 = vmatprep.subr.mxu0 0.0
        %3008 = vmatpush1.msra.mxu0 0.0
        %3009 = vmatprep.subr.mxu0 0.0
        %3010 = vmatpush1.msra.mxu0 0.0
        %3011 = vmatprep.subr.mxu0 0.0
        %3012 = vmatpush1.msra.mxu0 0.0
        %3013 = vmatprep.subr.mxu0 0.0
        %3014 = vmatpush1.msra.mxu0 0.0
        %3015 = vmatprep.subr.mxu0 0.0
        %3016 = vmatpush1.msra.mxu0 0.0
        %3017 = vmatprep.subr.mxu0 0.0
        %3018 = vmatpush1.msra.mxu0 0.0
        %3019 = vmatprep.subr.mxu0 0.0
        %3020 = vmatpush1.msra.mxu0 0.0
        %3021 = vmatprep.subr.mxu0 0.0
        %3022 = vmatpush1.msra.mxu0 0.0
        %3023 = vmatprep.subr.mxu0 0.0
        %3024 = vmatpush1.msra.mxu0 0.0
        %3025 = vmatprep.subr.mxu0 0.0
        %3026 = vmatpush1.msra.mxu0 0.0
        %3027 = vmatprep.subr.mxu0 0.0
        %3028 = vmatpush1.msra.mxu0 0.0
        %3029 = vmatprep.subr.mxu0 0.0
        %3030 = vmatpush1.msra.mxu0 %v2991
        %3031 = vmatprep.subr.mxu0 0.0
        %3032 = vmatpush1.msra.mxu0 %v2990
        %3033 = vmatprep.subr.mxu0 0.0
        %3034 = vmatpush2.msra.mxu0 0.0
        %3035 = vmatprep.subr.mxu0 0.0
        %3036 = vmatpush2.msra.mxu0 0.0
        %3037 = vmatprep.subr.mxu0 0.0
        %3038 = vmatpush2.msra.mxu0 0.0
        %3039 = vmatprep.subr.mxu0 0.0
        %3040 = vmatpush2.msra.mxu0 0.0
        %3041 = vmatprep.subr.mxu0 0.0
        %3042 = vmatpush2.msra.mxu0 0.0
        %3043 = vmatprep.subr.mxu0 0.0
        %3044 = vmatpush2.msra.mxu0 0.0
        %3045 = vmatprep.subr.mxu0 0.0
        %3046 = vmatpush2.msra.mxu0 0.0
        %3047 = vmatprep.subr.mxu0 0.0
        %3048 = vmatpush2.msra.mxu0 0.0
        %3049 = vmatprep.subr.mxu0 0.0
        %3050 = vmatpush2.msra.mxu0 0.0
        %3051 = vmatprep.subr.mxu0 0.0
        %3052 = vmatpush2.msra.mxu0 0.0
        %3053 = vmatprep.subr.mxu0 0.0
        %3054 = vmatpush2.msra.mxu0 0.0
        %3055 = vmatprep.subr.mxu0 0.0
        %3056 = vmatpush2.msra.mxu0 0.0
        %3057 = vmatprep.subr.mxu0 0.0
        %3058 = vmatpush2.msra.mxu0 0.0
        %3059 = vmatprep.subr.mxu0 0.0
        %3060 = vmatpush2.msra.mxu0 0.0
        %3061 = vmatprep.subr.mxu0 0.0
        %3062 = vmatpush2.msra.mxu0 0.0
        %3063 = vmatprep.subr.mxu0 0.0
        %3064 = vmatpush2.msra.mxu0 0.0
        %3065 = vmatprep.mubr.f32.mxu0 0.0
        %3066 = vmatmul.mubr.f32.gmra.mxu0 %v2996
        %v3067 = vpop.f32.mrf.mxu0
        %v3068 = vadd.f32 0.0, %v3067
        %v3069 = vpop.f32.mrf.mxu0
        %3070 = vmatprep.mubr.f32.mxu0 0.0
        %3071 = vmatmul.mubr.f32.gmra.mxu0 %v2999
        %v3072 = vpop.f32.mrf.mxu0
        %v3073 = vadd.f32 0.0, %v3072
        %v3074 = vpop.f32.mrf.mxu0
        %3075 = vdwg.mxu0
        %v3076 = vld [vmem:[#allocation10] sm:$0xff]
        %v3077 = vld [vmem:[#allocation10 + $0x8] sm:$0xff]
        %v3078 = vld [vmem:[#allocation10 + $0x10] sm:$0xff]
        %v3079 = vld [vmem:[#allocation10 + $0x18] sm:$0xff]
        %v3080 = vld [vmem:[#allocation10 + $0x20] sm:$0xff]
        %v3081 = vld [vmem:[#allocation10 + $0x28] sm:$0xff]
        %v3082 = vld [vmem:[#allocation10 + $0x30] sm:$0xff]
        %v3083 = vld [vmem:[#allocation10 + $0x38] sm:$0xff]
        %v3084 = vld [vmem:[#allocation10 + $0x40] sm:$0xff]
        %v3085 = vld [vmem:[#allocation10 + $0x48] sm:$0xff]
        %v3086 = vld [vmem:[#allocation10 + $0x50] sm:$0xff]
        %v3087 = vld [vmem:[#allocation10 + $0x58] sm:$0xff]
        %v3088 = vld [vmem:[#allocation10 + $0x60] sm:$0xff]
        %v3089 = vld [vmem:[#allocation10 + $0x68] sm:$0xff]
        %v3090 = vld [vmem:[#allocation10 + $0x70] sm:$0xff]
        %v3091 = vld [vmem:[#allocation10 + $0x78] sm:$0xff]
        %s3092 = scalar_lea.vmem %s5, 16
        %v3093 = vld [vmem:[%s3092] sm:$0xff]
        %v3094 = vld [vmem:[%s3092 + $0x8] sm:$0xff]
        %v3096 = vsel %vm2994, %v3093, 0
        %v3099 = vsel %vm2994, %v3094, 0
        %3101 = vmatprep.subr.mxu0 0.0
        %3102 = vmatpush1.msra.mxu0 0.0
        %3103 = vmatprep.subr.mxu0 0.0
        %3104 = vmatpush1.msra.mxu0 0.0
        %3105 = vmatprep.subr.mxu0 0.0
        %3106 = vmatpush1.msra.mxu0 0.0
        %3107 = vmatprep.subr.mxu0 0.0
        %3108 = vmatpush1.msra.mxu0 0.0
        %3109 = vmatprep.subr.mxu0 0.0
        %3110 = vmatpush1.msra.mxu0 0.0
        %3111 = vmatprep.subr.mxu0 0.0
        %3112 = vmatpush1.msra.mxu0 0.0
        %3113 = vmatprep.subr.mxu0 0.0
        %3114 = vmatpush1.msra.mxu0 0.0
        %3115 = vmatprep.subr.mxu0 0.0
        %3116 = vmatpush1.msra.mxu0 0.0
        %3117 = vmatprep.subr.mxu0 0.0
        %3118 = vmatpush1.msra.mxu0 0.0
        %3119 = vmatprep.subr.mxu0 0.0
        %3120 = vmatpush1.msra.mxu0 0.0
        %3121 = vmatprep.subr.mxu0 0.0
        %3122 = vmatpush1.msra.mxu0 0.0
        %3123 = vmatprep.subr.mxu0 0.0
        %3124 = vmatpush1.msra.mxu0 0.0
        %3125 = vmatprep.subr.mxu0 0.0
        %3126 = vmatpush1.msra.mxu0 0.0
        %3127 = vmatprep.subr.mxu0 0.0
        %3128 = vmatpush1.msra.mxu0 0.0
        %3129 = vmatprep.subr.mxu0 0.0
        %3130 = vmatpush1.msra.mxu0 %v2991
        %3131 = vmatprep.subr.mxu0 0.0
        %3132 = vmatpush1.msra.mxu0 %v2990
        %3133 = vmatprep.subr.mxu0 0.0
        %3134 = vmatpush2.msra.mxu0 0.0
        %3135 = vmatprep.subr.mxu0 0.0
        %3136 = vmatpush2.msra.mxu0 0.0
        %3137 = vmatprep.subr.mxu0 0.0
        %3138 = vmatpush2.msra.mxu0 0.0
        %3139 = vmatprep.subr.mxu0 0.0
        %3140 = vmatpush2.msra.mxu0 0.0
        %3141 = vmatprep.subr.mxu0 0.0
        %3142 = vmatpush2.msra.mxu0 0.0
        %3143 = vmatprep.subr.mxu0 0.0
        %3144 = vmatpush2.msra.mxu0 0.0
        %3145 = vmatprep.subr.mxu0 0.0
        %3146 = vmatpush2.msra.mxu0 0.0
        %3147 = vmatprep.subr.mxu0 0.0
        %3148 = vmatpush2.msra.mxu0 0.0
        %3149 = vmatprep.subr.mxu0 0.0
        %3150 = vmatpush2.msra.mxu0 0.0
        %3151 = vmatprep.subr.mxu0 0.0
        %3152 = vmatpush2.msra.mxu0 0.0
        %3153 = vmatprep.subr.mxu0 0.0
        %3154 = vmatpush2.msra.mxu0 0.0
        %3155 = vmatprep.subr.mxu0 0.0
        %3156 = vmatpush2.msra.mxu0 0.0
        %3157 = vmatprep.subr.mxu0 0.0
        %3158 = vmatpush2.msra.mxu0 0.0
        %3159 = vmatprep.subr.mxu0 0.0
        %3160 = vmatpush2.msra.mxu0 0.0
        %3161 = vmatprep.subr.mxu0 0.0
        %3162 = vmatpush2.msra.mxu0 0.0
        %3163 = vmatprep.subr.mxu0 0.0
        %3164 = vmatpush2.msra.mxu0 0.0
        %3165 = vmatprep.mubr.f32.mxu0 0.0
        %3166 = vmatmul.mubr.f32.gmra.mxu0 %v3096
        %v3167 = vpop.f32.mrf.mxu0
        %v3168 = vadd.f32 0.0, %v3167
        %v3169 = vpop.f32.mrf.mxu0
        %3170 = vmatprep.mubr.f32.mxu0 0.0
        %3171 = vmatmul.mubr.f32.gmra.mxu0 %v3099
        %v3172 = vpop.f32.mrf.mxu0
        %v3173 = vadd.f32 0.0, %v3172
        %v3174 = vpop.f32.mrf.mxu0
        %3175 = vdwg.mxu0
        %s3176 = scalar_lea.vmem [#allocation10], 128
        %v3177 = vld [vmem:[%s3176] sm:$0xff]
        %v3178 = vld [vmem:[%s3176 + $0x8] sm:$0xff]
        %v3179 = vld [vmem:[%s3176 + $0x10] sm:$0xff]
        %v3180 = vld [vmem:[%s3176 + $0x18] sm:$0xff]
        %v3181 = vld [vmem:[%s3176 + $0x20] sm:$0xff]
        %v3182 = vld [vmem:[%s3176 + $0x28] sm:$0xff]
        %v3183 = vld [vmem:[%s3176 + $0x30] sm:$0xff]
        %v3184 = vld [vmem:[%s3176 + $0x38] sm:$0xff]
        %v3185 = vld [vmem:[%s3176 + $0x40] sm:$0xff]
        %v3186 = vld [vmem:[%s3176 + $0x48] sm:$0xff]
        %v3187 = vld [vmem:[%s3176 + $0x50] sm:$0xff]
        %v3188 = vld [vmem:[%s3176 + $0x58] sm:$0xff]
        %v3189 = vld [vmem:[%s3176 + $0x60] sm:$0xff]
        %v3190 = vld [vmem:[%s3176 + $0x68] sm:$0xff]
        %v3191 = vld [vmem:[%s3176 + $0x70] sm:$0xff]
        %v3192 = vld [vmem:[%s3176 + $0x78] sm:$0xff]
        %3193 = vmatprep.subr.mxu0 0.0
        %3194 = vmatpush1.msra.mxu0 %v3192
        %3195 = vmatprep.subr.mxu0 0.0
        %3196 = vmatpush1.msra.mxu0 %v3191
        %3197 = vmatprep.subr.mxu0 0.0
        %3198 = vmatpush1.msra.mxu0 %v3190
        %3199 = vmatprep.subr.mxu0 0.0
        %3200 = vmatpush1.msra.mxu0 %v3189
        %3201 = vmatprep.subr.mxu0 0.0
        %3202 = vmatpush1.msra.mxu0 %v3188
        %3203 = vmatprep.subr.mxu0 0.0
        %3204 = vmatpush1.msra.mxu0 %v3187
        %3205 = vmatprep.subr.mxu0 0.0
        %3206 = vmatpush1.msra.mxu0 %v3186
        %3207 = vmatprep.subr.mxu0 0.0
        %3208 = vmatpush1.msra.mxu0 %v3185
        %3209 = vmatprep.subr.mxu0 0.0
        %3210 = vmatpush1.msra.mxu0 %v3184
        %3211 = vmatprep.subr.mxu0 0.0
        %3212 = vmatpush1.msra.mxu0 %v3183
        %3213 = vmatprep.subr.mxu0 0.0
        %3214 = vmatpush1.msra.mxu0 %v3182
        %3215 = vmatprep.subr.mxu0 0.0
        %3216 = vmatpush1.msra.mxu0 %v3181
        %3217 = vmatprep.subr.mxu0 0.0
        %3218 = vmatpush1.msra.mxu0 %v3180
        %3219 = vmatprep.subr.mxu0 0.0
        %3220 = vmatpush1.msra.mxu0 %v3179
        %3221 = vmatprep.subr.mxu0 0.0
        %3222 = vmatpush1.msra.mxu0 %v3178
        %3223 = vmatprep.subr.mxu0 0.0
        %3224 = vmatpush1.msra.mxu0 %v3177
        %3225 = vmatprep.subr.mxu0 0.0
        %3226 = vmatpush2.msra.mxu0 0.0
        %3227 = vmatprep.subr.mxu0 0.0
        %3228 = vmatpush2.msra.mxu0 0.0
        %3229 = vmatprep.subr.mxu0 0.0
        %3230 = vmatpush2.msra.mxu0 0.0
        %3231 = vmatprep.subr.mxu0 0.0
        %3232 = vmatpush2.msra.mxu0 0.0
        %3233 = vmatprep.subr.mxu0 0.0
        %3234 = vmatpush2.msra.mxu0 0.0
        %3235 = vmatprep.subr.mxu0 0.0
        %3236 = vmatpush2.msra.mxu0 0.0
        %3237 = vmatprep.subr.mxu0 0.0
        %3238 = vmatpush2.msra.mxu0 0.0
        %3239 = vmatprep.subr.mxu0 0.0
        %3240 = vmatpush2.msra.mxu0 0.0
        %3241 = vmatprep.subr.mxu0 0.0
        %3242 = vmatpush2.msra.mxu0 0.0
        %3243 = vmatprep.subr.mxu0 0.0
        %3244 = vmatpush2.msra.mxu0 0.0
        %3245 = vmatprep.subr.mxu0 0.0
        %3246 = vmatpush2.msra.mxu0 0.0
        %3247 = vmatprep.subr.mxu0 0.0
        %3248 = vmatpush2.msra.mxu0 0.0
        %3249 = vmatprep.subr.mxu0 0.0
        %3250 = vmatpush2.msra.mxu0 0.0
        %3251 = vmatprep.subr.mxu0 0.0
        %3252 = vmatpush2.msra.mxu0 0.0
        %3253 = vmatprep.subr.mxu0 0.0
        %3254 = vmatpush2.msra.mxu0 0.0
        %3255 = vmatprep.subr.mxu0 0.0
        %3256 = vmatpush2.msra.mxu0 0.0
        %3257 = vmatprep.mubr.f32.mxu0 0.0
        %3258 = vmatmul.mubr.f32.gmra.mxu0 %v3168
        %v3259 = vpop.f32.mrf.mxu0
        %v3260 = vadd.f32 0.0, %v3259
        %v3261 = vpop.f32.mrf.mxu0
        %3262 = vmatprep.mubr.f32.mxu0 0.0
        %3263 = vmatmul.mubr.f32.gmra.mxu0 %v3173
        %v3264 = vpop.f32.mrf.mxu0
        %v3265 = vadd.f32 0.0, %v3264
        %v3266 = vpop.f32.mrf.mxu0
        %3267 = vdwg.mxu0
        %3268 = vmatprep.subr.mxu0 0.0
        %3269 = vmatpush1.msra.mxu0 %v3091
        %3270 = vmatprep.subr.mxu0 0.0
        %3271 = vmatpush1.msra.mxu0 %v3090
        %3272 = vmatprep.subr.mxu0 0.0
        %3273 = vmatpush1.msra.mxu0 %v3089
        %3274 = vmatprep.subr.mxu0 0.0
        %3275 = vmatpush1.msra.mxu0 %v3088
        %3276 = vmatprep.subr.mxu0 0.0
        %3277 = vmatpush1.msra.mxu0 %v3087
        %3278 = vmatprep.subr.mxu0 0.0
        %3279 = vmatpush1.msra.mxu0 %v3086
        %3280 = vmatprep.subr.mxu0 0.0
        %3281 = vmatpush1.msra.mxu0 %v3085
        %3282 = vmatprep.subr.mxu0 0.0
        %3283 = vmatpush1.msra.mxu0 %v3084
        %3284 = vmatprep.subr.mxu0 0.0
        %3285 = vmatpush1.msra.mxu0 %v3083
        %3286 = vmatprep.subr.mxu0 0.0
        %3287 = vmatpush1.msra.mxu0 %v3082
        %3288 = vmatprep.subr.mxu0 0.0
        %3289 = vmatpush1.msra.mxu0 %v3081
        %3290 = vmatprep.subr.mxu0 0.0
        %3291 = vmatpush1.msra.mxu0 %v3080
        %3292 = vmatprep.subr.mxu0 0.0
        %3293 = vmatpush1.msra.mxu0 %v3079
        %3294 = vmatprep.subr.mxu0 0.0
        %3295 = vmatpush1.msra.mxu0 %v3078
        %3296 = vmatprep.subr.mxu0 0.0
        %3297 = vmatpush1.msra.mxu0 %v3077
        %3298 = vmatprep.subr.mxu0 0.0
        %3299 = vmatpush1.msra.mxu0 %v3076
        %3300 = vmatprep.subr.mxu0 0.0
        %3301 = vmatpush2.msra.mxu0 0.0
        %3302 = vmatprep.subr.mxu0 0.0
        %3303 = vmatpush2.msra.mxu0 0.0
        %3304 = vmatprep.subr.mxu0 0.0
        %3305 = vmatpush2.msra.mxu0 0.0
        %3306 = vmatprep.subr.mxu0 0.0
        %3307 = vmatpush2.msra.mxu0 0.0
        %3308 = vmatprep.subr.mxu0 0.0
        %3309 = vmatpush2.msra.mxu0 0.0
        %3310 = vmatprep.subr.mxu0 0.0
        %3311 = vmatpush2.msra.mxu0 0.0
        %3312 = vmatprep.subr.mxu0 0.0
        %3313 = vmatpush2.msra.mxu0 0.0
        %3314 = vmatprep.subr.mxu0 0.0
        %3315 = vmatpush2.msra.mxu0 0.0
        %3316 = vmatprep.subr.mxu0 0.0
        %3317 = vmatpush2.msra.mxu0 0.0
        %3318 = vmatprep.subr.mxu0 0.0
        %3319 = vmatpush2.msra.mxu0 0.0
        %3320 = vmatprep.subr.mxu0 0.0
        %3321 = vmatpush2.msra.mxu0 0.0
        %3322 = vmatprep.subr.mxu0 0.0
        %3323 = vmatpush2.msra.mxu0 0.0
        %3324 = vmatprep.subr.mxu0 0.0
        %3325 = vmatpush2.msra.mxu0 0.0
        %3326 = vmatprep.subr.mxu0 0.0
        %3327 = vmatpush2.msra.mxu0 0.0
        %3328 = vmatprep.subr.mxu0 0.0
        %3329 = vmatpush2.msra.mxu0 0.0
        %3330 = vmatprep.subr.mxu0 0.0
        %3331 = vmatpush2.msra.mxu0 0.0
        %3332 = vmatprep.mubr.f32.mxu0 0.0
        %3333 = vmatmul.mubr.f32.gmra.mxu0 %v3068
        %v3334 = vpop.f32.mrf.mxu0
        %v3335 = vadd.f32 %v3260, %v3334
        %v3336 = vpop.f32.mrf.mxu0
        %3337 = vmatprep.mubr.f32.mxu0 0.0
        %3338 = vmatmul.mubr.f32.gmra.mxu0 %v3073
        %v3339 = vpop.f32.mrf.mxu0
        %v3340 = vadd.f32 %v3265, %v3339
        %v3341 = vpop.f32.mrf.mxu0
        %3342 = vdwg.mxu0
        %s3343 = scalar_lea.vmem %s5, 32
        %v3344 = vld [vmem:[%s3343] sm:$0xff]
        %v3345 = vld [vmem:[%s3343 + $0x8] sm:$0xff]
        %v3347 = vsel %vm2994, %v3344, 0
        %v3350 = vsel %vm2994, %v3345, 0
        %3352 = vmatprep.subr.mxu0 0.0
        %3353 = vmatpush1.msra.mxu0 0.0
        %3354 = vmatprep.subr.mxu0 0.0
        %3355 = vmatpush1.msra.mxu0 0.0
        %3356 = vmatprep.subr.mxu0 0.0
        %3357 = vmatpush1.msra.mxu0 0.0
        %3358 = vmatprep.subr.mxu0 0.0
        %3359 = vmatpush1.msra.mxu0 0.0
        %3360 = vmatprep.subr.mxu0 0.0
        %3361 = vmatpush1.msra.mxu0 0.0
        %3362 = vmatprep.subr.mxu0 0.0
        %3363 = vmatpush1.msra.mxu0 0.0
        %3364 = vmatprep.subr.mxu0 0.0
        %3365 = vmatpush1.msra.mxu0 0.0
        %3366 = vmatprep.subr.mxu0 0.0
        %3367 = vmatpush1.msra.mxu0 0.0
        %3368 = vmatprep.subr.mxu0 0.0
        %3369 = vmatpush1.msra.mxu0 0.0
        %3370 = vmatprep.subr.mxu0 0.0
        %3371 = vmatpush1.msra.mxu0 0.0
        %3372 = vmatprep.subr.mxu0 0.0
        %3373 = vmatpush1.msra.mxu0 0.0
        %3374 = vmatprep.subr.mxu0 0.0
        %3375 = vmatpush1.msra.mxu0 0.0
        %3376 = vmatprep.subr.mxu0 0.0
        %3377 = vmatpush1.msra.mxu0 0.0
        %3378 = vmatprep.subr.mxu0 0.0
        %3379 = vmatpush1.msra.mxu0 0.0
        %3380 = vmatprep.subr.mxu0 0.0
        %3381 = vmatpush1.msra.mxu0 %v2991
        %3382 = vmatprep.subr.mxu0 0.0
        %3383 = vmatpush1.msra.mxu0 %v2990
        %3384 = vmatprep.subr.mxu0 0.0
        %3385 = vmatpush2.msra.mxu0 0.0
        %3386 = vmatprep.subr.mxu0 0.0
        %3387 = vmatpush2.msra.mxu0 0.0
        %3388 = vmatprep.subr.mxu0 0.0
        %3389 = vmatpush2.msra.mxu0 0.0
        %3390 = vmatprep.subr.mxu0 0.0
        %3391 = vmatpush2.msra.mxu0 0.0
        %3392 = vmatprep.subr.mxu0 0.0
        %3393 = vmatpush2.msra.mxu0 0.0
        %3394 = vmatprep.subr.mxu0 0.0
        %3395 = vmatpush2.msra.mxu0 0.0
        %3396 = vmatprep.subr.mxu0 0.0
        %3397 = vmatpush2.msra.mxu0 0.0
        %3398 = vmatprep.subr.mxu0 0.0
        %3399 = vmatpush2.msra.mxu0 0.0
        %3400 = vmatprep.subr.mxu0 0.0
        %3401 = vmatpush2.msra.mxu0 0.0
        %3402 = vmatprep.subr.mxu0 0.0
        %3403 = vmatpush2.msra.mxu0 0.0
        %3404 = vmatprep.subr.mxu0 0.0
        %3405 = vmatpush2.msra.mxu0 0.0
        %3406 = vmatprep.subr.mxu0 0.0
        %3407 = vmatpush2.msra.mxu0 0.0
        %3408 = vmatprep.subr.mxu0 0.0
        %3409 = vmatpush2.msra.mxu0 0.0
        %3410 = vmatprep.subr.mxu0 0.0
        %3411 = vmatpush2.msra.mxu0 0.0
        %3412 = vmatprep.subr.mxu0 0.0
        %3413 = vmatpush2.msra.mxu0 0.0
        %3414 = vmatprep.subr.mxu0 0.0
        %3415 = vmatpush2.msra.mxu0 0.0
        %3416 = vmatprep.mubr.f32.mxu0 0.0
        %3417 = vmatmul.mubr.f32.gmra.mxu0 %v3347
        %v3418 = vpop.f32.mrf.mxu0
        %v3419 = vadd.f32 0.0, %v3418
        %v3420 = vpop.f32.mrf.mxu0
        %3421 = vmatprep.mubr.f32.mxu0 0.0
        %3422 = vmatmul.mubr.f32.gmra.mxu0 %v3350
        %v3423 = vpop.f32.mrf.mxu0
        %v3424 = vadd.f32 0.0, %v3423
        %v3425 = vpop.f32.mrf.mxu0
        %3426 = vdwg.mxu0
        %s3427 = scalar_lea.vmem [#allocation10], 256
        %v3428 = vld [vmem:[%s3427] sm:$0xff]
        %v3429 = vld [vmem:[%s3427 + $0x8] sm:$0xff]
        %v3430 = vld [vmem:[%s3427 + $0x10] sm:$0xff]
        %v3431 = vld [vmem:[%s3427 + $0x18] sm:$0xff]
        %v3432 = vld [vmem:[%s3427 + $0x20] sm:$0xff]
        %v3433 = vld [vmem:[%s3427 + $0x28] sm:$0xff]
        %v3434 = vld [vmem:[%s3427 + $0x30] sm:$0xff]
        %v3435 = vld [vmem:[%s3427 + $0x38] sm:$0xff]
        %v3436 = vld [vmem:[%s3427 + $0x40] sm:$0xff]
        %v3437 = vld [vmem:[%s3427 + $0x48] sm:$0xff]
        %v3438 = vld [vmem:[%s3427 + $0x50] sm:$0xff]
        %v3439 = vld [vmem:[%s3427 + $0x58] sm:$0xff]
        %v3440 = vld [vmem:[%s3427 + $0x60] sm:$0xff]
        %v3441 = vld [vmem:[%s3427 + $0x68] sm:$0xff]
        %v3442 = vld [vmem:[%s3427 + $0x70] sm:$0xff]
        %v3443 = vld [vmem:[%s3427 + $0x78] sm:$0xff]
        %3444 = vmatprep.subr.mxu0 0.0
        %3445 = vmatpush1.msra.mxu0 %v3443
        %3446 = vmatprep.subr.mxu0 0.0
        %3447 = vmatpush1.msra.mxu0 %v3442
        %3448 = vmatprep.subr.mxu0 0.0
        %3449 = vmatpush1.msra.mxu0 %v3441
        %3450 = vmatprep.subr.mxu0 0.0
        %3451 = vmatpush1.msra.mxu0 %v3440
        %3452 = vmatprep.subr.mxu0 0.0
        %3453 = vmatpush1.msra.mxu0 %v3439
        %3454 = vmatprep.subr.mxu0 0.0
        %3455 = vmatpush1.msra.mxu0 %v3438
        %3456 = vmatprep.subr.mxu0 0.0
        %3457 = vmatpush1.msra.mxu0 %v3437
        %3458 = vmatprep.subr.mxu0 0.0
        %3459 = vmatpush1.msra.mxu0 %v3436
        %3460 = vmatprep.subr.mxu0 0.0
        %3461 = vmatpush1.msra.mxu0 %v3435
        %3462 = vmatprep.subr.mxu0 0.0
        %3463 = vmatpush1.msra.mxu0 %v3434
        %3464 = vmatprep.subr.mxu0 0.0
        %3465 = vmatpush1.msra.mxu0 %v3433
        %3466 = vmatprep.subr.mxu0 0.0
        %3467 = vmatpush1.msra.mxu0 %v3432
        %3468 = vmatprep.subr.mxu0 0.0
        %3469 = vmatpush1.msra.mxu0 %v3431
        %3470 = vmatprep.subr.mxu0 0.0
        %3471 = vmatpush1.msra.mxu0 %v3430
        %3472 = vmatprep.subr.mxu0 0.0
        %3473 = vmatpush1.msra.mxu0 %v3429
        %3474 = vmatprep.subr.mxu0 0.0
        %3475 = vmatpush1.msra.mxu0 %v3428
        %3476 = vmatprep.subr.mxu0 0.0
        %3477 = vmatpush2.msra.mxu0 0.0
        %3478 = vmatprep.subr.mxu0 0.0
        %3479 = vmatpush2.msra.mxu0 0.0
        %3480 = vmatprep.subr.mxu0 0.0
        %3481 = vmatpush2.msra.mxu0 0.0
        %3482 = vmatprep.subr.mxu0 0.0
        %3483 = vmatpush2.msra.mxu0 0.0
        %3484 = vmatprep.subr.mxu0 0.0
        %3485 = vmatpush2.msra.mxu0 0.0
        %3486 = vmatprep.subr.mxu0 0.0
        %3487 = vmatpush2.msra.mxu0 0.0
        %3488 = vmatprep.subr.mxu0 0.0
        %3489 = vmatpush2.msra.mxu0 0.0
        %3490 = vmatprep.subr.mxu0 0.0
        %3491 = vmatpush2.msra.mxu0 0.0
        %3492 = vmatprep.subr.mxu0 0.0
        %3493 = vmatpush2.msra.mxu0 0.0
        %3494 = vmatprep.subr.mxu0 0.0
        %3495 = vmatpush2.msra.mxu0 0.0
        %3496 = vmatprep.subr.mxu0 0.0
        %3497 = vmatpush2.msra.mxu0 0.0
        %3498 = vmatprep.subr.mxu0 0.0
        %3499 = vmatpush2.msra.mxu0 0.0
        %3500 = vmatprep.subr.mxu0 0.0
        %3501 = vmatpush2.msra.mxu0 0.0
        %3502 = vmatprep.subr.mxu0 0.0
        %3503 = vmatpush2.msra.mxu0 0.0
        %3504 = vmatprep.subr.mxu0 0.0
        %3505 = vmatpush2.msra.mxu0 0.0
        %3506 = vmatprep.subr.mxu0 0.0
        %3507 = vmatpush2.msra.mxu0 0.0
        %3508 = vmatprep.mubr.f32.mxu0 0.0
        %3509 = vmatmul.mubr.f32.gmra.mxu0 %v3419
        %v3510 = vpop.f32.mrf.mxu0
        %v3511 = vadd.f32 0.0, %v3510
        %v3512 = vpop.f32.mrf.mxu0
        %3513 = vmatprep.mubr.f32.mxu0 0.0
        %3514 = vmatmul.mubr.f32.gmra.mxu0 %v3424
        %v3515 = vpop.f32.mrf.mxu0
        %v3516 = vadd.f32 0.0, %v3515
        %v3517 = vpop.f32.mrf.mxu0
        %3518 = vdwg.mxu0
        %v3519 = vadd.f32 %v3335, %v3511
        %v3520 = vadd.f32 %v3340, %v3516
        %s3521 = scalar_lea.vmem %s5, 48
        %v3522 = vld [vmem:[%s3521] sm:$0xff]
        %v3523 = vld [vmem:[%s3521 + $0x8] sm:$0xff]
        %v3525 = vsel %vm2994, %v3522, 0
        %v3528 = vsel %vm2994, %v3523, 0
        %3530 = vmatprep.subr.mxu0 0.0
        %3531 = vmatpush1.msra.mxu0 0.0
        %3532 = vmatprep.subr.mxu0 0.0
        %3533 = vmatpush1.msra.mxu0 0.0
        %3534 = vmatprep.subr.mxu0 0.0
        %3535 = vmatpush1.msra.mxu0 0.0
        %3536 = vmatprep.subr.mxu0 0.0
        %3537 = vmatpush1.msra.mxu0 0.0
        %3538 = vmatprep.subr.mxu0 0.0
        %3539 = vmatpush1.msra.mxu0 0.0
        %3540 = vmatprep.subr.mxu0 0.0
        %3541 = vmatpush1.msra.mxu0 0.0
        %3542 = vmatprep.subr.mxu0 0.0
        %3543 = vmatpush1.msra.mxu0 0.0
        %3544 = vmatprep.subr.mxu0 0.0
        %3545 = vmatpush1.msra.mxu0 0.0
        %3546 = vmatprep.subr.mxu0 0.0
        %3547 = vmatpush1.msra.mxu0 0.0
        %3548 = vmatprep.subr.mxu0 0.0
        %3549 = vmatpush1.msra.mxu0 0.0
        %3550 = vmatprep.subr.mxu0 0.0
        %3551 = vmatpush1.msra.mxu0 0.0
        %3552 = vmatprep.subr.mxu0 0.0
        %3553 = vmatpush1.msra.mxu0 0.0
        %3554 = vmatprep.subr.mxu0 0.0
        %3555 = vmatpush1.msra.mxu0 0.0
        %3556 = vmatprep.subr.mxu0 0.0
        %3557 = vmatpush1.msra.mxu0 0.0
        %3558 = vmatprep.subr.mxu0 0.0
        %3559 = vmatpush1.msra.mxu0 %v2991
        %3560 = vmatprep.subr.mxu0 0.0
        %3561 = vmatpush1.msra.mxu0 %v2990
        %3562 = vmatprep.subr.mxu0 0.0
        %3563 = vmatpush2.msra.mxu0 0.0
        %3564 = vmatprep.subr.mxu0 0.0
        %3565 = vmatpush2.msra.mxu0 0.0
        %3566 = vmatprep.subr.mxu0 0.0
        %3567 = vmatpush2.msra.mxu0 0.0
        %3568 = vmatprep.subr.mxu0 0.0
        %3569 = vmatpush2.msra.mxu0 0.0
        %3570 = vmatprep.subr.mxu0 0.0
        %3571 = vmatpush2.msra.mxu0 0.0
        %3572 = vmatprep.subr.mxu0 0.0
        %3573 = vmatpush2.msra.mxu0 0.0
        %3574 = vmatprep.subr.mxu0 0.0
        %3575 = vmatpush2.msra.mxu0 0.0
        %3576 = vmatprep.subr.mxu0 0.0
        %3577 = vmatpush2.msra.mxu0 0.0
        %3578 = vmatprep.subr.mxu0 0.0
        %3579 = vmatpush2.msra.mxu0 0.0
        %3580 = vmatprep.subr.mxu0 0.0
        %3581 = vmatpush2.msra.mxu0 0.0
        %3582 = vmatprep.subr.mxu0 0.0
        %3583 = vmatpush2.msra.mxu0 0.0
        %3584 = vmatprep.subr.mxu0 0.0
        %3585 = vmatpush2.msra.mxu0 0.0
        %3586 = vmatprep.subr.mxu0 0.0
        %3587 = vmatpush2.msra.mxu0 0.0
        %3588 = vmatprep.subr.mxu0 0.0
        %3589 = vmatpush2.msra.mxu0 0.0
        %3590 = vmatprep.subr.mxu0 0.0
        %3591 = vmatpush2.msra.mxu0 0.0
        %3592 = vmatprep.subr.mxu0 0.0
        %3593 = vmatpush2.msra.mxu0 0.0
        %3594 = vmatprep.mubr.f32.mxu0 0.0
        %3595 = vmatmul.mubr.f32.gmra.mxu0 %v3525
        %v3596 = vpop.f32.mrf.mxu0
        %v3597 = vadd.f32 0.0, %v3596
        %v3598 = vpop.f32.mrf.mxu0
        %3599 = vmatprep.mubr.f32.mxu0 0.0
        %3600 = vmatmul.mubr.f32.gmra.mxu0 %v3528
        %v3601 = vpop.f32.mrf.mxu0
        %v3602 = vadd.f32 0.0, %v3601
        %v3603 = vpop.f32.mrf.mxu0
        %3604 = vdwg.mxu0
        %s3605 = scalar_lea.vmem [#allocation10], 384
        %v3606 = vld [vmem:[%s3605] sm:$0xff]
        %v3607 = vld [vmem:[%s3605 + $0x8] sm:$0xff]
        %v3608 = vld [vmem:[%s3605 + $0x10] sm:$0xff]
        %v3609 = vld [vmem:[%s3605 + $0x18] sm:$0xff]
        %v3610 = vld [vmem:[%s3605 + $0x20] sm:$0xff]
        %v3611 = vld [vmem:[%s3605 + $0x28] sm:$0xff]
        %v3612 = vld [vmem:[%s3605 + $0x30] sm:$0xff]
        %v3613 = vld [vmem:[%s3605 + $0x38] sm:$0xff]
        %v3614 = vld [vmem:[%s3605 + $0x40] sm:$0xff]
        %v3615 = vld [vmem:[%s3605 + $0x48] sm:$0xff]
        %v3616 = vld [vmem:[%s3605 + $0x50] sm:$0xff]
        %v3617 = vld [vmem:[%s3605 + $0x58] sm:$0xff]
        %v3618 = vld [vmem:[%s3605 + $0x60] sm:$0xff]
        %v3619 = vld [vmem:[%s3605 + $0x68] sm:$0xff]
        %v3620 = vld [vmem:[%s3605 + $0x70] sm:$0xff]
        %v3621 = vld [vmem:[%s3605 + $0x78] sm:$0xff]
        %3622 = vmatprep.subr.mxu0 0.0
        %3623 = vmatpush1.msra.mxu0 %v3621
        %3624 = vmatprep.subr.mxu0 0.0
        %3625 = vmatpush1.msra.mxu0 %v3620
        %3626 = vmatprep.subr.mxu0 0.0
        %3627 = vmatpush1.msra.mxu0 %v3619
        %3628 = vmatprep.subr.mxu0 0.0
        %3629 = vmatpush1.msra.mxu0 %v3618
        %3630 = vmatprep.subr.mxu0 0.0
        %3631 = vmatpush1.msra.mxu0 %v3617
        %3632 = vmatprep.subr.mxu0 0.0
        %3633 = vmatpush1.msra.mxu0 %v3616
        %3634 = vmatprep.subr.mxu0 0.0
        %3635 = vmatpush1.msra.mxu0 %v3615
        %3636 = vmatprep.subr.mxu0 0.0
        %3637 = vmatpush1.msra.mxu0 %v3614
        %3638 = vmatprep.subr.mxu0 0.0
        %3639 = vmatpush1.msra.mxu0 %v3613
        %3640 = vmatprep.subr.mxu0 0.0
        %3641 = vmatpush1.msra.mxu0 %v3612
        %3642 = vmatprep.subr.mxu0 0.0
        %3643 = vmatpush1.msra.mxu0 %v3611
        %3644 = vmatprep.subr.mxu0 0.0
        %3645 = vmatpush1.msra.mxu0 %v3610
        %3646 = vmatprep.subr.mxu0 0.0
        %3647 = vmatpush1.msra.mxu0 %v3609
        %3648 = vmatprep.subr.mxu0 0.0
        %3649 = vmatpush1.msra.mxu0 %v3608
        %3650 = vmatprep.subr.mxu0 0.0
        %3651 = vmatpush1.msra.mxu0 %v3607
        %3652 = vmatprep.subr.mxu0 0.0
        %3653 = vmatpush1.msra.mxu0 %v3606
        %3654 = vmatprep.subr.mxu0 0.0
        %3655 = vmatpush2.msra.mxu0 0.0
        %3656 = vmatprep.subr.mxu0 0.0
        %3657 = vmatpush2.msra.mxu0 0.0
        %3658 = vmatprep.subr.mxu0 0.0
        %3659 = vmatpush2.msra.mxu0 0.0
        %3660 = vmatprep.subr.mxu0 0.0
        %3661 = vmatpush2.msra.mxu0 0.0
        %3662 = vmatprep.subr.mxu0 0.0
        %3663 = vmatpush2.msra.mxu0 0.0
        %3664 = vmatprep.subr.mxu0 0.0
        %3665 = vmatpush2.msra.mxu0 0.0
        %3666 = vmatprep.subr.mxu0 0.0
        %3667 = vmatpush2.msra.mxu0 0.0
        %3668 = vmatprep.subr.mxu0 0.0
        %3669 = vmatpush2.msra.mxu0 0.0
        %3670 = vmatprep.subr.mxu0 0.0
        %3671 = vmatpush2.msra.mxu0 0.0
        %3672 = vmatprep.subr.mxu0 0.0
        %3673 = vmatpush2.msra.mxu0 0.0
        %3674 = vmatprep.subr.mxu0 0.0
        %3675 = vmatpush2.msra.mxu0 0.0
        %3676 = vmatprep.subr.mxu0 0.0
        %3677 = vmatpush2.msra.mxu0 0.0
        %3678 = vmatprep.subr.mxu0 0.0
        %3679 = vmatpush2.msra.mxu0 0.0
        %3680 = vmatprep.subr.mxu0 0.0
        %3681 = vmatpush2.msra.mxu0 0.0
        %3682 = vmatprep.subr.mxu0 0.0
        %3683 = vmatpush2.msra.mxu0 0.0
        %3684 = vmatprep.subr.mxu0 0.0
        %3685 = vmatpush2.msra.mxu0 0.0
        %3686 = vmatprep.mubr.f32.mxu0 0.0
        %3687 = vmatmul.mubr.f32.gmra.mxu0 %v3597
        %v3688 = vpop.f32.mrf.mxu0
        %v3689 = vadd.f32 0.0, %v3688
        %v3690 = vpop.f32.mrf.mxu0
        %3691 = vmatprep.mubr.f32.mxu0 0.0
        %3692 = vmatmul.mubr.f32.gmra.mxu0 %v3602
        %v3693 = vpop.f32.mrf.mxu0
        %v3694 = vadd.f32 0.0, %v3693
        %v3695 = vpop.f32.mrf.mxu0
        %3696 = vdwg.mxu0
        %v3697 = vadd.f32 %v3519, %v3689
        %v3698 = vadd.f32 %v3520, %v3694
        %s3699 = scalar_lea.vmem %s5, 64
        %v3700 = vld [vmem:[%s3699] sm:$0xff]
        %v3701 = vld [vmem:[%s3699 + $0x8] sm:$0xff]
        %v3703 = vsel %vm2994, %v3700, 0
        %v3706 = vsel %vm2994, %v3701, 0
        %3708 = vmatprep.subr.mxu0 0.0
        %3709 = vmatpush1.msra.mxu0 0.0
        %3710 = vmatprep.subr.mxu0 0.0
        %3711 = vmatpush1.msra.mxu0 0.0
        %3712 = vmatprep.subr.mxu0 0.0
        %3713 = vmatpush1.msra.mxu0 0.0
        %3714 = vmatprep.subr.mxu0 0.0
        %3715 = vmatpush1.msra.mxu0 0.0
        %3716 = vmatprep.subr.mxu0 0.0
        %3717 = vmatpush1.msra.mxu0 0.0
        %3718 = vmatprep.subr.mxu0 0.0
        %3719 = vmatpush1.msra.mxu0 0.0
        %3720 = vmatprep.subr.mxu0 0.0
        %3721 = vmatpush1.msra.mxu0 0.0
        %3722 = vmatprep.subr.mxu0 0.0
        %3723 = vmatpush1.msra.mxu0 0.0
        %3724 = vmatprep.subr.mxu0 0.0
        %3725 = vmatpush1.msra.mxu0 0.0
        %3726 = vmatprep.subr.mxu0 0.0
        %3727 = vmatpush1.msra.mxu0 0.0
        %3728 = vmatprep.subr.mxu0 0.0
        %3729 = vmatpush1.msra.mxu0 0.0
        %3730 = vmatprep.subr.mxu0 0.0
        %3731 = vmatpush1.msra.mxu0 0.0
        %3732 = vmatprep.subr.mxu0 0.0
        %3733 = vmatpush1.msra.mxu0 0.0
        %3734 = vmatprep.subr.mxu0 0.0
        %3735 = vmatpush1.msra.mxu0 0.0
        %3736 = vmatprep.subr.mxu0 0.0
        %3737 = vmatpush1.msra.mxu0 %v2991
        %3738 = vmatprep.subr.mxu0 0.0
        %3739 = vmatpush1.msra.mxu0 %v2990
        %3740 = vmatprep.subr.mxu0 0.0
        %3741 = vmatpush2.msra.mxu0 0.0
        %3742 = vmatprep.subr.mxu0 0.0
        %3743 = vmatpush2.msra.mxu0 0.0
        %3744 = vmatprep.subr.mxu0 0.0
        %3745 = vmatpush2.msra.mxu0 0.0
        %3746 = vmatprep.subr.mxu0 0.0
        %3747 = vmatpush2.msra.mxu0 0.0
        %3748 = vmatprep.subr.mxu0 0.0
        %3749 = vmatpush2.msra.mxu0 0.0
        %3750 = vmatprep.subr.mxu0 0.0
        %3751 = vmatpush2.msra.mxu0 0.0
        %3752 = vmatprep.subr.mxu0 0.0
        %3753 = vmatpush2.msra.mxu0 0.0
        %3754 = vmatprep.subr.mxu0 0.0
        %3755 = vmatpush2.msra.mxu0 0.0
        %3756 = vmatprep.subr.mxu0 0.0
        %3757 = vmatpush2.msra.mxu0 0.0
        %3758 = vmatprep.subr.mxu0 0.0
        %3759 = vmatpush2.msra.mxu0 0.0
        %3760 = vmatprep.subr.mxu0 0.0
        %3761 = vmatpush2.msra.mxu0 0.0
        %3762 = vmatprep.subr.mxu0 0.0
        %3763 = vmatpush2.msra.mxu0 0.0
        %3764 = vmatprep.subr.mxu0 0.0
        %3765 = vmatpush2.msra.mxu0 0.0
        %3766 = vmatprep.subr.mxu0 0.0
        %3767 = vmatpush2.msra.mxu0 0.0
        %3768 = vmatprep.subr.mxu0 0.0
        %3769 = vmatpush2.msra.mxu0 0.0
        %3770 = vmatprep.subr.mxu0 0.0
        %3771 = vmatpush2.msra.mxu0 0.0
        %3772 = vmatprep.mubr.f32.mxu0 0.0
        %3773 = vmatmul.mubr.f32.gmra.mxu0 %v3703
        %v3774 = vpop.f32.mrf.mxu0
        %v3775 = vadd.f32 0.0, %v3774
        %v3776 = vpop.f32.mrf.mxu0
        %3777 = vmatprep.mubr.f32.mxu0 0.0
        %3778 = vmatmul.mubr.f32.gmra.mxu0 %v3706
        %v3779 = vpop.f32.mrf.mxu0
        %v3780 = vadd.f32 0.0, %v3779
        %v3781 = vpop.f32.mrf.mxu0
        %3782 = vdwg.mxu0
        %s3783 = scalar_lea.vmem [#allocation10], 512
        %v3784 = vld [vmem:[%s3783] sm:$0xff]
        %v3785 = vld [vmem:[%s3783 + $0x8] sm:$0xff]
        %v3786 = vld [vmem:[%s3783 + $0x10] sm:$0xff]
        %v3787 = vld [vmem:[%s3783 + $0x18] sm:$0xff]
        %v3788 = vld [vmem:[%s3783 + $0x20] sm:$0xff]
        %v3789 = vld [vmem:[%s3783 + $0x28] sm:$0xff]
        %v3790 = vld [vmem:[%s3783 + $0x30] sm:$0xff]
        %v3791 = vld [vmem:[%s3783 + $0x38] sm:$0xff]
        %v3792 = vld [vmem:[%s3783 + $0x40] sm:$0xff]
        %v3793 = vld [vmem:[%s3783 + $0x48] sm:$0xff]
        %v3794 = vld [vmem:[%s3783 + $0x50] sm:$0xff]
        %v3795 = vld [vmem:[%s3783 + $0x58] sm:$0xff]
        %v3796 = vld [vmem:[%s3783 + $0x60] sm:$0xff]
        %v3797 = vld [vmem:[%s3783 + $0x68] sm:$0xff]
        %v3798 = vld [vmem:[%s3783 + $0x70] sm:$0xff]
        %v3799 = vld [vmem:[%s3783 + $0x78] sm:$0xff]
        %3800 = vmatprep.subr.mxu0 0.0
        %3801 = vmatpush1.msra.mxu0 %v3799
        %3802 = vmatprep.subr.mxu0 0.0
        %3803 = vmatpush1.msra.mxu0 %v3798
        %3804 = vmatprep.subr.mxu0 0.0
        %3805 = vmatpush1.msra.mxu0 %v3797
        %3806 = vmatprep.subr.mxu0 0.0
        %3807 = vmatpush1.msra.mxu0 %v3796
        %3808 = vmatprep.subr.mxu0 0.0
        %3809 = vmatpush1.msra.mxu0 %v3795
        %3810 = vmatprep.subr.mxu0 0.0
        %3811 = vmatpush1.msra.mxu0 %v3794
        %3812 = vmatprep.subr.mxu0 0.0
        %3813 = vmatpush1.msra.mxu0 %v3793
        %3814 = vmatprep.subr.mxu0 0.0
        %3815 = vmatpush1.msra.mxu0 %v3792
        %3816 = vmatprep.subr.mxu0 0.0
        %3817 = vmatpush1.msra.mxu0 %v3791
        %3818 = vmatprep.subr.mxu0 0.0
        %3819 = vmatpush1.msra.mxu0 %v3790
        %3820 = vmatprep.subr.mxu0 0.0
        %3821 = vmatpush1.msra.mxu0 %v3789
        %3822 = vmatprep.subr.mxu0 0.0
        %3823 = vmatpush1.msra.mxu0 %v3788
        %3824 = vmatprep.subr.mxu0 0.0
        %3825 = vmatpush1.msra.mxu0 %v3787
        %3826 = vmatprep.subr.mxu0 0.0
        %3827 = vmatpush1.msra.mxu0 %v3786
        %3828 = vmatprep.subr.mxu0 0.0
        %3829 = vmatpush1.msra.mxu0 %v3785
        %3830 = vmatprep.subr.mxu0 0.0
        %3831 = vmatpush1.msra.mxu0 %v3784
        %3832 = vmatprep.subr.mxu0 0.0
        %3833 = vmatpush2.msra.mxu0 0.0
        %3834 = vmatprep.subr.mxu0 0.0
        %3835 = vmatpush2.msra.mxu0 0.0
        %3836 = vmatprep.subr.mxu0 0.0
        %3837 = vmatpush2.msra.mxu0 0.0
        %3838 = vmatprep.subr.mxu0 0.0
        %3839 = vmatpush2.msra.mxu0 0.0
        %3840 = vmatprep.subr.mxu0 0.0
        %3841 = vmatpush2.msra.mxu0 0.0
        %3842 = vmatprep.subr.mxu0 0.0
        %3843 = vmatpush2.msra.mxu0 0.0
        %3844 = vmatprep.subr.mxu0 0.0
        %3845 = vmatpush2.msra.mxu0 0.0
        %3846 = vmatprep.subr.mxu0 0.0
        %3847 = vmatpush2.msra.mxu0 0.0
        %3848 = vmatprep.subr.mxu0 0.0
        %3849 = vmatpush2.msra.mxu0 0.0
        %3850 = vmatprep.subr.mxu0 0.0
        %3851 = vmatpush2.msra.mxu0 0.0
        %3852 = vmatprep.subr.mxu0 0.0
        %3853 = vmatpush2.msra.mxu0 0.0
        %3854 = vmatprep.subr.mxu0 0.0
        %3855 = vmatpush2.msra.mxu0 0.0
        %3856 = vmatprep.subr.mxu0 0.0
        %3857 = vmatpush2.msra.mxu0 0.0
        %3858 = vmatprep.subr.mxu0 0.0
        %3859 = vmatpush2.msra.mxu0 0.0
        %3860 = vmatprep.subr.mxu0 0.0
        %3861 = vmatpush2.msra.mxu0 0.0
        %3862 = vmatprep.subr.mxu0 0.0
        %3863 = vmatpush2.msra.mxu0 0.0
        %3864 = vmatprep.mubr.f32.mxu0 0.0
        %3865 = vmatmul.mubr.f32.gmra.mxu0 %v3775
        %v3866 = vpop.f32.mrf.mxu0
        %v3867 = vadd.f32 0.0, %v3866
        %v3868 = vpop.f32.mrf.mxu0
        %3869 = vmatprep.mubr.f32.mxu0 0.0
        %3870 = vmatmul.mubr.f32.gmra.mxu0 %v3780
        %v3871 = vpop.f32.mrf.mxu0
        %v3872 = vadd.f32 0.0, %v3871
        %v3873 = vpop.f32.mrf.mxu0
        %3874 = vdwg.mxu0
        %v3875 = vadd.f32 %v3697, %v3867
        %v3876 = vadd.f32 %v3698, %v3872
        %s3877 = scalar_lea.vmem %s5, 80
        %v3878 = vld [vmem:[%s3877] sm:$0xff]
        %v3879 = vld [vmem:[%s3877 + $0x8] sm:$0xff]
        %v3881 = vsel %vm2994, %v3878, 0
        %v3884 = vsel %vm2994, %v3879, 0
        %3886 = vmatprep.subr.mxu0 0.0
        %3887 = vmatpush1.msra.mxu0 0.0
        %3888 = vmatprep.subr.mxu0 0.0
        %3889 = vmatpush1.msra.mxu0 0.0
        %3890 = vmatprep.subr.mxu0 0.0
        %3891 = vmatpush1.msra.mxu0 0.0
        %3892 = vmatprep.subr.mxu0 0.0
        %3893 = vmatpush1.msra.mxu0 0.0
        %3894 = vmatprep.subr.mxu0 0.0
        %3895 = vmatpush1.msra.mxu0 0.0
        %3896 = vmatprep.subr.mxu0 0.0
        %3897 = vmatpush1.msra.mxu0 0.0
        %3898 = vmatprep.subr.mxu0 0.0
        %3899 = vmatpush1.msra.mxu0 0.0
        %3900 = vmatprep.subr.mxu0 0.0
        %3901 = vmatpush1.msra.mxu0 0.0
        %3902 = vmatprep.subr.mxu0 0.0
        %3903 = vmatpush1.msra.mxu0 0.0
        %3904 = vmatprep.subr.mxu0 0.0
        %3905 = vmatpush1.msra.mxu0 0.0
        %3906 = vmatprep.subr.mxu0 0.0
        %3907 = vmatpush1.msra.mxu0 0.0
        %3908 = vmatprep.subr.mxu0 0.0
        %3909 = vmatpush1.msra.mxu0 0.0
        %3910 = vmatprep.subr.mxu0 0.0
        %3911 = vmatpush1.msra.mxu0 0.0
        %3912 = vmatprep.subr.mxu0 0.0
        %3913 = vmatpush1.msra.mxu0 0.0
        %3914 = vmatprep.subr.mxu0 0.0
        %3915 = vmatpush1.msra.mxu0 %v2991
        %3916 = vmatprep.subr.mxu0 0.0
        %3917 = vmatpush1.msra.mxu0 %v2990
        %3918 = vmatprep.subr.mxu0 0.0
        %3919 = vmatpush2.msra.mxu0 0.0
        %3920 = vmatprep.subr.mxu0 0.0
        %3921 = vmatpush2.msra.mxu0 0.0
        %3922 = vmatprep.subr.mxu0 0.0
        %3923 = vmatpush2.msra.mxu0 0.0
        %3924 = vmatprep.subr.mxu0 0.0
        %3925 = vmatpush2.msra.mxu0 0.0
        %3926 = vmatprep.subr.mxu0 0.0
        %3927 = vmatpush2.msra.mxu0 0.0
        %3928 = vmatprep.subr.mxu0 0.0
        %3929 = vmatpush2.msra.mxu0 0.0
        %3930 = vmatprep.subr.mxu0 0.0
        %3931 = vmatpush2.msra.mxu0 0.0
        %3932 = vmatprep.subr.mxu0 0.0
        %3933 = vmatpush2.msra.mxu0 0.0
        %3934 = vmatprep.subr.mxu0 0.0
        %3935 = vmatpush2.msra.mxu0 0.0
        %3936 = vmatprep.subr.mxu0 0.0
        %3937 = vmatpush2.msra.mxu0 0.0
        %3938 = vmatprep.subr.mxu0 0.0
        %3939 = vmatpush2.msra.mxu0 0.0
        %3940 = vmatprep.subr.mxu0 0.0
        %3941 = vmatpush2.msra.mxu0 0.0
        %3942 = vmatprep.subr.mxu0 0.0
        %3943 = vmatpush2.msra.mxu0 0.0
        %3944 = vmatprep.subr.mxu0 0.0
        %3945 = vmatpush2.msra.mxu0 0.0
        %3946 = vmatprep.subr.mxu0 0.0
        %3947 = vmatpush2.msra.mxu0 0.0
        %3948 = vmatprep.subr.mxu0 0.0
        %3949 = vmatpush2.msra.mxu0 0.0
        %3950 = vmatprep.mubr.f32.mxu0 0.0
        %3951 = vmatmul.mubr.f32.gmra.mxu0 %v3881
        %v3952 = vpop.f32.mrf.mxu0
        %v3953 = vadd.f32 0.0, %v3952
        %v3954 = vpop.f32.mrf.mxu0
        %3955 = vmatprep.mubr.f32.mxu0 0.0
        %3956 = vmatmul.mubr.f32.gmra.mxu0 %v3884
        %v3957 = vpop.f32.mrf.mxu0
        %v3958 = vadd.f32 0.0, %v3957
        %v3959 = vpop.f32.mrf.mxu0
        %3960 = vdwg.mxu0
        %s3961 = scalar_lea.vmem [#allocation10], 640
        %v3962 = vld [vmem:[%s3961] sm:$0xff]
        %v3963 = vld [vmem:[%s3961 + $0x8] sm:$0xff]
        %v3964 = vld [vmem:[%s3961 + $0x10] sm:$0xff]
        %v3965 = vld [vmem:[%s3961 + $0x18] sm:$0xff]
        %v3966 = vld [vmem:[%s3961 + $0x20] sm:$0xff]
        %v3967 = vld [vmem:[%s3961 + $0x28] sm:$0xff]
        %v3968 = vld [vmem:[%s3961 + $0x30] sm:$0xff]
        %v3969 = vld [vmem:[%s3961 + $0x38] sm:$0xff]
        %v3970 = vld [vmem:[%s3961 + $0x40] sm:$0xff]
        %v3971 = vld [vmem:[%s3961 + $0x48] sm:$0xff]
        %v3972 = vld [vmem:[%s3961 + $0x50] sm:$0xff]
        %v3973 = vld [vmem:[%s3961 + $0x58] sm:$0xff]
        %v3974 = vld [vmem:[%s3961 + $0x60] sm:$0xff]
        %v3975 = vld [vmem:[%s3961 + $0x68] sm:$0xff]
        %v3976 = vld [vmem:[%s3961 + $0x70] sm:$0xff]
        %v3977 = vld [vmem:[%s3961 + $0x78] sm:$0xff]
        %3978 = vmatprep.subr.mxu0 0.0
        %3979 = vmatpush1.msra.mxu0 %v3977
        %3980 = vmatprep.subr.mxu0 0.0
        %3981 = vmatpush1.msra.mxu0 %v3976
        %3982 = vmatprep.subr.mxu0 0.0
        %3983 = vmatpush1.msra.mxu0 %v3975
        %3984 = vmatprep.subr.mxu0 0.0
        %3985 = vmatpush1.msra.mxu0 %v3974
        %3986 = vmatprep.subr.mxu0 0.0
        %3987 = vmatpush1.msra.mxu0 %v3973
        %3988 = vmatprep.subr.mxu0 0.0
        %3989 = vmatpush1.msra.mxu0 %v3972
        %3990 = vmatprep.subr.mxu0 0.0
        %3991 = vmatpush1.msra.mxu0 %v3971
        %3992 = vmatprep.subr.mxu0 0.0
        %3993 = vmatpush1.msra.mxu0 %v3970
        %3994 = vmatprep.subr.mxu0 0.0
        %3995 = vmatpush1.msra.mxu0 %v3969
        %3996 = vmatprep.subr.mxu0 0.0
        %3997 = vmatpush1.msra.mxu0 %v3968
        %3998 = vmatprep.subr.mxu0 0.0
        %3999 = vmatpush1.msra.mxu0 %v3967
        %4000 = vmatprep.subr.mxu0 0.0
        %4001 = vmatpush1.msra.mxu0 %v3966
        %4002 = vmatprep.subr.mxu0 0.0
        %4003 = vmatpush1.msra.mxu0 %v3965
        %4004 = vmatprep.subr.mxu0 0.0
        %4005 = vmatpush1.msra.mxu0 %v3964
        %4006 = vmatprep.subr.mxu0 0.0
        %4007 = vmatpush1.msra.mxu0 %v3963
        %4008 = vmatprep.subr.mxu0 0.0
        %4009 = vmatpush1.msra.mxu0 %v3962
        %4010 = vmatprep.subr.mxu0 0.0
        %4011 = vmatpush2.msra.mxu0 0.0
        %4012 = vmatprep.subr.mxu0 0.0
        %4013 = vmatpush2.msra.mxu0 0.0
        %4014 = vmatprep.subr.mxu0 0.0
        %4015 = vmatpush2.msra.mxu0 0.0
        %4016 = vmatprep.subr.mxu0 0.0
        %4017 = vmatpush2.msra.mxu0 0.0
        %4018 = vmatprep.subr.mxu0 0.0
        %4019 = vmatpush2.msra.mxu0 0.0
        %4020 = vmatprep.subr.mxu0 0.0
        %4021 = vmatpush2.msra.mxu0 0.0
        %4022 = vmatprep.subr.mxu0 0.0
        %4023 = vmatpush2.msra.mxu0 0.0
        %4024 = vmatprep.subr.mxu0 0.0
        %4025 = vmatpush2.msra.mxu0 0.0
        %4026 = vmatprep.subr.mxu0 0.0
        %4027 = vmatpush2.msra.mxu0 0.0
        %4028 = vmatprep.subr.mxu0 0.0
        %4029 = vmatpush2.msra.mxu0 0.0
        %4030 = vmatprep.subr.mxu0 0.0
        %4031 = vmatpush2.msra.mxu0 0.0
        %4032 = vmatprep.subr.mxu0 0.0
        %4033 = vmatpush2.msra.mxu0 0.0
        %4034 = vmatprep.subr.mxu0 0.0
        %4035 = vmatpush2.msra.mxu0 0.0
        %4036 = vmatprep.subr.mxu0 0.0
        %4037 = vmatpush2.msra.mxu0 0.0
        %4038 = vmatprep.subr.mxu0 0.0
        %4039 = vmatpush2.msra.mxu0 0.0
        %4040 = vmatprep.subr.mxu0 0.0
        %4041 = vmatpush2.msra.mxu0 0.0
        %4042 = vmatprep.mubr.f32.mxu0 0.0
        %4043 = vmatmul.mubr.f32.gmra.mxu0 %v3953
        %v4044 = vpop.f32.mrf.mxu0
        %v4045 = vadd.f32 0.0, %v4044
        %v4046 = vpop.f32.mrf.mxu0
        %4047 = vmatprep.mubr.f32.mxu0 0.0
        %4048 = vmatmul.mubr.f32.gmra.mxu0 %v3958
        %v4049 = vpop.f32.mrf.mxu0
        %v4050 = vadd.f32 0.0, %v4049
        %v4051 = vpop.f32.mrf.mxu0
        %4052 = vdwg.mxu0
        %v4053 = vadd.f32 %v3875, %v4045
        %v4054 = vadd.f32 %v3876, %v4050
        %s4055 = scalar_lea.vmem %s5, 96
        %v4056 = vld [vmem:[%s4055] sm:$0xff]
        %v4057 = vld [vmem:[%s4055 + $0x8] sm:$0xff]
        %v4059 = vsel %vm2994, %v4056, 0
        %v4062 = vsel %vm2994, %v4057, 0
        %4064 = vmatprep.subr.mxu0 0.0
        %4065 = vmatpush1.msra.mxu0 0.0
        %4066 = vmatprep.subr.mxu0 0.0
        %4067 = vmatpush1.msra.mxu0 0.0
        %4068 = vmatprep.subr.mxu0 0.0
        %4069 = vmatpush1.msra.mxu0 0.0
        %4070 = vmatprep.subr.mxu0 0.0
        %4071 = vmatpush1.msra.mxu0 0.0
        %4072 = vmatprep.subr.mxu0 0.0
        %4073 = vmatpush1.msra.mxu0 0.0
        %4074 = vmatprep.subr.mxu0 0.0
        %4075 = vmatpush1.msra.mxu0 0.0
        %4076 = vmatprep.subr.mxu0 0.0
        %4077 = vmatpush1.msra.mxu0 0.0
        %4078 = vmatprep.subr.mxu0 0.0
        %4079 = vmatpush1.msra.mxu0 0.0
        %4080 = vmatprep.subr.mxu0 0.0
        %4081 = vmatpush1.msra.mxu0 0.0
        %4082 = vmatprep.subr.mxu0 0.0
        %4083 = vmatpush1.msra.mxu0 0.0
        %4084 = vmatprep.subr.mxu0 0.0
        %4085 = vmatpush1.msra.mxu0 0.0
        %4086 = vmatprep.subr.mxu0 0.0
        %4087 = vmatpush1.msra.mxu0 0.0
        %4088 = vmatprep.subr.mxu0 0.0
        %4089 = vmatpush1.msra.mxu0 0.0
        %4090 = vmatprep.subr.mxu0 0.0
        %4091 = vmatpush1.msra.mxu0 0.0
        %4092 = vmatprep.subr.mxu0 0.0
        %4093 = vmatpush1.msra.mxu0 %v2991
        %4094 = vmatprep.subr.mxu0 0.0
        %4095 = vmatpush1.msra.mxu0 %v2990
        %4096 = vmatprep.subr.mxu0 0.0
        %4097 = vmatpush2.msra.mxu0 0.0
        %4098 = vmatprep.subr.mxu0 0.0
        %4099 = vmatpush2.msra.mxu0 0.0
        %4100 = vmatprep.subr.mxu0 0.0
        %4101 = vmatpush2.msra.mxu0 0.0
        %4102 = vmatprep.subr.mxu0 0.0
        %4103 = vmatpush2.msra.mxu0 0.0
        %4104 = vmatprep.subr.mxu0 0.0
        %4105 = vmatpush2.msra.mxu0 0.0
        %4106 = vmatprep.subr.mxu0 0.0
        %4107 = vmatpush2.msra.mxu0 0.0
        %4108 = vmatprep.subr.mxu0 0.0
        %4109 = vmatpush2.msra.mxu0 0.0
        %4110 = vmatprep.subr.mxu0 0.0
        %4111 = vmatpush2.msra.mxu0 0.0
        %4112 = vmatprep.subr.mxu0 0.0
        %4113 = vmatpush2.msra.mxu0 0.0
        %4114 = vmatprep.subr.mxu0 0.0
        %4115 = vmatpush2.msra.mxu0 0.0
        %4116 = vmatprep.subr.mxu0 0.0
        %4117 = vmatpush2.msra.mxu0 0.0
        %4118 = vmatprep.subr.mxu0 0.0
        %4119 = vmatpush2.msra.mxu0 0.0
        %4120 = vmatprep.subr.mxu0 0.0
        %4121 = vmatpush2.msra.mxu0 0.0
        %4122 = vmatprep.subr.mxu0 0.0
        %4123 = vmatpush2.msra.mxu0 0.0
        %4124 = vmatprep.subr.mxu0 0.0
        %4125 = vmatpush2.msra.mxu0 0.0
        %4126 = vmatprep.subr.mxu0 0.0
        %4127 = vmatpush2.msra.mxu0 0.0
        %4128 = vmatprep.mubr.f32.mxu0 0.0
        %4129 = vmatmul.mubr.f32.gmra.mxu0 %v4059
        %v4130 = vpop.f32.mrf.mxu0
        %v4131 = vadd.f32 0.0, %v4130
        %v4132 = vpop.f32.mrf.mxu0
        %4133 = vmatprep.mubr.f32.mxu0 0.0
        %4134 = vmatmul.mubr.f32.gmra.mxu0 %v4062
        %v4135 = vpop.f32.mrf.mxu0
        %v4136 = vadd.f32 0.0, %v4135
        %v4137 = vpop.f32.mrf.mxu0
        %4138 = vdwg.mxu0
        %s4139 = scalar_lea.vmem [#allocation10], 768
        %v4140 = vld [vmem:[%s4139] sm:$0xff]
        %v4141 = vld [vmem:[%s4139 + $0x8] sm:$0xff]
        %v4142 = vld [vmem:[%s4139 + $0x10] sm:$0xff]
        %v4143 = vld [vmem:[%s4139 + $0x18] sm:$0xff]
        %v4144 = vld [vmem:[%s4139 + $0x20] sm:$0xff]
        %v4145 = vld [vmem:[%s4139 + $0x28] sm:$0xff]
        %v4146 = vld [vmem:[%s4139 + $0x30] sm:$0xff]
        %v4147 = vld [vmem:[%s4139 + $0x38] sm:$0xff]
        %v4148 = vld [vmem:[%s4139 + $0x40] sm:$0xff]
        %v4149 = vld [vmem:[%s4139 + $0x48] sm:$0xff]
        %v4150 = vld [vmem:[%s4139 + $0x50] sm:$0xff]
        %v4151 = vld [vmem:[%s4139 + $0x58] sm:$0xff]
        %v4152 = vld [vmem:[%s4139 + $0x60] sm:$0xff]
        %v4153 = vld [vmem:[%s4139 + $0x68] sm:$0xff]
        %v4154 = vld [vmem:[%s4139 + $0x70] sm:$0xff]
        %v4155 = vld [vmem:[%s4139 + $0x78] sm:$0xff]
        %4156 = vmatprep.subr.mxu0 0.0
        %4157 = vmatpush1.msra.mxu0 %v4155
        %4158 = vmatprep.subr.mxu0 0.0
        %4159 = vmatpush1.msra.mxu0 %v4154
        %4160 = vmatprep.subr.mxu0 0.0
        %4161 = vmatpush1.msra.mxu0 %v4153
        %4162 = vmatprep.subr.mxu0 0.0
        %4163 = vmatpush1.msra.mxu0 %v4152
        %4164 = vmatprep.subr.mxu0 0.0
        %4165 = vmatpush1.msra.mxu0 %v4151
        %4166 = vmatprep.subr.mxu0 0.0
        %4167 = vmatpush1.msra.mxu0 %v4150
        %4168 = vmatprep.subr.mxu0 0.0
        %4169 = vmatpush1.msra.mxu0 %v4149
        %4170 = vmatprep.subr.mxu0 0.0
        %4171 = vmatpush1.msra.mxu0 %v4148
        %4172 = vmatprep.subr.mxu0 0.0
        %4173 = vmatpush1.msra.mxu0 %v4147
        %4174 = vmatprep.subr.mxu0 0.0
        %4175 = vmatpush1.msra.mxu0 %v4146
        %4176 = vmatprep.subr.mxu0 0.0
        %4177 = vmatpush1.msra.mxu0 %v4145
        %4178 = vmatprep.subr.mxu0 0.0
        %4179 = vmatpush1.msra.mxu0 %v4144
        %4180 = vmatprep.subr.mxu0 0.0
        %4181 = vmatpush1.msra.mxu0 %v4143
        %4182 = vmatprep.subr.mxu0 0.0
        %4183 = vmatpush1.msra.mxu0 %v4142
        %4184 = vmatprep.subr.mxu0 0.0
        %4185 = vmatpush1.msra.mxu0 %v4141
        %4186 = vmatprep.subr.mxu0 0.0
        %4187 = vmatpush1.msra.mxu0 %v4140
        %4188 = vmatprep.subr.mxu0 0.0
        %4189 = vmatpush2.msra.mxu0 0.0
        %4190 = vmatprep.subr.mxu0 0.0
        %4191 = vmatpush2.msra.mxu0 0.0
        %4192 = vmatprep.subr.mxu0 0.0
        %4193 = vmatpush2.msra.mxu0 0.0
        %4194 = vmatprep.subr.mxu0 0.0
        %4195 = vmatpush2.msra.mxu0 0.0
        %4196 = vmatprep.subr.mxu0 0.0
        %4197 = vmatpush2.msra.mxu0 0.0
        %4198 = vmatprep.subr.mxu0 0.0
        %4199 = vmatpush2.msra.mxu0 0.0
        %4200 = vmatprep.subr.mxu0 0.0
        %4201 = vmatpush2.msra.mxu0 0.0
        %4202 = vmatprep.subr.mxu0 0.0
        %4203 = vmatpush2.msra.mxu0 0.0
        %4204 = vmatprep.subr.mxu0 0.0
        %4205 = vmatpush2.msra.mxu0 0.0
        %4206 = vmatprep.subr.mxu0 0.0
        %4207 = vmatpush2.msra.mxu0 0.0
        %4208 = vmatprep.subr.mxu0 0.0
        %4209 = vmatpush2.msra.mxu0 0.0
        %4210 = vmatprep.subr.mxu0 0.0
        %4211 = vmatpush2.msra.mxu0 0.0
        %4212 = vmatprep.subr.mxu0 0.0
        %4213 = vmatpush2.msra.mxu0 0.0
        %4214 = vmatprep.subr.mxu0 0.0
        %4215 = vmatpush2.msra.mxu0 0.0
        %4216 = vmatprep.subr.mxu0 0.0
        %4217 = vmatpush2.msra.mxu0 0.0
        %4218 = vmatprep.subr.mxu0 0.0
        %4219 = vmatpush2.msra.mxu0 0.0
        %4220 = vmatprep.mubr.f32.mxu0 0.0
        %4221 = vmatmul.mubr.f32.gmra.mxu0 %v4131
        %v4222 = vpop.f32.mrf.mxu0
        %v4223 = vadd.f32 0.0, %v4222
        %v4224 = vpop.f32.mrf.mxu0
        %4225 = vmatprep.mubr.f32.mxu0 0.0
        %4226 = vmatmul.mubr.f32.gmra.mxu0 %v4136
        %v4227 = vpop.f32.mrf.mxu0
        %v4228 = vadd.f32 0.0, %v4227
        %v4229 = vpop.f32.mrf.mxu0
        %4230 = vdwg.mxu0
        %v4231 = vadd.f32 %v4053, %v4223
        %v4232 = vadd.f32 %v4054, %v4228
        %s4233 = scalar_lea.vmem %s5, 112
        %v4234 = vld [vmem:[%s4233] sm:$0xff]
        %v4235 = vld [vmem:[%s4233 + $0x8] sm:$0xff]
        %v4237 = vsel %vm2994, %v4234, 0
        %v4240 = vsel %vm2994, %v4235, 0
        %4242 = vmatprep.subr.mxu0 0.0
        %4243 = vmatpush1.msra.mxu0 0.0
        %4244 = vmatprep.subr.mxu0 0.0
        %4245 = vmatpush1.msra.mxu0 0.0
        %4246 = vmatprep.subr.mxu0 0.0
        %4247 = vmatpush1.msra.mxu0 0.0
        %4248 = vmatprep.subr.mxu0 0.0
        %4249 = vmatpush1.msra.mxu0 0.0
        %4250 = vmatprep.subr.mxu0 0.0
        %4251 = vmatpush1.msra.mxu0 0.0
        %4252 = vmatprep.subr.mxu0 0.0
        %4253 = vmatpush1.msra.mxu0 0.0
        %4254 = vmatprep.subr.mxu0 0.0
        %4255 = vmatpush1.msra.mxu0 0.0
        %4256 = vmatprep.subr.mxu0 0.0
        %4257 = vmatpush1.msra.mxu0 0.0
        %4258 = vmatprep.subr.mxu0 0.0
        %4259 = vmatpush1.msra.mxu0 0.0
        %4260 = vmatprep.subr.mxu0 0.0
        %4261 = vmatpush1.msra.mxu0 0.0
        %4262 = vmatprep.subr.mxu0 0.0
        %4263 = vmatpush1.msra.mxu0 0.0
        %4264 = vmatprep.subr.mxu0 0.0
        %4265 = vmatpush1.msra.mxu0 0.0
        %4266 = vmatprep.subr.mxu0 0.0
        %4267 = vmatpush1.msra.mxu0 0.0
        %4268 = vmatprep.subr.mxu0 0.0
        %4269 = vmatpush1.msra.mxu0 0.0
        %4270 = vmatprep.subr.mxu0 0.0
        %4271 = vmatpush1.msra.mxu0 %v2991
        %4272 = vmatprep.subr.mxu0 0.0
        %4273 = vmatpush1.msra.mxu0 %v2990
        %4274 = vmatprep.subr.mxu0 0.0
        %4275 = vmatpush2.msra.mxu0 0.0
        %4276 = vmatprep.subr.mxu0 0.0
        %4277 = vmatpush2.msra.mxu0 0.0
        %4278 = vmatprep.subr.mxu0 0.0
        %4279 = vmatpush2.msra.mxu0 0.0
        %4280 = vmatprep.subr.mxu0 0.0
        %4281 = vmatpush2.msra.mxu0 0.0
        %4282 = vmatprep.subr.mxu0 0.0
        %4283 = vmatpush2.msra.mxu0 0.0
        %4284 = vmatprep.subr.mxu0 0.0
        %4285 = vmatpush2.msra.mxu0 0.0
        %4286 = vmatprep.subr.mxu0 0.0
        %4287 = vmatpush2.msra.mxu0 0.0
        %4288 = vmatprep.subr.mxu0 0.0
        %4289 = vmatpush2.msra.mxu0 0.0
        %4290 = vmatprep.subr.mxu0 0.0
        %4291 = vmatpush2.msra.mxu0 0.0
        %4292 = vmatprep.subr.mxu0 0.0
        %4293 = vmatpush2.msra.mxu0 0.0
        %4294 = vmatprep.subr.mxu0 0.0
        %4295 = vmatpush2.msra.mxu0 0.0
        %4296 = vmatprep.subr.mxu0 0.0
        %4297 = vmatpush2.msra.mxu0 0.0
        %4298 = vmatprep.subr.mxu0 0.0
        %4299 = vmatpush2.msra.mxu0 0.0
        %4300 = vmatprep.subr.mxu0 0.0
        %4301 = vmatpush2.msra.mxu0 0.0
        %4302 = vmatprep.subr.mxu0 0.0
        %4303 = vmatpush2.msra.mxu0 0.0
        %4304 = vmatprep.subr.mxu0 0.0
        %4305 = vmatpush2.msra.mxu0 0.0
        %4306 = vmatprep.mubr.f32.mxu0 0.0
        %4307 = vmatmul.mubr.f32.gmra.mxu0 %v4237
        %v4308 = vpop.f32.mrf.mxu0
        %v4309 = vadd.f32 0.0, %v4308
        %v4310 = vpop.f32.mrf.mxu0
        %4311 = vmatprep.mubr.f32.mxu0 0.0
        %4312 = vmatmul.mubr.f32.gmra.mxu0 %v4240
        %v4313 = vpop.f32.mrf.mxu0
        %v4314 = vadd.f32 0.0, %v4313
        %v4315 = vpop.f32.mrf.mxu0
        %4316 = vdwg.mxu0
        %s4317 = scalar_lea.vmem [#allocation10], 896
        %v4318 = vld [vmem:[%s4317] sm:$0xff]
        %v4319 = vld [vmem:[%s4317 + $0x8] sm:$0xff]
        %v4320 = vld [vmem:[%s4317 + $0x10] sm:$0xff]
        %v4321 = vld [vmem:[%s4317 + $0x18] sm:$0xff]
        %v4322 = vld [vmem:[%s4317 + $0x20] sm:$0xff]
        %v4323 = vld [vmem:[%s4317 + $0x28] sm:$0xff]
        %v4324 = vld [vmem:[%s4317 + $0x30] sm:$0xff]
        %v4325 = vld [vmem:[%s4317 + $0x38] sm:$0xff]
        %v4326 = vld [vmem:[%s4317 + $0x40] sm:$0xff]
        %v4327 = vld [vmem:[%s4317 + $0x48] sm:$0xff]
        %v4328 = vld [vmem:[%s4317 + $0x50] sm:$0xff]
        %v4329 = vld [vmem:[%s4317 + $0x58] sm:$0xff]
        %v4330 = vld [vmem:[%s4317 + $0x60] sm:$0xff]
        %v4331 = vld [vmem:[%s4317 + $0x68] sm:$0xff]
        %v4332 = vld [vmem:[%s4317 + $0x70] sm:$0xff]
        %v4333 = vld [vmem:[%s4317 + $0x78] sm:$0xff]
        %4334 = vmatprep.subr.mxu0 0.0
        %4335 = vmatpush1.msra.mxu0 %v4333
        %4336 = vmatprep.subr.mxu0 0.0
        %4337 = vmatpush1.msra.mxu0 %v4332
        %4338 = vmatprep.subr.mxu0 0.0
        %4339 = vmatpush1.msra.mxu0 %v4331
        %4340 = vmatprep.subr.mxu0 0.0
        %4341 = vmatpush1.msra.mxu0 %v4330
        %4342 = vmatprep.subr.mxu0 0.0
        %4343 = vmatpush1.msra.mxu0 %v4329
        %4344 = vmatprep.subr.mxu0 0.0
        %4345 = vmatpush1.msra.mxu0 %v4328
        %4346 = vmatprep.subr.mxu0 0.0
        %4347 = vmatpush1.msra.mxu0 %v4327
        %4348 = vmatprep.subr.mxu0 0.0
        %4349 = vmatpush1.msra.mxu0 %v4326
        %4350 = vmatprep.subr.mxu0 0.0
        %4351 = vmatpush1.msra.mxu0 %v4325
        %4352 = vmatprep.subr.mxu0 0.0
        %4353 = vmatpush1.msra.mxu0 %v4324
        %4354 = vmatprep.subr.mxu0 0.0
        %4355 = vmatpush1.msra.mxu0 %v4323
        %4356 = vmatprep.subr.mxu0 0.0
        %4357 = vmatpush1.msra.mxu0 %v4322
        %4358 = vmatprep.subr.mxu0 0.0
        %4359 = vmatpush1.msra.mxu0 %v4321
        %4360 = vmatprep.subr.mxu0 0.0
        %4361 = vmatpush1.msra.mxu0 %v4320
        %4362 = vmatprep.subr.mxu0 0.0
        %4363 = vmatpush1.msra.mxu0 %v4319
        %4364 = vmatprep.subr.mxu0 0.0
        %4365 = vmatpush1.msra.mxu0 %v4318
        %4366 = vmatprep.subr.mxu0 0.0
        %4367 = vmatpush2.msra.mxu0 0.0
        %4368 = vmatprep.subr.mxu0 0.0
        %4369 = vmatpush2.msra.mxu0 0.0
        %4370 = vmatprep.subr.mxu0 0.0
        %4371 = vmatpush2.msra.mxu0 0.0
        %4372 = vmatprep.subr.mxu0 0.0
        %4373 = vmatpush2.msra.mxu0 0.0
        %4374 = vmatprep.subr.mxu0 0.0
        %4375 = vmatpush2.msra.mxu0 0.0
        %4376 = vmatprep.subr.mxu0 0.0
        %4377 = vmatpush2.msra.mxu0 0.0
        %4378 = vmatprep.subr.mxu0 0.0
        %4379 = vmatpush2.msra.mxu0 0.0
        %4380 = vmatprep.subr.mxu0 0.0
        %4381 = vmatpush2.msra.mxu0 0.0
        %4382 = vmatprep.subr.mxu0 0.0
        %4383 = vmatpush2.msra.mxu0 0.0
        %4384 = vmatprep.subr.mxu0 0.0
        %4385 = vmatpush2.msra.mxu0 0.0
        %4386 = vmatprep.subr.mxu0 0.0
        %4387 = vmatpush2.msra.mxu0 0.0
        %4388 = vmatprep.subr.mxu0 0.0
        %4389 = vmatpush2.msra.mxu0 0.0
        %4390 = vmatprep.subr.mxu0 0.0
        %4391 = vmatpush2.msra.mxu0 0.0
        %4392 = vmatprep.subr.mxu0 0.0
        %4393 = vmatpush2.msra.mxu0 0.0
        %4394 = vmatprep.subr.mxu0 0.0
        %4395 = vmatpush2.msra.mxu0 0.0
        %4396 = vmatprep.subr.mxu0 0.0
        %4397 = vmatpush2.msra.mxu0 0.0
        %4398 = vmatprep.mubr.f32.mxu0 0.0
        %4399 = vmatmul.mubr.f32.gmra.mxu0 %v4309
        %v4400 = vpop.f32.mrf.mxu0
        %v4401 = vadd.f32 0.0, %v4400
        %v4402 = vpop.f32.mrf.mxu0
        %4403 = vmatprep.mubr.f32.mxu0 0.0
        %4404 = vmatmul.mubr.f32.gmra.mxu0 %v4314
        %v4405 = vpop.f32.mrf.mxu0
        %v4406 = vadd.f32 0.0, %v4405
        %v4407 = vpop.f32.mrf.mxu0
        %4408 = vdwg.mxu0
        %v4409 = vadd.f32 %v4231, %v4401
        %v4410 = vadd.f32 %v4232, %v4406
        %s4411 = scalar_lea.vmem %s5, 128
        %v4412 = vld [vmem:[%s4411] sm:$0xff]
        %v4413 = vld [vmem:[%s4411 + $0x8] sm:$0xff]
        %v4415 = vsel %vm2994, %v4412, 0
        %v4418 = vsel %vm2994, %v4413, 0
        %4420 = vmatprep.subr.mxu0 0.0
        %4421 = vmatpush1.msra.mxu0 0.0
        %4422 = vmatprep.subr.mxu0 0.0
        %4423 = vmatpush1.msra.mxu0 0.0
        %4424 = vmatprep.subr.mxu0 0.0
        %4425 = vmatpush1.msra.mxu0 0.0
        %4426 = vmatprep.subr.mxu0 0.0
        %4427 = vmatpush1.msra.mxu0 0.0
        %4428 = vmatprep.subr.mxu0 0.0
        %4429 = vmatpush1.msra.mxu0 0.0
        %4430 = vmatprep.subr.mxu0 0.0
        %4431 = vmatpush1.msra.mxu0 0.0
        %4432 = vmatprep.subr.mxu0 0.0
        %4433 = vmatpush1.msra.mxu0 0.0
        %4434 = vmatprep.subr.mxu0 0.0
        %4435 = vmatpush1.msra.mxu0 0.0
        %4436 = vmatprep.subr.mxu0 0.0
        %4437 = vmatpush1.msra.mxu0 0.0
        %4438 = vmatprep.subr.mxu0 0.0
        %4439 = vmatpush1.msra.mxu0 0.0
        %4440 = vmatprep.subr.mxu0 0.0
        %4441 = vmatpush1.msra.mxu0 0.0
        %4442 = vmatprep.subr.mxu0 0.0
        %4443 = vmatpush1.msra.mxu0 0.0
        %4444 = vmatprep.subr.mxu0 0.0
        %4445 = vmatpush1.msra.mxu0 0.0
        %4446 = vmatprep.subr.mxu0 0.0
        %4447 = vmatpush1.msra.mxu0 0.0
        %4448 = vmatprep.subr.mxu0 0.0
        %4449 = vmatpush1.msra.mxu0 %v2991
        %4450 = vmatprep.subr.mxu0 0.0
        %4451 = vmatpush1.msra.mxu0 %v2990
        %4452 = vmatprep.subr.mxu0 0.0
        %4453 = vmatpush2.msra.mxu0 0.0
        %4454 = vmatprep.subr.mxu0 0.0
        %4455 = vmatpush2.msra.mxu0 0.0
        %4456 = vmatprep.subr.mxu0 0.0
        %4457 = vmatpush2.msra.mxu0 0.0
        %4458 = vmatprep.subr.mxu0 0.0
        %4459 = vmatpush2.msra.mxu0 0.0
        %4460 = vmatprep.subr.mxu0 0.0
        %4461 = vmatpush2.msra.mxu0 0.0
        %4462 = vmatprep.subr.mxu0 0.0
        %4463 = vmatpush2.msra.mxu0 0.0
        %4464 = vmatprep.subr.mxu0 0.0
        %4465 = vmatpush2.msra.mxu0 0.0
        %4466 = vmatprep.subr.mxu0 0.0
        %4467 = vmatpush2.msra.mxu0 0.0
        %4468 = vmatprep.subr.mxu0 0.0
        %4469 = vmatpush2.msra.mxu0 0.0
        %4470 = vmatprep.subr.mxu0 0.0
        %4471 = vmatpush2.msra.mxu0 0.0
        %4472 = vmatprep.subr.mxu0 0.0
        %4473 = vmatpush2.msra.mxu0 0.0
        %4474 = vmatprep.subr.mxu0 0.0
        %4475 = vmatpush2.msra.mxu0 0.0
        %4476 = vmatprep.subr.mxu0 0.0
        %4477 = vmatpush2.msra.mxu0 0.0
        %4478 = vmatprep.subr.mxu0 0.0
        %4479 = vmatpush2.msra.mxu0 0.0
        %4480 = vmatprep.subr.mxu0 0.0
        %4481 = vmatpush2.msra.mxu0 0.0
        %4482 = vmatprep.subr.mxu0 0.0
        %4483 = vmatpush2.msra.mxu0 0.0
        %4484 = vmatprep.mubr.f32.mxu0 0.0
        %4485 = vmatmul.mubr.f32.gmra.mxu0 %v4415
        %v4486 = vpop.f32.mrf.mxu0
        %v4487 = vadd.f32 0.0, %v4486
        %v4488 = vpop.f32.mrf.mxu0
        %4489 = vmatprep.mubr.f32.mxu0 0.0
        %4490 = vmatmul.mubr.f32.gmra.mxu0 %v4418
        %v4491 = vpop.f32.mrf.mxu0
        %v4492 = vadd.f32 0.0, %v4491
        %v4493 = vpop.f32.mrf.mxu0
        %4494 = vdwg.mxu0
        %s4495 = scalar_lea.vmem [#allocation10], 1024
        %v4496 = vld [vmem:[%s4495] sm:$0xff]
        %v4497 = vld [vmem:[%s4495 + $0x8] sm:$0xff]
        %v4498 = vld [vmem:[%s4495 + $0x10] sm:$0xff]
        %v4499 = vld [vmem:[%s4495 + $0x18] sm:$0xff]
        %v4500 = vld [vmem:[%s4495 + $0x20] sm:$0xff]
        %v4501 = vld [vmem:[%s4495 + $0x28] sm:$0xff]
        %v4502 = vld [vmem:[%s4495 + $0x30] sm:$0xff]
        %v4503 = vld [vmem:[%s4495 + $0x38] sm:$0xff]
        %v4504 = vld [vmem:[%s4495 + $0x40] sm:$0xff]
        %v4505 = vld [vmem:[%s4495 + $0x48] sm:$0xff]
        %v4506 = vld [vmem:[%s4495 + $0x50] sm:$0xff]
        %v4507 = vld [vmem:[%s4495 + $0x58] sm:$0xff]
        %v4508 = vld [vmem:[%s4495 + $0x60] sm:$0xff]
        %v4509 = vld [vmem:[%s4495 + $0x68] sm:$0xff]
        %v4510 = vld [vmem:[%s4495 + $0x70] sm:$0xff]
        %v4511 = vld [vmem:[%s4495 + $0x78] sm:$0xff]
        %4512 = vmatprep.subr.mxu0 0.0
        %4513 = vmatpush1.msra.mxu0 %v4511
        %4514 = vmatprep.subr.mxu0 0.0
        %4515 = vmatpush1.msra.mxu0 %v4510
        %4516 = vmatprep.subr.mxu0 0.0
        %4517 = vmatpush1.msra.mxu0 %v4509
        %4518 = vmatprep.subr.mxu0 0.0
        %4519 = vmatpush1.msra.mxu0 %v4508
        %4520 = vmatprep.subr.mxu0 0.0
        %4521 = vmatpush1.msra.mxu0 %v4507
        %4522 = vmatprep.subr.mxu0 0.0
        %4523 = vmatpush1.msra.mxu0 %v4506
        %4524 = vmatprep.subr.mxu0 0.0
        %4525 = vmatpush1.msra.mxu0 %v4505
        %4526 = vmatprep.subr.mxu0 0.0
        %4527 = vmatpush1.msra.mxu0 %v4504
        %4528 = vmatprep.subr.mxu0 0.0
        %4529 = vmatpush1.msra.mxu0 %v4503
        %4530 = vmatprep.subr.mxu0 0.0
        %4531 = vmatpush1.msra.mxu0 %v4502
        %4532 = vmatprep.subr.mxu0 0.0
        %4533 = vmatpush1.msra.mxu0 %v4501
        %4534 = vmatprep.subr.mxu0 0.0
        %4535 = vmatpush1.msra.mxu0 %v4500
        %4536 = vmatprep.subr.mxu0 0.0
        %4537 = vmatpush1.msra.mxu0 %v4499
        %4538 = vmatprep.subr.mxu0 0.0
        %4539 = vmatpush1.msra.mxu0 %v4498
        %4540 = vmatprep.subr.mxu0 0.0
        %4541 = vmatpush1.msra.mxu0 %v4497
        %4542 = vmatprep.subr.mxu0 0.0
        %4543 = vmatpush1.msra.mxu0 %v4496
        %4544 = vmatprep.subr.mxu0 0.0
        %4545 = vmatpush2.msra.mxu0 0.0
        %4546 = vmatprep.subr.mxu0 0.0
        %4547 = vmatpush2.msra.mxu0 0.0
        %4548 = vmatprep.subr.mxu0 0.0
        %4549 = vmatpush2.msra.mxu0 0.0
        %4550 = vmatprep.subr.mxu0 0.0
        %4551 = vmatpush2.msra.mxu0 0.0
        %4552 = vmatprep.subr.mxu0 0.0
        %4553 = vmatpush2.msra.mxu0 0.0
        %4554 = vmatprep.subr.mxu0 0.0
        %4555 = vmatpush2.msra.mxu0 0.0
        %4556 = vmatprep.subr.mxu0 0.0
        %4557 = vmatpush2.msra.mxu0 0.0
        %4558 = vmatprep.subr.mxu0 0.0
        %4559 = vmatpush2.msra.mxu0 0.0
        %4560 = vmatprep.subr.mxu0 0.0
        %4561 = vmatpush2.msra.mxu0 0.0
        %4562 = vmatprep.subr.mxu0 0.0
        %4563 = vmatpush2.msra.mxu0 0.0
        %4564 = vmatprep.subr.mxu0 0.0
        %4565 = vmatpush2.msra.mxu0 0.0
        %4566 = vmatprep.subr.mxu0 0.0
        %4567 = vmatpush2.msra.mxu0 0.0
        %4568 = vmatprep.subr.mxu0 0.0
        %4569 = vmatpush2.msra.mxu0 0.0
        %4570 = vmatprep.subr.mxu0 0.0
        %4571 = vmatpush2.msra.mxu0 0.0
        %4572 = vmatprep.subr.mxu0 0.0
        %4573 = vmatpush2.msra.mxu0 0.0
        %4574 = vmatprep.subr.mxu0 0.0
        %4575 = vmatpush2.msra.mxu0 0.0
        %4576 = vmatprep.mubr.f32.mxu0 0.0
        %4577 = vmatmul.mubr.f32.gmra.mxu0 %v4487
        %v4578 = vpop.f32.mrf.mxu0
        %v4579 = vadd.f32 0.0, %v4578
        %v4580 = vpop.f32.mrf.mxu0
        %4581 = vmatprep.mubr.f32.mxu0 0.0
        %4582 = vmatmul.mubr.f32.gmra.mxu0 %v4492
        %v4583 = vpop.f32.mrf.mxu0
        %v4584 = vadd.f32 0.0, %v4583
        %v4585 = vpop.f32.mrf.mxu0
        %4586 = vdwg.mxu0
        %v4587 = vadd.f32 %v4409, %v4579
        %v4588 = vadd.f32 %v4410, %v4584
        %v4589 = vld [vmem:[#allocation12] sm:$0xff]
        %v4590 = vld [vmem:[#allocation12 + $0x8] sm:$0xff]
        %v4591 = vld [vmem:[#allocation12 + $0x10] sm:$0xff]
        %v4592 = vld [vmem:[#allocation12 + $0x18] sm:$0xff]
        %v4593 = vld [vmem:[#allocation12 + $0x20] sm:$0xff]
        %v4594 = vld [vmem:[#allocation12 + $0x28] sm:$0xff]
        %v4595 = vld [vmem:[#allocation12 + $0x30] sm:$0xff]
        %v4596 = vld [vmem:[#allocation12 + $0x38] sm:$0xff]
        %v4597 = vld [vmem:[#allocation12 + $0x40] sm:$0xff]
        %v4598 = vld [vmem:[#allocation12 + $0x48] sm:$0xff]
        %v4599 = vld [vmem:[#allocation12 + $0x50] sm:$0xff]
        %v4600 = vld [vmem:[#allocation12 + $0x58] sm:$0xff]
        %v4601 = vld [vmem:[#allocation12 + $0x60] sm:$0xff]
        %v4602 = vld [vmem:[#allocation12 + $0x68] sm:$0xff]
        %v4603 = vld [vmem:[#allocation12 + $0x70] sm:$0xff]
        %v4604 = vld [vmem:[#allocation12 + $0x78] sm:$0xff]
        %4605 = vmatprep.subr.mxu0 0.0
        %4606 = vmatpush1.msra.mxu0 %v4604
        %4607 = vmatprep.subr.mxu0 0.0
        %4608 = vmatpush1.msra.mxu0 %v4603
        %4609 = vmatprep.subr.mxu0 0.0
        %4610 = vmatpush1.msra.mxu0 %v4602
        %4611 = vmatprep.subr.mxu0 0.0
        %4612 = vmatpush1.msra.mxu0 %v4601
        %4613 = vmatprep.subr.mxu0 0.0
        %4614 = vmatpush1.msra.mxu0 %v4600
        %4615 = vmatprep.subr.mxu0 0.0
        %4616 = vmatpush1.msra.mxu0 %v4599
        %4617 = vmatprep.subr.mxu0 0.0
        %4618 = vmatpush1.msra.mxu0 %v4598
        %4619 = vmatprep.subr.mxu0 0.0
        %4620 = vmatpush1.msra.mxu0 %v4597
        %4621 = vmatprep.subr.mxu0 0.0
        %4622 = vmatpush1.msra.mxu0 %v4596
        %4623 = vmatprep.subr.mxu0 0.0
        %4624 = vmatpush1.msra.mxu0 %v4595
        %4625 = vmatprep.subr.mxu0 0.0
        %4626 = vmatpush1.msra.mxu0 %v4594
        %4627 = vmatprep.subr.mxu0 0.0
        %4628 = vmatpush1.msra.mxu0 %v4593
        %4629 = vmatprep.subr.mxu0 0.0
        %4630 = vmatpush1.msra.mxu0 %v4592
        %4631 = vmatprep.subr.mxu0 0.0
        %4632 = vmatpush1.msra.mxu0 %v4591
        %4633 = vmatprep.subr.mxu0 0.0
        %4634 = vmatpush1.msra.mxu0 %v4590
        %4635 = vmatprep.subr.mxu0 0.0
        %4636 = vmatpush1.msra.mxu0 %v4589
        %4637 = vmatprep.subr.mxu0 0.0
        %4638 = vmatpush2.msra.mxu0 0.0
        %4639 = vmatprep.subr.mxu0 0.0
        %4640 = vmatpush2.msra.mxu0 0.0
        %4641 = vmatprep.subr.mxu0 0.0
        %4642 = vmatpush2.msra.mxu0 0.0
        %4643 = vmatprep.subr.mxu0 0.0
        %4644 = vmatpush2.msra.mxu0 0.0
        %4645 = vmatprep.subr.mxu0 0.0
        %4646 = vmatpush2.msra.mxu0 0.0
        %4647 = vmatprep.subr.mxu0 0.0
        %4648 = vmatpush2.msra.mxu0 0.0
        %4649 = vmatprep.subr.mxu0 0.0
        %4650 = vmatpush2.msra.mxu0 0.0
        %4651 = vmatprep.subr.mxu0 0.0
        %4652 = vmatpush2.msra.mxu0 0.0
        %4653 = vmatprep.subr.mxu0 0.0
        %4654 = vmatpush2.msra.mxu0 0.0
        %4655 = vmatprep.subr.mxu0 0.0
        %4656 = vmatpush2.msra.mxu0 0.0
        %4657 = vmatprep.subr.mxu0 0.0
        %4658 = vmatpush2.msra.mxu0 0.0
        %4659 = vmatprep.subr.mxu0 0.0
        %4660 = vmatpush2.msra.mxu0 0.0
        %4661 = vmatprep.subr.mxu0 0.0
        %4662 = vmatpush2.msra.mxu0 0.0
        %4663 = vmatprep.subr.mxu0 0.0
        %4664 = vmatpush2.msra.mxu0 0.0
        %4665 = vmatprep.subr.mxu0 0.0
        %4666 = vmatpush2.msra.mxu0 0.0
        %4667 = vmatprep.subr.mxu0 0.0
        %4668 = vmatpush2.msra.mxu0 0.0
        %4669 = vmatprep.mubr.f32.mxu0 0.0
        %4670 = vmatmul.mubr.f32.gmra.mxu0 %v4587
        %v4671 = vpop.f32.mrf.mxu0
        %v4672 = vadd.f32 0.0, %v4671
        %v4673 = vpop.f32.mrf.mxu0
        %4674 = vmatprep.mubr.f32.mxu0 0.0
        %4675 = vmatmul.mubr.f32.gmra.mxu0 %v4588
        %v4676 = vpop.f32.mrf.mxu0
        %v4677 = vadd.f32 0.0, %v4676
        %v4678 = vpop.f32.mrf.mxu0
        %4679 = vdwg.mxu0
        %4680 = vst [vmem:[%s371] sm:$0xff] %v4672
        %4681 = vst [vmem:[%s371 + $0x8] sm:$0xff] %v4677
        %s4682 = sand.u32 %s206, 1
        %s4683 = scalar_lea.sflag [#allocation6], %s4682
        %s4684 = sand.u32 %s206, 1
        %s4685 = smul.addr %s4684, 16
        %s4686 = scalar_lea.vmem [#allocation13], %s4685
        // Predicated region
        $region73: #{tpu_custom_call.1} parent=51 // pred_check
          %p4687 = pneg %p216
        $region74: #{tpu_custom_call.1} parent=51 // pred_check_branch
          %4689 = sbr.rel (%p4687) target = $region76
        $region75: #{tpu_custom_call.1} parent=51 // pred_region
          %s4691 = ssub.s32 256, 256
          %4692 = vsyncadd %s4683, %s4691
          %s4693 = smul.addr %s25, 2
          %s4694 = smul.addr %s4693, 128
          %s4695 = scalar_lea.hbm %s8, %s4694
          %s4696 = sshll.u32 %s4686, 4
          %s4697 = int_to_ptr.vmem [resolvable:$true] %s4696
          %4702 = dma.vmem_to_hbm [thread:$0]  %s4697, 256, %s4695, %s4683, 128, 128, 8
        $region76: #{tpu_custom_call.1} parent=51 // pred_fallthru
          _
      $region52: #{tpu_custom_call.1} parent=5 // pred_fallthru
        _
      %p4703 = scmp.le.s32.totalorder 2, %s20
      // Predicated region
      $region77: #{tpu_custom_call.1} parent=5 // pred_check
        %p4704 = pneg %p4703
      $region78: #{tpu_custom_call.1} parent=5 // pred_check_branch
        %4706 = sbr.rel (%p4704) target = $region80
      $region79: #{tpu_custom_call.1} parent=5 // pred_region
        %s4707 = ssub.s32 %s20, 2
        // Predicated region
        $region81: #{tpu_custom_call.1} parent=79 // pred_check
          %p4708 = pneg %p222
        $region82: #{tpu_custom_call.1} parent=79 // pred_check_branch
          %4710 = sbr.rel (%p4708) target = $region84
        $region83: #{tpu_custom_call.1} parent=79 // pred_region
          %s4711 = sand.u32 %s207, 1
          %s4712 = scalar_lea.sflag [#allocation6], %s4711
          %s4713 = sand.u32 %s207, 1
          %s4714 = smul.addr %s4713, 16
          %s4715 = scalar_lea.vmem [#allocation13], %s4714
          %4716 = dma.done %s4712, 256
        $region84: #{tpu_custom_call.1} parent=79 // pred_fallthru
          _
      $region80: #{tpu_custom_call.1} parent=5 // pred_fallthru
        _
    $region6: #{tpu_custom_call.1} parent=1 // loop_footer
      %s24 = sadd.s32 1, %s20
    $region7: #{tpu_custom_call.1} parent=1 // loop_footer_branch
      %19 = sbr.rel target = $region3
    $region8: #{tpu_custom_call.1} parent=1 // loop_exit
      _
    %4717 = vsyncpa [#allocation5], 1
    %s4718 = scalar_lea.sflag [#allocation5], 1
    %4719 = vsyncpa %s4718, 1
    %4720 = vsyncpa [#allocation8], 1
    %4721 = vsyncpa [#allocation11], 1
    %4722 = vsyncpa [#allocation6], 1
    %s4723 = scalar_lea.sflag [#allocation6], 1
    %4724 = vsyncpa %s4723, 1

</llo_original>
